<compile_context>
chip_gen: v6e
topology: v6e:2x2x1
jax: 0.10.0
libtpu: 0.0.40
codegen_flags: <defaults>
</compile_context>

<pallas_src>
import functools

import jax
import jax.numpy as jnp
import numpy as np
from jax.experimental import pallas as pl
from jax.experimental.pallas import tpu as pltpu

# ---------------------------------------------------------------------------
# Config (genre/director/actor widths are fixed by the slicing in forward()).
# ---------------------------------------------------------------------------
CONFIG = dict(
    embedding_dim=32,
    first_fc_hidden_dim=64,
    second_fc_hidden_dim=64,
    num_rate=6,
    num_genre=25,
    num_director=2186,
    num_actor=8030,
    num_gender=2,
    num_age=7,
    num_occupation=21,
    num_zipcode=100,
)

# Padded contraction widths (multiples of 128, zero-padded -> numerically exact)
GENRE_PAD = 128    # 25   -> 128
DIR_PAD = 2304     # 2186 -> 2304
ACT_PAD = 8064     # 8030 -> 8064
# Batch block cap.  At bb=256 with bf16 multi-hots the double-buffered
# actor/director blocks + resident weights + f32 upcast transients stay well
# under the 48 MiB scoped limit on every chip (v5e/v6e: 128 MiB physical,
# v7x: 64 MiB physical).
MAX_BLOCK_B = 256
VMEM_LIMIT_BYTES = 48 * 1024 * 1024


def _round_up(n, m):
    return ((n + m - 1) // m) * m


# ---------------------------------------------------------------------------
# Pallas kernel: one batch block per grid step, weights resident in VMEM.
# ---------------------------------------------------------------------------
def _mlu_kernel(E, H1,
                cat_ref, genre_ref, dir_ref, act_ref,      # activations
                wg_ref, wd_ref, wa_ref,                    # folded [K_pad, H1+1]
                f1c_ref, f1b_ref,                          # fc1 (cat slice) + bias
                f2w_ref, f2b_ref, low_ref, lob_ref,        # fc2 / linear_out
                o_ref):
    f32 = jnp.float32

    def multihot_contrib(mh_ref, w_fold_ref):
        # mh is bf16 (exact 0/1 values); upcast is a per-vreg VPU op hidden
        # under the DMA.  One MXU matmul yields both the fc1 contribution
        # (cols 0..H1-1, fc1 slice pre-folded into the weight) and the per-row
        # multi-hot count (col H1, appended ones-column).
        z = jnp.dot(mh_ref[...].astype(f32), w_fold_ref[...],
                    preferred_element_type=f32)
        # NOTE: matches PyTorch semantics -- an all-zero multi-hot row yields
        # inf/nan, exactly like the reference module (no guard).  Padded batch
        # rows hit this path too; they are sliced off by the wrapper.
        inv = pl.reciprocal(z[:, H1:H1 + 1], approx=False)
        return z[:, :H1] * inv

    # fc1 on the (virtual) concatenation of the 8 embeddings, expressed as a
    # sum of partial matmuls.
    h = f1b_ref[...] + jnp.dot(cat_ref[...], f1c_ref[...],
                               preferred_element_type=f32)
    h = h + multihot_contrib(genre_ref, wg_ref)
    h = h + multihot_contrib(dir_ref, wd_ref)
    h = h + multihot_contrib(act_ref, wa_ref)
    h = jnp.maximum(h, 0.0)                                     # relu
    h = jnp.dot(h, f2w_ref[...], preferred_element_type=f32) + f2b_ref[...]
    h = jnp.maximum(h, 0.0)                                     # relu
    o_ref[...] = jnp.dot(h, low_ref[...],
                         preferred_element_type=f32) + lob_ref[...]


# ---------------------------------------------------------------------------
# Parameter construction (deterministic, synthetic).
# ---------------------------------------------------------------------------
def init_params(key, cfg):
    E = cfg['embedding_dim']
    H1 = cfg['first_fc_hidden_dim']
    H2 = cfg['second_fc_hidden_dim']
    ks = jax.random.split(key, 16)

    def norm(k, shape, scale=0.1):
        return (scale * jax.random.normal(k, shape)).astype(jnp.float32)

    return {
        # embedding tables [num, E]
        'rate_table':   norm(ks[0], (cfg['num_rate'], E)),
        'gender_table': norm(ks[1], (cfg['num_gender'], E)),
        'age_table':    norm(ks[2], (cfg['num_age'], E)),
        'occ_table':    norm(ks[3], (cfg['num_occupation'], E)),
        'area_table':   norm(ks[4], (cfg['num_zipcode'], E)),
        # multi-hot Linear (no bias) weights, stored as [in, E]
        'genre_w':    norm(ks[5], (cfg['num_genre'], E)),
        'director_w': norm(ks[6], (cfg['num_director'], E)),
        'actor_w':    norm(ks[7], (cfg['num_actor'], E)),
        # MLP, weights stored [in, out], biases [1, out]
        'fc1_w': norm(ks[8], (8 * E, H1)),
        'fc1_b': norm(ks[9], (1, H1)),
        'fc2_w': norm(ks[10], (H1, H2)),
        'fc2_b': norm(ks[11], (1, H2)),
        'lo_w':  norm(ks[12], (H2, 1)),
        'lo_b':  norm(ks[13], (1, 1)),
    }


# ---------------------------------------------------------------------------
# Wrapper: slice x, gather tiny embeddings, fold weights, call the kernel.
# Run under jax.jit so the slice + bf16 cast + pad fuses into one HBM write.
# ---------------------------------------------------------------------------
def user_preference_estimator_forward(params, x, cfg):
    E = cfg['embedding_dim']
    H1 = cfg['first_fc_hidden_dim']
    H2 = cfg['second_fc_hidden_dim']
    B = x.shape[0]
    hdot = functools.partial(jnp.dot, precision=jax.lax.Precision.HIGHEST)

    # ---- glue: slicing exactly as the PyTorch forward dictates ----
    rate_idx = x[:, 0]
    # bf16 is exact for 0/1 multi-hot values; halves the dominant HBM bytes.
    genre = x[:, 1:26].astype(jnp.bfloat16)
    director = x[:, 26:2212].astype(jnp.bfloat16)
    actor = x[:, 2212:10242].astype(jnp.bfloat16)
    gender_idx = x[:, 10242]
    age_idx = x[:, 10243]
    occ_idx = x[:, 10244]
    area_idx = x[:, 10245]

    # 5 tiny categorical embeddings gathered in the wrapper -> one tensor.
    # Row order must match f1_cat below: rate | gender | age | occ | area.
    cat_emb = jnp.concatenate([
        params['rate_table'][rate_idx],
        params['gender_table'][gender_idx],
        params['age_table'][age_idx],
        params['occ_table'][occ_idx],
        params['area_table'][area_idx],
    ], axis=1)                                            # [B, 5*E] f32

    # ---- batch block: aim for >=2 grid steps so v7x megacore can engage ----
    if B <= 2 * MAX_BLOCK_B:
        bb = max(8, min(MAX_BLOCK_B, _round_up(-(-B // 2), 8)))
    else:
        bb = MAX_BLOCK_B
    B_pad = _round_up(B, bb)

    def pad2(a, rows, cols):
        return jnp.pad(a, ((0, rows - a.shape[0]), (0, cols - a.shape[1])))

    cat_emb = pad2(cat_emb, B_pad, 5 * E)
    genre = pad2(genre, B_pad, GENRE_PAD)
    director = pad2(director, B_pad, DIR_PAD)
    actor = pad2(actor, B_pad, ACT_PAD)

    # ---- weight prep: fold fc1 row-slices into the multi-hot weights and
    #      append a ones-column for the per-row count ----
    fc1_w = params['fc1_w']   # rows: rate|genre|director|actor|gender|age|occ|area
    f1_cat = jnp.concatenate([fc1_w[0:E], fc1_w[4 * E:8 * E]], axis=0)  # [5E,H1]
    f1_genre = fc1_w[E:2 * E]
    f1_dir = fc1_w[2 * E:3 * E]
    f1_act = fc1_w[3 * E:4 * E]

    def fold(w_mh, f1_slice, k_pad):
        k = w_mh.shape[0]
        fused = hdot(w_mh, f1_slice)                               # [k, H1] f32
        aug = jnp.concatenate([fused, jnp.ones((k, 1), jnp.float32)], axis=1)
        return jnp.pad(aug, ((0, k_pad - k), (0, 0)))              # [K_pad, H1+1]

    wg = fold(params['genre_w'], f1_genre, GENRE_PAD)
    wd = fold(params['director_w'], f1_dir, DIR_PAD)
    wa = fold(params['actor_w'], f1_act, ACT_PAD)

    kernel_inputs = (
        cat_emb, genre, director, actor,
        wg, wd, wa,
        f1_cat, params['fc1_b'],
        params['fc2_w'], params['fc2_b'],
        params['lo_w'], params['lo_b'],
    )

    def row_spec(ncols):
        return pl.BlockSpec((bb, ncols), lambda i: (i, 0))

    def resident_spec(arr):
        return pl.BlockSpec(arr.shape, lambda i: (0, 0))

    in_specs = ([row_spec(5 * E), row_spec(GENRE_PAD),
                 row_spec(DIR_PAD), row_spec(ACT_PAD)]
                + [resident_spec(a) for a in kernel_inputs[4:]])

    flops = 2 * B_pad * ((GENRE_PAD + DIR_PAD + ACT_PAD) * (H1 + 1)
                         + 5 * E * H1 + H1 * H2 + H2)
    weight_bytes = sum(int(np.prod(a.shape)) * 4 for a in kernel_inputs[4:])
    act_bytes = (B_pad * 2 * (GENRE_PAD + DIR_PAD + ACT_PAD)     # bf16 multi-hots
                 + B_pad * 4 * (5 * E + 1))                      # cat_emb + out
    cost = pl.CostEstimate(flops=int(flops), transcendentals=0,
                           bytes_accessed=int(weight_bytes + act_bytes))

    out = pl.pallas_call(
        functools.partial(_mlu_kernel, E, H1),
        grid=(B_pad // bb,),
        in_specs=in_specs,
        out_specs=row_spec(1),
        out_shape=jax.ShapeDtypeStruct((B_pad, 1), jnp.float32),
        compiler_params=pltpu.CompilerParams(
            dimension_semantics=("parallel",),
            vmem_limit_bytes=VMEM_LIMIT_BYTES),
        cost_estimate=cost,
    )(*kernel_inputs)
    return out[:B]


# ---------------------------------------------------------------------------
# Pure-JAX reference (mirrors the PyTorch module exactly; full-f32 matmuls so
# the 1e-5 comparison measures the kernel, not XLA's default bf16 dot path).
# ---------------------------------------------------------------------------
def reference_forward(params, x, cfg):
    hdot = functools.partial(jnp.dot, precision=jax.lax.Precision.HIGHEST)

    rate_idx = x[:, 0]
    genre = x[:, 1:26].astype(jnp.float32)
    director = x[:, 26:2212].astype(jnp.float32)
    actor = x[:, 2212:10242].astype(jnp.float32)
    gender_idx = x[:, 10242]
    age_idx = x[:, 10243]
    occ_idx = x[:, 10244]
    area_idx = x[:, 10245]

    rate_emb = params['rate_table'][rate_idx]
    genre_emb = hdot(genre, params['genre_w']) / jnp.sum(genre, 1, keepdims=True)
    director_emb = hdot(director, params['director_w']) / jnp.sum(director, 1, keepdims=True)
    actor_emb = hdot(actor, params['actor_w']) / jnp.sum(actor, 1, keepdims=True)
    gender_emb = params['gender_table'][gender_idx]
    age_emb = params['age_table'][age_idx]
    occ_emb = params['occ_table'][occ_idx]
    area_emb = params['area_table'][area_idx]

    h = jnp.concatenate([rate_emb, genre_emb, director_emb, actor_emb,
                         gender_emb, age_emb, occ_emb, area_emb], axis=1)
    h = jnp.maximum(hdot(h, params['fc1_w']) + params['fc1_b'], 0.0)
    h = jnp.maximum(hdot(h, params['fc2_w']) + params['fc2_b'], 0.0)
    return hdot(h, params['lo_w']) + params['lo_b']


# ---------------------------------------------------------------------------
# Main
# ---------------------------------------------------------------------------
if __name__ == "__main__":
    cfg = CONFIG
    B = 8
    key = jax.random.PRNGKey(0)
    k_param, k_data = jax.random.split(key)
    params = init_params(k_param, cfg)

    # Deterministic synthetic input x of shape [B, 10246] (int32).
    dk = jax.random.split(k_data, 8)
    rate = jax.random.randint(dk[0], (B, 1), 0, cfg['num_rate'])
    genre = (jax.random.uniform(dk[1], (B, cfg['num_genre'])) < 0.3).astype(jnp.int32)
    genre = genre.at[:, 0].set(1)          # guarantee non-zero multi-hot sums
    director = (jax.random.uniform(dk[2], (B, cfg['num_director'])) < 0.01).astype(jnp.int32)
    director = director.at[:, 0].set(1)
    actor = (jax.random.uniform(dk[3], (B, cfg['num_actor'])) < 0.005).astype(jnp.int32)
    actor = actor.at[:, 0].set(1)
    gender = jax.random.randint(dk[4], (B, 1), 0, cfg['num_gender'])
    age = jax.random.randint(dk[5], (B, 1), 0, cfg['num_age'])
    occ = jax.random.randint(dk[6], (B, 1), 0, cfg['num_occupation'])
    area = jax.random.randint(dk[7], (B, 1), 0, cfg['num_zipcode'])
    x = jnp.concatenate(
        [rate, genre, director, actor, gender, age, occ, area], axis=1
    ).astype(jnp.int32)
    assert x.shape == (B, 10246)

    forward = jax.jit(lambda p, xx: user_preference_estimator_forward(p, xx, cfg))
    out = jax.block_until_ready(forward(params, x))

    ref = jax.block_until_ready(reference_forward(params, x, cfg))
    np.testing.assert_allclose(np.asarray(out), np.asarray(ref),
                               rtol=1e-5, atol=1e-5)
    print("KERNEL_OK")
</pallas_src>

<mosaic_0001>
module attributes {stable_mosaic.version = 11 : i64} {
  func.func @_mlu_kernel(%arg0: i32, %arg1: memref<8x160xf32, #tpu.memory_space<vmem>>, %arg2: memref<8x128xbf16, #tpu.memory_space<vmem>>, %arg3: memref<8x2304xbf16, #tpu.memory_space<vmem>>, %arg4: memref<8x8064xbf16, #tpu.memory_space<vmem>>, %arg5: memref<128x65xf32, #tpu.memory_space<vmem>>, %arg6: memref<2304x65xf32, #tpu.memory_space<vmem>>, %arg7: memref<8064x65xf32, #tpu.memory_space<vmem>>, %arg8: memref<160x64xf32, #tpu.memory_space<vmem>>, %arg9: memref<1x64xf32, #tpu.memory_space<vmem>>, %arg10: memref<64x64xf32, #tpu.memory_space<vmem>>, %arg11: memref<1x64xf32, #tpu.memory_space<vmem>>, %arg12: memref<64x1xf32, #tpu.memory_space<vmem>>, %arg13: memref<1x1xf32, #tpu.memory_space<vmem>>, %arg14: memref<8x1xf32, #tpu.memory_space<vmem>>) attributes {dimension_semantics = [#tpu.dimension_semantics<parallel>], iteration_bounds = array<i64: 1>, scalar_prefetch = 0 : i64, scratch_operands = 0 : i64, tpu.core_type = #tpu.core_type<tc>, window_params = [{transform_indices = @transform_0, window_bounds = array<i64: 8, 160>}, {transform_indices = @transform_1, window_bounds = array<i64: 8, 128>}, {transform_indices = @transform_2, window_bounds = array<i64: 8, 2304>}, {transform_indices = @transform_3, window_bounds = array<i64: 8, 8064>}, {pipeline_mode = #tpu.pipeline_mode<synchronous>, transform_indices = @transform_4, window_bounds = array<i64: 128, 65>}, {pipeline_mode = #tpu.pipeline_mode<synchronous>, transform_indices = @transform_5, window_bounds = array<i64: 2304, 65>}, {pipeline_mode = #tpu.pipeline_mode<synchronous>, transform_indices = @transform_6, window_bounds = array<i64: 8064, 65>}, {pipeline_mode = #tpu.pipeline_mode<synchronous>, transform_indices = @transform_7, window_bounds = array<i64: 160, 64>}, {pipeline_mode = #tpu.pipeline_mode<synchronous>, transform_indices = @transform_8, window_bounds = array<i64: 1, 64>}, {pipeline_mode = #tpu.pipeline_mode<synchronous>, transform_indices = @transform_9, window_bounds = array<i64: 64, 64>}, {pipeline_mode = #tpu.pipeline_mode<synchronous>, transform_indices = @transform_10, window_bounds = array<i64: 1, 64>}, {pipeline_mode = #tpu.pipeline_mode<synchronous>, transform_indices = @transform_11, window_bounds = array<i64: 64, 1>}, {pipeline_mode = #tpu.pipeline_mode<synchronous>, transform_indices = @transform_12, window_bounds = array<i64: 1, 1>}, {transform_indices = @transform_13, window_bounds = array<i64: 8, 1>}]} {
    %c0 = arith.constant 0 : index
    %c0_0 = arith.constant 0 : index
    %0 = vector.load %arg9[%c0, %c0_0] : memref<1x64xf32, #tpu.memory_space<vmem>>, vector<1x64xf32>
    %c0_1 = arith.constant 0 : index
    %c0_2 = arith.constant 0 : index
    %1 = vector.load %arg1[%c0_1, %c0_2] : memref<8x160xf32, #tpu.memory_space<vmem>>, vector<8x160xf32>
    %c0_3 = arith.constant 0 : index
    %c0_4 = arith.constant 0 : index
    %2 = vector.load %arg8[%c0_3, %c0_4] : memref<160x64xf32, #tpu.memory_space<vmem>>, vector<160x64xf32>
    %cst = arith.constant dense<0.000000e+00> : vector<8x64xf32>
    %3 = tpu.matmul %1, %2, %cst {dimension_numbers = #tpu.dot_dimension_numbers<[1], [0], [0], [1], [0, 0, 1, 1], [], []>} : vector<8x160xf32>, vector<160x64xf32>, vector<8x64xf32> -> vector<8x64xf32>
    %4 = vector.broadcast %0 : vector<1x64xf32> to vector<8x64xf32>
    %5 = arith.addf %4, %3 : vector<8x64xf32>
    %c0_5 = arith.constant 0 : index
    %c0_6 = arith.constant 0 : index
    %6 = vector.load %arg2[%c0_5, %c0_6] : memref<8x128xbf16, #tpu.memory_space<vmem>>, vector<8x128xbf16>
    %7 = arith.extf %6 : vector<8x128xbf16> to vector<8x128xf32>
    %c0_7 = arith.constant 0 : index
    %c0_8 = arith.constant 0 : index
    %8 = vector.load %arg5[%c0_7, %c0_8] : memref<128x65xf32, #tpu.memory_space<vmem>>, vector<128x65xf32>
    %cst_9 = arith.constant dense<0.000000e+00> : vector<8x65xf32>
    %9 = tpu.matmul %7, %8, %cst_9 {dimension_numbers = #tpu.dot_dimension_numbers<[1], [0], [0], [1], [0, 0, 1, 1], [], []>} : vector<8x128xf32>, vector<128x65xf32>, vector<8x65xf32> -> vector<8x65xf32>
    %10 = vector.extract_strided_slice %9 {offsets = [0, 64], sizes = [8, 1], strides = [1, 1]} : vector<8x65xf32> to vector<8x1xf32>
    %11 = tpu.reciprocal %10 : vector<8x1xf32> -> vector<8x1xf32>
    %12 = vector.extract_strided_slice %9 {offsets = [0, 0], sizes = [8, 64], strides = [1, 1]} : vector<8x65xf32> to vector<8x64xf32>
    %13 = vector.broadcast %11 : vector<8x1xf32> to vector<8x64xf32>
    %14 = arith.mulf %12, %13 : vector<8x64xf32>
    %15 = arith.addf %5, %14 : vector<8x64xf32>
    %c0_10 = arith.constant 0 : index
    %c0_11 = arith.constant 0 : index
    %16 = vector.load %arg3[%c0_10, %c0_11] : memref<8x2304xbf16, #tpu.memory_space<vmem>>, vector<8x2304xbf16>
    %17 = arith.extf %16 : vector<8x2304xbf16> to vector<8x2304xf32>
    %c0_12 = arith.constant 0 : index
    %c0_13 = arith.constant 0 : index
    %18 = vector.load %arg6[%c0_12, %c0_13] : memref<2304x65xf32, #tpu.memory_space<vmem>>, vector<2304x65xf32>
    %cst_14 = arith.constant dense<0.000000e+00> : vector<8x65xf32>
    %19 = tpu.matmul %17, %18, %cst_14 {dimension_numbers = #tpu.dot_dimension_numbers<[1], [0], [0], [1], [0, 0, 1, 1], [], []>} : vector<8x2304xf32>, vector<2304x65xf32>, vector<8x65xf32> -> vector<8x65xf32>
    %20 = vector.extract_strided_slice %19 {offsets = [0, 64], sizes = [8, 1], strides = [1, 1]} : vector<8x65xf32> to vector<8x1xf32>
    %21 = tpu.reciprocal %20 : vector<8x1xf32> -> vector<8x1xf32>
    %22 = vector.extract_strided_slice %19 {offsets = [0, 0], sizes = [8, 64], strides = [1, 1]} : vector<8x65xf32> to vector<8x64xf32>
    %23 = vector.broadcast %21 : vector<8x1xf32> to vector<8x64xf32>
    %24 = arith.mulf %22, %23 : vector<8x64xf32>
    %25 = arith.addf %15, %24 : vector<8x64xf32>
    %c0_15 = arith.constant 0 : index
    %c0_16 = arith.constant 0 : index
    %26 = vector.load %arg4[%c0_15, %c0_16] : memref<8x8064xbf16, #tpu.memory_space<vmem>>, vector<8x8064xbf16>
    %27 = arith.extf %26 : vector<8x8064xbf16> to vector<8x8064xf32>
    %c0_17 = arith.constant 0 : index
    %c0_18 = arith.constant 0 : index
    %28 = vector.load %arg7[%c0_17, %c0_18] : memref<8064x65xf32, #tpu.memory_space<vmem>>, vector<8064x65xf32>
    %cst_19 = arith.constant dense<0.000000e+00> : vector<8x65xf32>
    %29 = tpu.matmul %27, %28, %cst_19 {dimension_numbers = #tpu.dot_dimension_numbers<[1], [0], [0], [1], [0, 0, 1, 1], [], []>} : vector<8x8064xf32>, vector<8064x65xf32>, vector<8x65xf32> -> vector<8x65xf32>
    %30 = vector.extract_strided_slice %29 {offsets = [0, 64], sizes = [8, 1], strides = [1, 1]} : vector<8x65xf32> to vector<8x1xf32>
    %31 = tpu.reciprocal %30 : vector<8x1xf32> -> vector<8x1xf32>
    %32 = vector.extract_strided_slice %29 {offsets = [0, 0], sizes = [8, 64], strides = [1, 1]} : vector<8x65xf32> to vector<8x64xf32>
    %33 = vector.broadcast %31 : vector<8x1xf32> to vector<8x64xf32>
    %34 = arith.mulf %32, %33 : vector<8x64xf32>
    %35 = arith.addf %25, %34 : vector<8x64xf32>
    %cst_20 = arith.constant 0.000000e+00 : f32
    %36 = vector.broadcast %cst_20 : f32 to vector<8x64xf32>
    %37 = arith.maximumf %35, %36 : vector<8x64xf32>
    %c0_21 = arith.constant 0 : index
    %c0_22 = arith.constant 0 : index
    %38 = vector.load %arg10[%c0_21, %c0_22] : memref<64x64xf32, #tpu.memory_space<vmem>>, vector<64x64xf32>
    %cst_23 = arith.constant dense<0.000000e+00> : vector<8x64xf32>
    %39 = tpu.matmul %37, %38, %cst_23 {dimension_numbers = #tpu.dot_dimension_numbers<[1], [0], [0], [1], [0, 0, 1, 1], [], []>} : vector<8x64xf32>, vector<64x64xf32>, vector<8x64xf32> -> vector<8x64xf32>
    %c0_24 = arith.constant 0 : index
    %c0_25 = arith.constant 0 : index
    %40 = vector.load %arg11[%c0_24, %c0_25] : memref<1x64xf32, #tpu.memory_space<vmem>>, vector<1x64xf32>
    %41 = vector.broadcast %40 : vector<1x64xf32> to vector<8x64xf32>
    %42 = arith.addf %39, %41 : vector<8x64xf32>
    %cst_26 = arith.constant 0.000000e+00 : f32
    %43 = vector.broadcast %cst_26 : f32 to vector<8x64xf32>
    %44 = arith.maximumf %42, %43 : vector<8x64xf32>
    %c0_27 = arith.constant 0 : index
    %c0_28 = arith.constant 0 : index
    %45 = vector.load %arg12[%c0_27, %c0_28] : memref<64x1xf32, #tpu.memory_space<vmem>>, vector<64x1xf32>
    %cst_29 = arith.constant dense<0.000000e+00> : vector<8x1xf32>
    %46 = tpu.matmul %44, %45, %cst_29 {dimension_numbers = #tpu.dot_dimension_numbers<[1], [0], [0], [1], [0, 0, 1, 1], [], []>} : vector<8x64xf32>, vector<64x1xf32>, vector<8x1xf32> -> vector<8x1xf32>
    %c0_30 = arith.constant 0 : index
    %c0_31 = arith.constant 0 : index
    %47 = vector.load %arg13[%c0_30, %c0_31] : memref<1x1xf32, #tpu.memory_space<vmem>>, vector<1x1xf32>
    %48 = vector.broadcast %47 : vector<1x1xf32> to vector<8x1xf32>
    %49 = arith.addf %46, %48 : vector<8x1xf32>
    %c0_32 = arith.constant 0 : index
    %c0_33 = arith.constant 0 : index
    %50 = vector.load %arg14[%c0_32, %c0_33] : memref<8x1xf32, #tpu.memory_space<vmem>>, vector<8x1xf32>
    tpu.vector_store %arg14[%c0_32, %c0_33], %49 {strides = array<i32>} : memref<8x1xf32, #tpu.memory_space<vmem>>, vector<8x1xf32>,
    return
  }
  func.func @transform_0(%arg0: i32) -> (i32, i32) {
    %c0_i32 = arith.constant 0 : i32
    %c0_i32_0 = arith.constant 0 : i32
    return %arg0, %c0_i32 : i32, i32
  }
  func.func @transform_1(%arg0: i32) -> (i32, i32) {
    %c0_i32 = arith.constant 0 : i32
    %c0_i32_0 = arith.constant 0 : i32
    return %arg0, %c0_i32 : i32, i32
  }
  func.func @transform_2(%arg0: i32) -> (i32, i32) {
    %c0_i32 = arith.constant 0 : i32
    %c0_i32_0 = arith.constant 0 : i32
    return %arg0, %c0_i32 : i32, i32
  }
  func.func @transform_3(%arg0: i32) -> (i32, i32) {
    %c0_i32 = arith.constant 0 : i32
    %c0_i32_0 = arith.constant 0 : i32
    return %arg0, %c0_i32 : i32, i32
  }
  func.func @transform_4(%arg0: i32) -> (i32, i32) {
    %c0_i32 = arith.constant 0 : i32
    %c0_i32_0 = arith.constant 0 : i32
    %c0_i32_1 = arith.constant 0 : i32
    return %c0_i32, %c0_i32_0 : i32, i32
  }
  func.func @transform_5(%arg0: i32) -> (i32, i32) {
    %c0_i32 = arith.constant 0 : i32
    %c0_i32_0 = arith.constant 0 : i32
    %c0_i32_1 = arith.constant 0 : i32
    return %c0_i32, %c0_i32_0 : i32, i32
  }
  func.func @transform_6(%arg0: i32) -> (i32, i32) {
    %c0_i32 = arith.constant 0 : i32
    %c0_i32_0 = arith.constant 0 : i32
    %c0_i32_1 = arith.constant 0 : i32
    return %c0_i32, %c0_i32_0 : i32, i32
  }
  func.func @transform_7(%arg0: i32) -> (i32, i32) {
    %c0_i32 = arith.constant 0 : i32
    %c0_i32_0 = arith.constant 0 : i32
    %c0_i32_1 = arith.constant 0 : i32
    return %c0_i32, %c0_i32_0 : i32, i32
  }
  func.func @transform_8(%arg0: i32) -> (i32, i32) {
    %c0_i32 = arith.constant 0 : i32
    %c0_i32_0 = arith.constant 0 : i32
    %c0_i32_1 = arith.constant 0 : i32
    return %c0_i32, %c0_i32_0 : i32, i32
  }
  func.func @transform_9(%arg0: i32) -> (i32, i32) {
    %c0_i32 = arith.constant 0 : i32
    %c0_i32_0 = arith.constant 0 : i32
    %c0_i32_1 = arith.constant 0 : i32
    return %c0_i32, %c0_i32_0 : i32, i32
  }
  func.func @transform_10(%arg0: i32) -> (i32, i32) {
    %c0_i32 = arith.constant 0 : i32
    %c0_i32_0 = arith.constant 0 : i32
    %c0_i32_1 = arith.constant 0 : i32
    return %c0_i32, %c0_i32_0 : i32, i32
  }
  func.func @transform_11(%arg0: i32) -> (i32, i32) {
    %c0_i32 = arith.constant 0 : i32
    %c0_i32_0 = arith.constant 0 : i32
    %c0_i32_1 = arith.constant 0 : i32
    return %c0_i32, %c0_i32_0 : i32, i32
  }
  func.func @transform_12(%arg0: i32) -> (i32, i32) {
    %c0_i32 = arith.constant 0 : i32
    %c0_i32_0 = arith.constant 0 : i32
    %c0_i32_1 = arith.constant 0 : i32
    return %c0_i32, %c0_i32_0 : i32, i32
  }
  func.func @transform_13(%arg0: i32) -> (i32, i32) {
    %c0_i32 = arith.constant 0 : i32
    %c0_i32_0 = arith.constant 0 : i32
    return %arg0, %c0_i32 : i32, i32
  }
}

</mosaic_0001>

<llo_original>
// kernel: _lambda_.1
$region0: #{_lambda_.1}
  #allocation0 [shape = 'u32[]', space=smem, size = 0x4, offset = 0x4, fixed_abs, tag = 'smem constant byte address 0x4 - core index']
  #allocation1 [shape = 'u32[144,128]{1,0:T(1,128)}', space=vmem, size = 0x12000, scoped, tag = 'internal scratch']
  #allocation2 [shape = 'f32[1,1]{1,0:T(1,128)S(1)}', space=vmem, size = 0x200, scoped, tag = 'scoped memory for _lambda_.1']
  %s0 = inlined_call_operand.vmem [shape: f32[8,160], index: 0, kind: input, shape index: {}]
  %s1 = inlined_call_operand.vmem [shape: bf16[8,128], index: 1, kind: input, shape index: {}]
  %s2 = inlined_call_operand.vmem [shape: bf16[8,2304], index: 2, kind: input, shape index: {}]
  %s3 = inlined_call_operand.vmem [shape: bf16[8,8064], index: 3, kind: input, shape index: {}]
  %s4 = inlined_call_operand.vmem [shape: f32[128,65], index: 4, kind: input, shape index: {}]
  %s5 = inlined_call_operand.vmem [shape: f32[2304,65], index: 5, kind: input, shape index: {}]
  %s6 = inlined_call_operand.vmem [shape: f32[8064,65], index: 6, kind: input, shape index: {}]
  %s7 = inlined_call_operand.vmem [shape: f32[160,64], index: 7, kind: input, shape index: {}]
  %s8 = inlined_call_operand.vmem [shape: f32[1,64], index: 8, kind: input, shape index: {}]
  %s9 = inlined_call_operand.vmem [shape: f32[64,64], index: 9, kind: input, shape index: {}]
  %s10 = inlined_call_operand.vmem [shape: f32[1,64], index: 10, kind: input, shape index: {}]
  %s11 = inlined_call_operand.vmem [shape: f32[64,1], index: 11, kind: input, shape index: {}]
  %s12 = inlined_call_operand.<no memory space> [shape: f32[1,1], index: 12, kind: input, shape index: {}]
  %s13 = inlined_call_operand.vmem [shape: f32[8,1], index: 13, kind: output, shape index: {}]
  %s14 = sld [smem:[#allocation0]]
  $region62: #{_lambda_.1} parent=0
    _
  %s16 = ssub.s32 1, %s14
  %s17 = scalar_select 0, %s16, %s14
  %v18 = vstv %s12
  %19 = vst [vmem:[#allocation2] sm:$0x1] %v18
  // Predicated region
  $region2: #{_lambda_.1} parent=0 // pred_check
    _
  $region3: #{_lambda_.1} parent=0 // pred_check_branch
    %21 = sbr.rel (0) target = $region5
  $region4: #{_lambda_.1} parent=0 // pred_region
    _
  $region5: #{_lambda_.1} parent=0 // pred_fallthru
    _
  // Predicated region
  $region6: #{_lambda_.1} parent=0 // pred_check
    _
  $region7: #{_lambda_.1} parent=0 // pred_check_branch
    %23 = sbr.rel (0) target = $region9
  $region8: #{_lambda_.1} parent=0 // pred_region
    _
  $region9: #{_lambda_.1} parent=0 // pred_fallthru
    _
  // Predicated region
  $region10: #{_lambda_.1} parent=0 // pred_check
    _
  $region11: #{_lambda_.1} parent=0 // pred_check_branch
    %25 = sbr.rel (0) target = $region13
  $region12: #{_lambda_.1} parent=0 // pred_region
    _
  $region13: #{_lambda_.1} parent=0 // pred_fallthru
    _
  // Predicated region
  $region14: #{_lambda_.1} parent=0 // pred_check
    _
  $region15: #{_lambda_.1} parent=0 // pred_check_branch
    %27 = sbr.rel (0) target = $region17
  $region16: #{_lambda_.1} parent=0 // pred_region
    _
  $region17: #{_lambda_.1} parent=0 // pred_fallthru
    _
  // Predicated region
  $region18: #{_lambda_.1} parent=0 // pred_check
    _
  $region19: #{_lambda_.1} parent=0 // pred_check_branch
    %29 = sbr.rel (0) target = $region21
  $region20: #{_lambda_.1} parent=0 // pred_region
    _
  $region21: #{_lambda_.1} parent=0 // pred_fallthru
    _
  // Predicated region
  $region22: #{_lambda_.1} parent=0 // pred_check
    _
  $region23: #{_lambda_.1} parent=0 // pred_check_branch
    %31 = sbr.rel (0) target = $region25
  $region24: #{_lambda_.1} parent=0 // pred_region
    _
  $region25: #{_lambda_.1} parent=0 // pred_fallthru
    _
  // Predicated region
  $region26: #{_lambda_.1} parent=0 // pred_check
    _
  $region27: #{_lambda_.1} parent=0 // pred_check_branch
    %33 = sbr.rel (0) target = $region29
  $region28: #{_lambda_.1} parent=0 // pred_region
    _
  $region29: #{_lambda_.1} parent=0 // pred_fallthru
    _
  // Predicated region
  $region30: #{_lambda_.1} parent=0 // pred_check
    _
  $region31: #{_lambda_.1} parent=0 // pred_check_branch
    %35 = sbr.rel (0) target = $region33
  $region32: #{_lambda_.1} parent=0 // pred_region
    _
  $region33: #{_lambda_.1} parent=0 // pred_fallthru
    _
  // Predicated region
  $region34: #{_lambda_.1} parent=0 // pred_check
    _
  $region35: #{_lambda_.1} parent=0 // pred_check_branch
    %37 = sbr.rel (0) target = $region37
  $region36: #{_lambda_.1} parent=0 // pred_region
    _
  $region37: #{_lambda_.1} parent=0 // pred_fallthru
    _
  // Predicated region
  $region38: #{_lambda_.1} parent=0 // pred_check
    _
  $region39: #{_lambda_.1} parent=0 // pred_check_branch
    %39 = sbr.rel (0) target = $region41
  $region40: #{_lambda_.1} parent=0 // pred_region
    _
  $region41: #{_lambda_.1} parent=0 // pred_fallthru
    _
  // Predicated region
  $region42: #{_lambda_.1} parent=0 // pred_check
    _
  $region43: #{_lambda_.1} parent=0 // pred_check_branch
    %41 = sbr.rel (0) target = $region45
  $region44: #{_lambda_.1} parent=0 // pred_region
    _
  $region45: #{_lambda_.1} parent=0 // pred_fallthru
    _
  // Predicated region
  $region46: #{_lambda_.1} parent=0 // pred_check
    _
  $region47: #{_lambda_.1} parent=0 // pred_check_branch
    %43 = sbr.rel (0) target = $region49
  $region48: #{_lambda_.1} parent=0 // pred_region
    _
  $region49: #{_lambda_.1} parent=0 // pred_fallthru
    _
  // Predicated region
  $region50: #{_lambda_.1} parent=0 // pred_check
    _
  $region51: #{_lambda_.1} parent=0 // pred_check_branch
    %45 = sbr.rel (0) target = $region53
  $region52: #{_lambda_.1} parent=0 // pred_region
    _
  $region53: #{_lambda_.1} parent=0 // pred_fallthru
    _
  %v46 = vld [vmem:[%s8] sm:$0x1]
  %v47 = vld [vmem:[%s0] sm:$0xff]
  %v48 = vld [vmem:[%s0 + $0x8] sm:$0xff]
  %v49 = vld [vmem:[%s7] sm:$0xff]
  %v50 = vld [vmem:[%s7 + $0x8] sm:$0xff]
  %v51 = vld [vmem:[%s7 + $0x10] sm:$0xff]
  %v52 = vld [vmem:[%s7 + $0x18] sm:$0xff]
  %v53 = vld [vmem:[%s7 + $0x20] sm:$0xff]
  %v54 = vld [vmem:[%s7 + $0x28] sm:$0xff]
  %v55 = vld [vmem:[%s7 + $0x30] sm:$0xff]
  %v56 = vld [vmem:[%s7 + $0x38] sm:$0xff]
  %v57 = vld [vmem:[%s7 + $0x40] sm:$0xff]
  %v58 = vld [vmem:[%s7 + $0x48] sm:$0xff]
  %v59 = vld [vmem:[%s7 + $0x50] sm:$0xff]
  %v60 = vld [vmem:[%s7 + $0x58] sm:$0xff]
  %v61 = vld [vmem:[%s7 + $0x60] sm:$0xff]
  %v62 = vld [vmem:[%s7 + $0x68] sm:$0xff]
  %v63 = vld [vmem:[%s7 + $0x70] sm:$0xff]
  %v64 = vld [vmem:[%s7 + $0x78] sm:$0xff]
  %v65 = vld [vmem:[%s7 + $0x80] sm:$0xff]
  %v66 = vld [vmem:[%s7 + $0x88] sm:$0xff]
  %v67 = vld [vmem:[%s7 + $0x90] sm:$0xff]
  %v68 = vld [vmem:[%s7 + $0x98] sm:$0xff]
  %vm69 = vcmask 261120
  %v71 = vsel %vm69, %v48, 0
  %73 = vmatprep.subr.mxu0 0.0
  %74 = vmatpush1.msra.mxu0 %v64
  %75 = vmatprep.subr.mxu0 0.0
  %76 = vmatpush1.msra.mxu0 %v63
  %77 = vmatprep.subr.mxu0 0.0
  %78 = vmatpush1.msra.mxu0 %v62
  %79 = vmatprep.subr.mxu0 0.0
  %80 = vmatpush1.msra.mxu0 %v61
  %81 = vmatprep.subr.mxu0 0.0
  %82 = vmatpush1.msra.mxu0 %v60
  %83 = vmatprep.subr.mxu0 0.0
  %84 = vmatpush1.msra.mxu0 %v59
  %85 = vmatprep.subr.mxu0 0.0
  %86 = vmatpush1.msra.mxu0 %v58
  %87 = vmatprep.subr.mxu0 0.0
  %88 = vmatpush1.msra.mxu0 %v57
  %89 = vmatprep.subr.mxu0 0.0
  %90 = vmatpush1.msra.mxu0 %v56
  %91 = vmatprep.subr.mxu0 0.0
  %92 = vmatpush1.msra.mxu0 %v55
  %93 = vmatprep.subr.mxu0 0.0
  %94 = vmatpush1.msra.mxu0 %v54
  %95 = vmatprep.subr.mxu0 0.0
  %96 = vmatpush1.msra.mxu0 %v53
  %97 = vmatprep.subr.mxu0 0.0
  %98 = vmatpush1.msra.mxu0 %v52
  %99 = vmatprep.subr.mxu0 0.0
  %100 = vmatpush1.msra.mxu0 %v51
  %101 = vmatprep.subr.mxu0 0.0
  %102 = vmatpush1.msra.mxu0 %v50
  %103 = vmatprep.subr.mxu0 0.0
  %104 = vmatpush1.msra.mxu0 %v49
  %105 = vmatprep.subr.mxu0 0.0
  %106 = vmatpush2.msra.mxu0 0.0
  %107 = vmatprep.subr.mxu0 0.0
  %108 = vmatpush2.msra.mxu0 0.0
  %109 = vmatprep.subr.mxu0 0.0
  %110 = vmatpush2.msra.mxu0 0.0
  %111 = vmatprep.subr.mxu0 0.0
  %112 = vmatpush2.msra.mxu0 0.0
  %113 = vmatprep.subr.mxu0 0.0
  %114 = vmatpush2.msra.mxu0 0.0
  %115 = vmatprep.subr.mxu0 0.0
  %116 = vmatpush2.msra.mxu0 0.0
  %117 = vmatprep.subr.mxu0 0.0
  %118 = vmatpush2.msra.mxu0 0.0
  %119 = vmatprep.subr.mxu0 0.0
  %120 = vmatpush2.msra.mxu0 0.0
  %121 = vmatprep.subr.mxu0 0.0
  %122 = vmatpush2.msra.mxu0 0.0
  %123 = vmatprep.subr.mxu0 0.0
  %124 = vmatpush2.msra.mxu0 0.0
  %125 = vmatprep.subr.mxu0 0.0
  %126 = vmatpush2.msra.mxu0 0.0
  %127 = vmatprep.subr.mxu0 0.0
  %128 = vmatpush2.msra.mxu0 0.0
  %129 = vmatprep.subr.mxu0 0.0
  %130 = vmatpush2.msra.mxu0 %v68
  %131 = vmatprep.subr.mxu0 0.0
  %132 = vmatpush2.msra.mxu0 %v67
  %133 = vmatprep.subr.mxu0 0.0
  %134 = vmatpush2.msra.mxu0 %v66
  %135 = vmatprep.subr.mxu0 0.0
  %136 = vmatpush2.msra.mxu0 %v65
  %137 = vmatprep.mubr.f32.mxu0 %v71
  %138 = vmatmul.mubr.f32.gmra.mxu0 %v47
  %v139 = vpop.f32.mrf.mxu0
  %v140 = vadd.f32 0.0, %v139
  %v141 = vpop.f32.mrf.mxu0
  %142 = vdwg.mxu0
  %v144 = vlaneseq
  %v145 = vshrl.u32 %v144, 7
  %v146 = vsub.s32 0, %v145
  %v147 = vrot.slane %v46, %v146
  %v149 = vadd.f32 %v147, %v140
  %v150 = vld [vmem:[%s1] sm:$0xf]
  %v151 = vunpack.c.l.bf16 %v150
  %v152 = vld [vmem:[%s4] sm:$0xff]
  %v153 = vld [vmem:[%s4 + $0x8] sm:$0xff]
  %v154 = vld [vmem:[%s4 + $0x10] sm:$0xff]
  %v155 = vld [vmem:[%s4 + $0x18] sm:$0xff]
  %v156 = vld [vmem:[%s4 + $0x20] sm:$0xff]
  %v157 = vld [vmem:[%s4 + $0x28] sm:$0xff]
  %v158 = vld [vmem:[%s4 + $0x30] sm:$0xff]
  %v159 = vld [vmem:[%s4 + $0x38] sm:$0xff]
  %v160 = vld [vmem:[%s4 + $0x40] sm:$0xff]
  %v161 = vld [vmem:[%s4 + $0x48] sm:$0xff]
  %v162 = vld [vmem:[%s4 + $0x50] sm:$0xff]
  %v163 = vld [vmem:[%s4 + $0x58] sm:$0xff]
  %v164 = vld [vmem:[%s4 + $0x60] sm:$0xff]
  %v165 = vld [vmem:[%s4 + $0x68] sm:$0xff]
  %v166 = vld [vmem:[%s4 + $0x70] sm:$0xff]
  %v167 = vld [vmem:[%s4 + $0x78] sm:$0xff]
  %168 = vmatprep.subr.mxu0 0.0
  %169 = vmatpush1.msra.mxu0 %v167
  %170 = vmatprep.subr.mxu0 0.0
  %171 = vmatpush1.msra.mxu0 %v166
  %172 = vmatprep.subr.mxu0 0.0
  %173 = vmatpush1.msra.mxu0 %v165
  %174 = vmatprep.subr.mxu0 0.0
  %175 = vmatpush1.msra.mxu0 %v164
  %176 = vmatprep.subr.mxu0 0.0
  %177 = vmatpush1.msra.mxu0 %v163
  %178 = vmatprep.subr.mxu0 0.0
  %179 = vmatpush1.msra.mxu0 %v162
  %180 = vmatprep.subr.mxu0 0.0
  %181 = vmatpush1.msra.mxu0 %v161
  %182 = vmatprep.subr.mxu0 0.0
  %183 = vmatpush1.msra.mxu0 %v160
  %184 = vmatprep.subr.mxu0 0.0
  %185 = vmatpush1.msra.mxu0 %v159
  %186 = vmatprep.subr.mxu0 0.0
  %187 = vmatpush1.msra.mxu0 %v158
  %188 = vmatprep.subr.mxu0 0.0
  %189 = vmatpush1.msra.mxu0 %v157
  %190 = vmatprep.subr.mxu0 0.0
  %191 = vmatpush1.msra.mxu0 %v156
  %192 = vmatprep.subr.mxu0 0.0
  %193 = vmatpush1.msra.mxu0 %v155
  %194 = vmatprep.subr.mxu0 0.0
  %195 = vmatpush1.msra.mxu0 %v154
  %196 = vmatprep.subr.mxu0 0.0
  %197 = vmatpush1.msra.mxu0 %v153
  %198 = vmatprep.subr.mxu0 0.0
  %199 = vmatpush1.msra.mxu0 %v152
  %200 = vmatprep.subr.mxu0 0.0
  %201 = vmatpush2.msra.mxu0 0.0
  %202 = vmatprep.subr.mxu0 0.0
  %203 = vmatpush2.msra.mxu0 0.0
  %204 = vmatprep.subr.mxu0 0.0
  %205 = vmatpush2.msra.mxu0 0.0
  %206 = vmatprep.subr.mxu0 0.0
  %207 = vmatpush2.msra.mxu0 0.0
  %208 = vmatprep.subr.mxu0 0.0
  %209 = vmatpush2.msra.mxu0 0.0
  %210 = vmatprep.subr.mxu0 0.0
  %211 = vmatpush2.msra.mxu0 0.0
  %212 = vmatprep.subr.mxu0 0.0
  %213 = vmatpush2.msra.mxu0 0.0
  %214 = vmatprep.subr.mxu0 0.0
  %215 = vmatpush2.msra.mxu0 0.0
  %216 = vmatprep.subr.mxu0 0.0
  %217 = vmatpush2.msra.mxu0 0.0
  %218 = vmatprep.subr.mxu0 0.0
  %219 = vmatpush2.msra.mxu0 0.0
  %220 = vmatprep.subr.mxu0 0.0
  %221 = vmatpush2.msra.mxu0 0.0
  %222 = vmatprep.subr.mxu0 0.0
  %223 = vmatpush2.msra.mxu0 0.0
  %224 = vmatprep.subr.mxu0 0.0
  %225 = vmatpush2.msra.mxu0 0.0
  %226 = vmatprep.subr.mxu0 0.0
  %227 = vmatpush2.msra.mxu0 0.0
  %228 = vmatprep.subr.mxu0 0.0
  %229 = vmatpush2.msra.mxu0 0.0
  %230 = vmatprep.subr.mxu0 0.0
  %231 = vmatpush2.msra.mxu0 0.0
  %232 = vmatprep.mubr.f32.mxu0 0.0
  %233 = vmatmul.mubr.f32.gmra.mxu0 %v151
  %v234 = vpop.f32.mrf.mxu0
  %v235 = vadd.f32 0.0, %v234
  %v236 = vpop.f32.mrf.mxu0
  %237 = vdwg.mxu0
  %v238 = vrcp.pop %v235
  %240 = vset.pattern.permute.xlu0 64
  %241 = vperm.xlu0 %240, %v238
  %v242 = vpop.permute.xlu0 %241
  %v244 = vmul.f32 %v235, %v242
  %v245 = vadd.f32 %v149, %v244
  %v246 = vld [vmem:[%s2] sm:$0xff]
  %v247 = vld [vmem:[%s2 + $0x8] sm:$0xff]
  %v248 = vld [vmem:[%s2 + $0x10] sm:$0xff]
  %v249 = vld [vmem:[%s2 + $0x18] sm:$0xff]
  %v250 = vld [vmem:[%s2 + $0x20] sm:$0xff]
  %v251 = vld [vmem:[%s2 + $0x28] sm:$0xff]
  %v252 = vld [vmem:[%s2 + $0x30] sm:$0xff]
  %v253 = vld [vmem:[%s2 + $0x38] sm:$0xff]
  %v254 = vld [vmem:[%s2 + $0x40] sm:$0xff]
  %v255 = vunpack.c.l.bf16 %v246
  %v256 = vunpack.c.h.bf16 %v246
  %v257 = vunpack.c.l.bf16 %v247
  %v258 = vunpack.c.h.bf16 %v247
  %v259 = vunpack.c.l.bf16 %v248
  %v260 = vunpack.c.h.bf16 %v248
  %v261 = vunpack.c.l.bf16 %v249
  %v262 = vunpack.c.h.bf16 %v249
  %v263 = vunpack.c.l.bf16 %v250
  %v264 = vunpack.c.h.bf16 %v250
  %v265 = vunpack.c.l.bf16 %v251
  %v266 = vunpack.c.h.bf16 %v251
  %v267 = vunpack.c.l.bf16 %v252
  %v268 = vunpack.c.h.bf16 %v252
  %v269 = vunpack.c.l.bf16 %v253
  %v270 = vunpack.c.h.bf16 %v253
  %v271 = vunpack.c.l.bf16 %v254
  %v272 = vunpack.c.h.bf16 %v254
  %v273 = vld [vmem:[%s5] sm:$0xff]
  %v274 = vld [vmem:[%s5 + $0x8] sm:$0xff]
  %v275 = vld [vmem:[%s5 + $0x10] sm:$0xff]
  %v276 = vld [vmem:[%s5 + $0x18] sm:$0xff]
  %v277 = vld [vmem:[%s5 + $0x20] sm:$0xff]
  %v278 = vld [vmem:[%s5 + $0x28] sm:$0xff]
  %v279 = vld [vmem:[%s5 + $0x30] sm:$0xff]
  %v280 = vld [vmem:[%s5 + $0x38] sm:$0xff]
  %v281 = vld [vmem:[%s5 + $0x40] sm:$0xff]
  %v282 = vld [vmem:[%s5 + $0x48] sm:$0xff]
  %v283 = vld [vmem:[%s5 + $0x50] sm:$0xff]
  %v284 = vld [vmem:[%s5 + $0x58] sm:$0xff]
  %v285 = vld [vmem:[%s5 + $0x60] sm:$0xff]
  %v286 = vld [vmem:[%s5 + $0x68] sm:$0xff]
  %v287 = vld [vmem:[%s5 + $0x70] sm:$0xff]
  %v288 = vld [vmem:[%s5 + $0x78] sm:$0xff]
  %v289 = vld [vmem:[%s5 + $0x80] sm:$0xff]
  %v290 = vld [vmem:[%s5 + $0x88] sm:$0xff]
  %v291 = vld [vmem:[%s5 + $0x90] sm:$0xff]
  %v292 = vld [vmem:[%s5 + $0x98] sm:$0xff]
  %v293 = vld [vmem:[%s5 + $0xa0] sm:$0xff]
  %v294 = vld [vmem:[%s5 + $0xa8] sm:$0xff]
  %v295 = vld [vmem:[%s5 + $0xb0] sm:$0xff]
  %v296 = vld [vmem:[%s5 + $0xb8] sm:$0xff]
  %v297 = vld [vmem:[%s5 + $0xc0] sm:$0xff]
  %v298 = vld [vmem:[%s5 + $0xc8] sm:$0xff]
  %v299 = vld [vmem:[%s5 + $0xd0] sm:$0xff]
  %v300 = vld [vmem:[%s5 + $0xd8] sm:$0xff]
  %v301 = vld [vmem:[%s5 + $0xe0] sm:$0xff]
  %v302 = vld [vmem:[%s5 + $0xe8] sm:$0xff]
  %v303 = vld [vmem:[%s5 + $0xf0] sm:$0xff]
  %v304 = vld [vmem:[%s5 + $0xf8] sm:$0xff]
  %v305 = vld [vmem:[%s5 + $0x100] sm:$0xff]
  %v306 = vld [vmem:[%s5 + $0x108] sm:$0xff]
  %v307 = vld [vmem:[%s5 + $0x110] sm:$0xff]
  %v308 = vld [vmem:[%s5 + $0x118] sm:$0xff]
  %v309 = vld [vmem:[%s5 + $0x120] sm:$0xff]
  %v310 = vld [vmem:[%s5 + $0x128] sm:$0xff]
  %v311 = vld [vmem:[%s5 + $0x130] sm:$0xff]
  %v312 = vld [vmem:[%s5 + $0x138] sm:$0xff]
  %v313 = vld [vmem:[%s5 + $0x140] sm:$0xff]
  %v314 = vld [vmem:[%s5 + $0x148] sm:$0xff]
  %v315 = vld [vmem:[%s5 + $0x150] sm:$0xff]
  %v316 = vld [vmem:[%s5 + $0x158] sm:$0xff]
  %v317 = vld [vmem:[%s5 + $0x160] sm:$0xff]
  %v318 = vld [vmem:[%s5 + $0x168] sm:$0xff]
  %v319 = vld [vmem:[%s5 + $0x170] sm:$0xff]
  %v320 = vld [vmem:[%s5 + $0x178] sm:$0xff]
  %v321 = vld [vmem:[%s5 + $0x180] sm:$0xff]
  %v322 = vld [vmem:[%s5 + $0x188] sm:$0xff]
  %v323 = vld [vmem:[%s5 + $0x190] sm:$0xff]
  %v324 = vld [vmem:[%s5 + $0x198] sm:$0xff]
  %v325 = vld [vmem:[%s5 + $0x1a0] sm:$0xff]
  %v326 = vld [vmem:[%s5 + $0x1a8] sm:$0xff]
  %v327 = vld [vmem:[%s5 + $0x1b0] sm:$0xff]
  %v328 = vld [vmem:[%s5 + $0x1b8] sm:$0xff]
  %v329 = vld [vmem:[%s5 + $0x1c0] sm:$0xff]
  %v330 = vld [vmem:[%s5 + $0x1c8] sm:$0xff]
  %v331 = vld [vmem:[%s5 + $0x1d0] sm:$0xff]
  %v332 = vld [vmem:[%s5 + $0x1d8] sm:$0xff]
  %v333 = vld [vmem:[%s5 + $0x1e0] sm:$0xff]
  %v334 = vld [vmem:[%s5 + $0x1e8] sm:$0xff]
  %v335 = vld [vmem:[%s5 + $0x1f0] sm:$0xff]
  %v336 = vld [vmem:[%s5 + $0x1f8] sm:$0xff]
  %v337 = vld [vmem:[%s5 + $0x200] sm:$0xff]
  %v338 = vld [vmem:[%s5 + $0x208] sm:$0xff]
  %v339 = vld [vmem:[%s5 + $0x210] sm:$0xff]
  %v340 = vld [vmem:[%s5 + $0x218] sm:$0xff]
  %v341 = vld [vmem:[%s5 + $0x220] sm:$0xff]
  %v342 = vld [vmem:[%s5 + $0x228] sm:$0xff]
  %v343 = vld [vmem:[%s5 + $0x230] sm:$0xff]
  %v344 = vld [vmem:[%s5 + $0x238] sm:$0xff]
  %v345 = vld [vmem:[%s5 + $0x240] sm:$0xff]
  %v346 = vld [vmem:[%s5 + $0x248] sm:$0xff]
  %v347 = vld [vmem:[%s5 + $0x250] sm:$0xff]
  %v348 = vld [vmem:[%s5 + $0x258] sm:$0xff]
  %v349 = vld [vmem:[%s5 + $0x260] sm:$0xff]
  %v350 = vld [vmem:[%s5 + $0x268] sm:$0xff]
  %v351 = vld [vmem:[%s5 + $0x270] sm:$0xff]
  %v352 = vld [vmem:[%s5 + $0x278] sm:$0xff]
  %v353 = vld [vmem:[%s5 + $0x280] sm:$0xff]
  %v354 = vld [vmem:[%s5 + $0x288] sm:$0xff]
  %v355 = vld [vmem:[%s5 + $0x290] sm:$0xff]
  %v356 = vld [vmem:[%s5 + $0x298] sm:$0xff]
  %v357 = vld [vmem:[%s5 + $0x2a0] sm:$0xff]
  %v358 = vld [vmem:[%s5 + $0x2a8] sm:$0xff]
  %v359 = vld [vmem:[%s5 + $0x2b0] sm:$0xff]
  %v360 = vld [vmem:[%s5 + $0x2b8] sm:$0xff]
  %v361 = vld [vmem:[%s5 + $0x2c0] sm:$0xff]
  %v362 = vld [vmem:[%s5 + $0x2c8] sm:$0xff]
  %v363 = vld [vmem:[%s5 + $0x2d0] sm:$0xff]
  %v364 = vld [vmem:[%s5 + $0x2d8] sm:$0xff]
  %v365 = vld [vmem:[%s5 + $0x2e0] sm:$0xff]
  %v366 = vld [vmem:[%s5 + $0x2e8] sm:$0xff]
  %v367 = vld [vmem:[%s5 + $0x2f0] sm:$0xff]
  %v368 = vld [vmem:[%s5 + $0x2f8] sm:$0xff]
  %v369 = vld [vmem:[%s5 + $0x300] sm:$0xff]
  %v370 = vld [vmem:[%s5 + $0x308] sm:$0xff]
  %v371 = vld [vmem:[%s5 + $0x310] sm:$0xff]
  %v372 = vld [vmem:[%s5 + $0x318] sm:$0xff]
  %v373 = vld [vmem:[%s5 + $0x320] sm:$0xff]
  %v374 = vld [vmem:[%s5 + $0x328] sm:$0xff]
  %v375 = vld [vmem:[%s5 + $0x330] sm:$0xff]
  %v376 = vld [vmem:[%s5 + $0x338] sm:$0xff]
  %v377 = vld [vmem:[%s5 + $0x340] sm:$0xff]
  %v378 = vld [vmem:[%s5 + $0x348] sm:$0xff]
  %v379 = vld [vmem:[%s5 + $0x350] sm:$0xff]
  %v380 = vld [vmem:[%s5 + $0x358] sm:$0xff]
  %v381 = vld [vmem:[%s5 + $0x360] sm:$0xff]
  %v382 = vld [vmem:[%s5 + $0x368] sm:$0xff]
  %v383 = vld [vmem:[%s5 + $0x370] sm:$0xff]
  %v384 = vld [vmem:[%s5 + $0x378] sm:$0xff]
  %v385 = vld [vmem:[%s5 + $0x380] sm:$0xff]
  %v386 = vld [vmem:[%s5 + $0x388] sm:$0xff]
  %v387 = vld [vmem:[%s5 + $0x390] sm:$0xff]
  %v388 = vld [vmem:[%s5 + $0x398] sm:$0xff]
  %v389 = vld [vmem:[%s5 + $0x3a0] sm:$0xff]
  %v390 = vld [vmem:[%s5 + $0x3a8] sm:$0xff]
  %v391 = vld [vmem:[%s5 + $0x3b0] sm:$0xff]
  %v392 = vld [vmem:[%s5 + $0x3b8] sm:$0xff]
  %v393 = vld [vmem:[%s5 + $0x3c0] sm:$0xff]
  %v394 = vld [vmem:[%s5 + $0x3c8] sm:$0xff]
  %v395 = vld [vmem:[%s5 + $0x3d0] sm:$0xff]
  %v396 = vld [vmem:[%s5 + $0x3d8] sm:$0xff]
  %v397 = vld [vmem:[%s5 + $0x3e0] sm:$0xff]
  %v398 = vld [vmem:[%s5 + $0x3e8] sm:$0xff]
  %v399 = vld [vmem:[%s5 + $0x3f0] sm:$0xff]
  %v400 = vld [vmem:[%s5 + $0x3f8] sm:$0xff]
  %v401 = vld [vmem:[%s5 + $0x400] sm:$0xff]
  %v402 = vld [vmem:[%s5 + $0x408] sm:$0xff]
  %v403 = vld [vmem:[%s5 + $0x410] sm:$0xff]
  %v404 = vld [vmem:[%s5 + $0x418] sm:$0xff]
  %v405 = vld [vmem:[%s5 + $0x420] sm:$0xff]
  %v406 = vld [vmem:[%s5 + $0x428] sm:$0xff]
  %v407 = vld [vmem:[%s5 + $0x430] sm:$0xff]
  %v408 = vld [vmem:[%s5 + $0x438] sm:$0xff]
  %v409 = vld [vmem:[%s5 + $0x440] sm:$0xff]
  %v410 = vld [vmem:[%s5 + $0x448] sm:$0xff]
  %v411 = vld [vmem:[%s5 + $0x450] sm:$0xff]
  %v412 = vld [vmem:[%s5 + $0x458] sm:$0xff]
  %v413 = vld [vmem:[%s5 + $0x460] sm:$0xff]
  %v414 = vld [vmem:[%s5 + $0x468] sm:$0xff]
  %v415 = vld [vmem:[%s5 + $0x470] sm:$0xff]
  %v416 = vld [vmem:[%s5 + $0x478] sm:$0xff]
  %v417 = vld [vmem:[%s5 + $0x480] sm:$0xff]
  %v418 = vld [vmem:[%s5 + $0x488] sm:$0xff]
  %v419 = vld [vmem:[%s5 + $0x490] sm:$0xff]
  %v420 = vld [vmem:[%s5 + $0x498] sm:$0xff]
  %v421 = vld [vmem:[%s5 + $0x4a0] sm:$0xff]
  %v422 = vld [vmem:[%s5 + $0x4a8] sm:$0xff]
  %v423 = vld [vmem:[%s5 + $0x4b0] sm:$0xff]
  %v424 = vld [vmem:[%s5 + $0x4b8] sm:$0xff]
  %v425 = vld [vmem:[%s5 + $0x4c0] sm:$0xff]
  %v426 = vld [vmem:[%s5 + $0x4c8] sm:$0xff]
  %v427 = vld [vmem:[%s5 + $0x4d0] sm:$0xff]
  %v428 = vld [vmem:[%s5 + $0x4d8] sm:$0xff]
  %v429 = vld [vmem:[%s5 + $0x4e0] sm:$0xff]
  %v430 = vld [vmem:[%s5 + $0x4e8] sm:$0xff]
  %v431 = vld [vmem:[%s5 + $0x4f0] sm:$0xff]
  %v432 = vld [vmem:[%s5 + $0x4f8] sm:$0xff]
  %v433 = vld [vmem:[%s5 + $0x500] sm:$0xff]
  %v434 = vld [vmem:[%s5 + $0x508] sm:$0xff]
  %v435 = vld [vmem:[%s5 + $0x510] sm:$0xff]
  %v436 = vld [vmem:[%s5 + $0x518] sm:$0xff]
  %v437 = vld [vmem:[%s5 + $0x520] sm:$0xff]
  %v438 = vld [vmem:[%s5 + $0x528] sm:$0xff]
  %v439 = vld [vmem:[%s5 + $0x530] sm:$0xff]
  %v440 = vld [vmem:[%s5 + $0x538] sm:$0xff]
  %v441 = vld [vmem:[%s5 + $0x540] sm:$0xff]
  %v442 = vld [vmem:[%s5 + $0x548] sm:$0xff]
  %v443 = vld [vmem:[%s5 + $0x550] sm:$0xff]
  %v444 = vld [vmem:[%s5 + $0x558] sm:$0xff]
  %v445 = vld [vmem:[%s5 + $0x560] sm:$0xff]
  %v446 = vld [vmem:[%s5 + $0x568] sm:$0xff]
  %v447 = vld [vmem:[%s5 + $0x570] sm:$0xff]
  %v448 = vld [vmem:[%s5 + $0x578] sm:$0xff]
  %v449 = vld [vmem:[%s5 + $0x580] sm:$0xff]
  %v450 = vld [vmem:[%s5 + $0x588] sm:$0xff]
  %v451 = vld [vmem:[%s5 + $0x590] sm:$0xff]
  %v452 = vld [vmem:[%s5 + $0x598] sm:$0xff]
  %v453 = vld [vmem:[%s5 + $0x5a0] sm:$0xff]
  %v454 = vld [vmem:[%s5 + $0x5a8] sm:$0xff]
  %v455 = vld [vmem:[%s5 + $0x5b0] sm:$0xff]
  %v456 = vld [vmem:[%s5 + $0x5b8] sm:$0xff]
  %v457 = vld [vmem:[%s5 + $0x5c0] sm:$0xff]
  %v458 = vld [vmem:[%s5 + $0x5c8] sm:$0xff]
  %v459 = vld [vmem:[%s5 + $0x5d0] sm:$0xff]
  %v460 = vld [vmem:[%s5 + $0x5d8] sm:$0xff]
  %v461 = vld [vmem:[%s5 + $0x5e0] sm:$0xff]
  %v462 = vld [vmem:[%s5 + $0x5e8] sm:$0xff]
  %v463 = vld [vmem:[%s5 + $0x5f0] sm:$0xff]
  %v464 = vld [vmem:[%s5 + $0x5f8] sm:$0xff]
  %v465 = vld [vmem:[%s5 + $0x600] sm:$0xff]
  %v466 = vld [vmem:[%s5 + $0x608] sm:$0xff]
  %v467 = vld [vmem:[%s5 + $0x610] sm:$0xff]
  %v468 = vld [vmem:[%s5 + $0x618] sm:$0xff]
  %v469 = vld [vmem:[%s5 + $0x620] sm:$0xff]
  %v470 = vld [vmem:[%s5 + $0x628] sm:$0xff]
  %v471 = vld [vmem:[%s5 + $0x630] sm:$0xff]
  %v472 = vld [vmem:[%s5 + $0x638] sm:$0xff]
  %v473 = vld [vmem:[%s5 + $0x640] sm:$0xff]
  %v474 = vld [vmem:[%s5 + $0x648] sm:$0xff]
  %v475 = vld [vmem:[%s5 + $0x650] sm:$0xff]
  %v476 = vld [vmem:[%s5 + $0x658] sm:$0xff]
  %v477 = vld [vmem:[%s5 + $0x660] sm:$0xff]
  %v478 = vld [vmem:[%s5 + $0x668] sm:$0xff]
  %v479 = vld [vmem:[%s5 + $0x670] sm:$0xff]
  %v480 = vld [vmem:[%s5 + $0x678] sm:$0xff]
  %v481 = vld [vmem:[%s5 + $0x680] sm:$0xff]
  %v482 = vld [vmem:[%s5 + $0x688] sm:$0xff]
  %v483 = vld [vmem:[%s5 + $0x690] sm:$0xff]
  %v484 = vld [vmem:[%s5 + $0x698] sm:$0xff]
  %v485 = vld [vmem:[%s5 + $0x6a0] sm:$0xff]
  %v486 = vld [vmem:[%s5 + $0x6a8] sm:$0xff]
  %v487 = vld [vmem:[%s5 + $0x6b0] sm:$0xff]
  %v488 = vld [vmem:[%s5 + $0x6b8] sm:$0xff]
  %v489 = vld [vmem:[%s5 + $0x6c0] sm:$0xff]
  %v490 = vld [vmem:[%s5 + $0x6c8] sm:$0xff]
  %v491 = vld [vmem:[%s5 + $0x6d0] sm:$0xff]
  %v492 = vld [vmem:[%s5 + $0x6d8] sm:$0xff]
  %v493 = vld [vmem:[%s5 + $0x6e0] sm:$0xff]
  %v494 = vld [vmem:[%s5 + $0x6e8] sm:$0xff]
  %v495 = vld [vmem:[%s5 + $0x6f0] sm:$0xff]
  %v496 = vld [vmem:[%s5 + $0x6f8] sm:$0xff]
  %v497 = vld [vmem:[%s5 + $0x700] sm:$0xff]
  %v498 = vld [vmem:[%s5 + $0x708] sm:$0xff]
  %v499 = vld [vmem:[%s5 + $0x710] sm:$0xff]
  %v500 = vld [vmem:[%s5 + $0x718] sm:$0xff]
  %v501 = vld [vmem:[%s5 + $0x720] sm:$0xff]
  %v502 = vld [vmem:[%s5 + $0x728] sm:$0xff]
  %v503 = vld [vmem:[%s5 + $0x730] sm:$0xff]
  %v504 = vld [vmem:[%s5 + $0x738] sm:$0xff]
  %v505 = vld [vmem:[%s5 + $0x740] sm:$0xff]
  %v506 = vld [vmem:[%s5 + $0x748] sm:$0xff]
  %v507 = vld [vmem:[%s5 + $0x750] sm:$0xff]
  %v508 = vld [vmem:[%s5 + $0x758] sm:$0xff]
  %v509 = vld [vmem:[%s5 + $0x760] sm:$0xff]
  %v510 = vld [vmem:[%s5 + $0x768] sm:$0xff]
  %v511 = vld [vmem:[%s5 + $0x770] sm:$0xff]
  %v512 = vld [vmem:[%s5 + $0x778] sm:$0xff]
  %v513 = vld [vmem:[%s5 + $0x780] sm:$0xff]
  %v514 = vld [vmem:[%s5 + $0x788] sm:$0xff]
  %v515 = vld [vmem:[%s5 + $0x790] sm:$0xff]
  %v516 = vld [vmem:[%s5 + $0x798] sm:$0xff]
  %v517 = vld [vmem:[%s5 + $0x7a0] sm:$0xff]
  %v518 = vld [vmem:[%s5 + $0x7a8] sm:$0xff]
  %v519 = vld [vmem:[%s5 + $0x7b0] sm:$0xff]
  %v520 = vld [vmem:[%s5 + $0x7b8] sm:$0xff]
  %v521 = vld [vmem:[%s5 + $0x7c0] sm:$0xff]
  %v522 = vld [vmem:[%s5 + $0x7c8] sm:$0xff]
  %v523 = vld [vmem:[%s5 + $0x7d0] sm:$0xff]
  %v524 = vld [vmem:[%s5 + $0x7d8] sm:$0xff]
  %v525 = vld [vmem:[%s5 + $0x7e0] sm:$0xff]
  %v526 = vld [vmem:[%s5 + $0x7e8] sm:$0xff]
  %v527 = vld [vmem:[%s5 + $0x7f0] sm:$0xff]
  %v528 = vld [vmem:[%s5 + $0x7f8] sm:$0xff]
  %v529 = vld [vmem:[%s5 + $0x800] sm:$0xff]
  %v530 = vld [vmem:[%s5 + $0x808] sm:$0xff]
  %v531 = vld [vmem:[%s5 + $0x810] sm:$0xff]
  %v532 = vld [vmem:[%s5 + $0x818] sm:$0xff]
  %v533 = vld [vmem:[%s5 + $0x820] sm:$0xff]
  %v534 = vld [vmem:[%s5 + $0x828] sm:$0xff]
  %v535 = vld [vmem:[%s5 + $0x830] sm:$0xff]
  %v536 = vld [vmem:[%s5 + $0x838] sm:$0xff]
  %v537 = vld [vmem:[%s5 + $0x840] sm:$0xff]
  %v538 = vld [vmem:[%s5 + $0x848] sm:$0xff]
  %v539 = vld [vmem:[%s5 + $0x850] sm:$0xff]
  %v540 = vld [vmem:[%s5 + $0x858] sm:$0xff]
  %v541 = vld [vmem:[%s5 + $0x860] sm:$0xff]
  %v542 = vld [vmem:[%s5 + $0x868] sm:$0xff]
  %v543 = vld [vmem:[%s5 + $0x870] sm:$0xff]
  %v544 = vld [vmem:[%s5 + $0x878] sm:$0xff]
  %v545 = vld [vmem:[%s5 + $0x880] sm:$0xff]
  %v546 = vld [vmem:[%s5 + $0x888] sm:$0xff]
  %v547 = vld [vmem:[%s5 + $0x890] sm:$0xff]
  %v548 = vld [vmem:[%s5 + $0x898] sm:$0xff]
  %v549 = vld [vmem:[%s5 + $0x8a0] sm:$0xff]
  %v550 = vld [vmem:[%s5 + $0x8a8] sm:$0xff]
  %v551 = vld [vmem:[%s5 + $0x8b0] sm:$0xff]
  %v552 = vld [vmem:[%s5 + $0x8b8] sm:$0xff]
  %v553 = vld [vmem:[%s5 + $0x8c0] sm:$0xff]
  %v554 = vld [vmem:[%s5 + $0x8c8] sm:$0xff]
  %v555 = vld [vmem:[%s5 + $0x8d0] sm:$0xff]
  %v556 = vld [vmem:[%s5 + $0x8d8] sm:$0xff]
  %v557 = vld [vmem:[%s5 + $0x8e0] sm:$0xff]
  %v558 = vld [vmem:[%s5 + $0x8e8] sm:$0xff]
  %v559 = vld [vmem:[%s5 + $0x8f0] sm:$0xff]
  %v560 = vld [vmem:[%s5 + $0x8f8] sm:$0xff]
  %561 = vmatprep.subr.mxu0 0.0
  %562 = vmatpush1.msra.mxu0 %v288
  %563 = vmatprep.subr.mxu0 0.0
  %564 = vmatpush1.msra.mxu0 %v287
  %565 = vmatprep.subr.mxu0 0.0
  %566 = vmatpush1.msra.mxu0 %v286
  %567 = vmatprep.subr.mxu0 0.0
  %568 = vmatpush1.msra.mxu0 %v285
  %569 = vmatprep.subr.mxu0 0.0
  %570 = vmatpush1.msra.mxu0 %v284
  %571 = vmatprep.subr.mxu0 0.0
  %572 = vmatpush1.msra.mxu0 %v283
  %573 = vmatprep.subr.mxu0 0.0
  %574 = vmatpush1.msra.mxu0 %v282
  %575 = vmatprep.subr.mxu0 0.0
  %576 = vmatpush1.msra.mxu0 %v281
  %577 = vmatprep.subr.mxu0 0.0
  %578 = vmatpush1.msra.mxu0 %v280
  %579 = vmatprep.subr.mxu0 0.0
  %580 = vmatpush1.msra.mxu0 %v279
  %581 = vmatprep.subr.mxu0 0.0
  %582 = vmatpush1.msra.mxu0 %v278
  %583 = vmatprep.subr.mxu0 0.0
  %584 = vmatpush1.msra.mxu0 %v277
  %585 = vmatprep.subr.mxu0 0.0
  %586 = vmatpush1.msra.mxu0 %v276
  %587 = vmatprep.subr.mxu0 0.0
  %588 = vmatpush1.msra.mxu0 %v275
  %589 = vmatprep.subr.mxu0 0.0
  %590 = vmatpush1.msra.mxu0 %v274
  %591 = vmatprep.subr.mxu0 0.0
  %592 = vmatpush1.msra.mxu0 %v273
  %593 = vmatprep.subr.mxu0 0.0
  %594 = vmatpush2.msra.mxu0 %v304
  %595 = vmatprep.subr.mxu0 0.0
  %596 = vmatpush2.msra.mxu0 %v303
  %597 = vmatprep.subr.mxu0 0.0
  %598 = vmatpush2.msra.mxu0 %v302
  %599 = vmatprep.subr.mxu0 0.0
  %600 = vmatpush2.msra.mxu0 %v301
  %601 = vmatprep.subr.mxu0 0.0
  %602 = vmatpush2.msra.mxu0 %v300
  %603 = vmatprep.subr.mxu0 0.0
  %604 = vmatpush2.msra.mxu0 %v299
  %605 = vmatprep.subr.mxu0 0.0
  %606 = vmatpush2.msra.mxu0 %v298
  %607 = vmatprep.subr.mxu0 0.0
  %608 = vmatpush2.msra.mxu0 %v297
  %609 = vmatprep.subr.mxu0 0.0
  %610 = vmatpush2.msra.mxu0 %v296
  %611 = vmatprep.subr.mxu0 0.0
  %612 = vmatpush2.msra.mxu0 %v295
  %613 = vmatprep.subr.mxu0 0.0
  %614 = vmatpush2.msra.mxu0 %v294
  %615 = vmatprep.subr.mxu0 0.0
  %616 = vmatpush2.msra.mxu0 %v293
  %617 = vmatprep.subr.mxu0 0.0
  %618 = vmatpush2.msra.mxu0 %v292
  %619 = vmatprep.subr.mxu0 0.0
  %620 = vmatpush2.msra.mxu0 %v291
  %621 = vmatprep.subr.mxu0 0.0
  %622 = vmatpush2.msra.mxu0 %v290
  %623 = vmatprep.subr.mxu0 0.0
  %624 = vmatpush2.msra.mxu0 %v289
  %625 = vmatprep.mubr.f32.mxu0 %v256
  %626 = vmatmul.mubr.f32.gmra.mxu0 %v255
  %v627 = vpop.f32.mrf.mxu0
  %v628 = vadd.f32 0.0, %v627
  %v629 = vpop.f32.mrf.mxu0
  %630 = vdwg.mxu0
  %631 = vmatprep.subr.mxu0 0.0
  %632 = vmatpush1.msra.mxu0 %v320
  %633 = vmatprep.subr.mxu0 0.0
  %634 = vmatpush1.msra.mxu0 %v319
  %635 = vmatprep.subr.mxu0 0.0
  %636 = vmatpush1.msra.mxu0 %v318
  %637 = vmatprep.subr.mxu0 0.0
  %638 = vmatpush1.msra.mxu0 %v317
  %639 = vmatprep.subr.mxu0 0.0
  %640 = vmatpush1.msra.mxu0 %v316
  %641 = vmatprep.subr.mxu0 0.0
  %642 = vmatpush1.msra.mxu0 %v315
  %643 = vmatprep.subr.mxu0 0.0
  %644 = vmatpush1.msra.mxu0 %v314
  %645 = vmatprep.subr.mxu0 0.0
  %646 = vmatpush1.msra.mxu0 %v313
  %647 = vmatprep.subr.mxu0 0.0
  %648 = vmatpush1.msra.mxu0 %v312
  %649 = vmatprep.subr.mxu0 0.0
  %650 = vmatpush1.msra.mxu0 %v311
  %651 = vmatprep.subr.mxu0 0.0
  %652 = vmatpush1.msra.mxu0 %v310
  %653 = vmatprep.subr.mxu0 0.0
  %654 = vmatpush1.msra.mxu0 %v309
  %655 = vmatprep.subr.mxu0 0.0
  %656 = vmatpush1.msra.mxu0 %v308
  %657 = vmatprep.subr.mxu0 0.0
  %658 = vmatpush1.msra.mxu0 %v307
  %659 = vmatprep.subr.mxu0 0.0
  %660 = vmatpush1.msra.mxu0 %v306
  %661 = vmatprep.subr.mxu0 0.0
  %662 = vmatpush1.msra.mxu0 %v305
  %663 = vmatprep.subr.mxu0 0.0
  %664 = vmatpush2.msra.mxu0 %v336
  %665 = vmatprep.subr.mxu0 0.0
  %666 = vmatpush2.msra.mxu0 %v335
  %667 = vmatprep.subr.mxu0 0.0
  %668 = vmatpush2.msra.mxu0 %v334
  %669 = vmatprep.subr.mxu0 0.0
  %670 = vmatpush2.msra.mxu0 %v333
  %671 = vmatprep.subr.mxu0 0.0
  %672 = vmatpush2.msra.mxu0 %v332
  %673 = vmatprep.subr.mxu0 0.0
  %674 = vmatpush2.msra.mxu0 %v331
  %675 = vmatprep.subr.mxu0 0.0
  %676 = vmatpush2.msra.mxu0 %v330
  %677 = vmatprep.subr.mxu0 0.0
  %678 = vmatpush2.msra.mxu0 %v329
  %679 = vmatprep.subr.mxu0 0.0
  %680 = vmatpush2.msra.mxu0 %v328
  %681 = vmatprep.subr.mxu0 0.0
  %682 = vmatpush2.msra.mxu0 %v327
  %683 = vmatprep.subr.mxu0 0.0
  %684 = vmatpush2.msra.mxu0 %v326
  %685 = vmatprep.subr.mxu0 0.0
  %686 = vmatpush2.msra.mxu0 %v325
  %687 = vmatprep.subr.mxu0 0.0
  %688 = vmatpush2.msra.mxu0 %v324
  %689 = vmatprep.subr.mxu0 0.0
  %690 = vmatpush2.msra.mxu0 %v323
  %691 = vmatprep.subr.mxu0 0.0
  %692 = vmatpush2.msra.mxu0 %v322
  %693 = vmatprep.subr.mxu0 0.0
  %694 = vmatpush2.msra.mxu0 %v321
  %695 = vmatprep.mubr.f32.mxu0 %v258
  %696 = vmatmul.mubr.f32.gmra.mxu0 %v257
  %v697 = vpop.f32.mrf.mxu0
  %v698 = vadd.f32 %v628, %v697
  %v699 = vpop.f32.mrf.mxu0
  %700 = vdwg.mxu0
  %701 = vmatprep.subr.mxu0 0.0
  %702 = vmatpush1.msra.mxu0 %v352
  %703 = vmatprep.subr.mxu0 0.0
  %704 = vmatpush1.msra.mxu0 %v351
  %705 = vmatprep.subr.mxu0 0.0
  %706 = vmatpush1.msra.mxu0 %v350
  %707 = vmatprep.subr.mxu0 0.0
  %708 = vmatpush1.msra.mxu0 %v349
  %709 = vmatprep.subr.mxu0 0.0
  %710 = vmatpush1.msra.mxu0 %v348
  %711 = vmatprep.subr.mxu0 0.0
  %712 = vmatpush1.msra.mxu0 %v347
  %713 = vmatprep.subr.mxu0 0.0
  %714 = vmatpush1.msra.mxu0 %v346
  %715 = vmatprep.subr.mxu0 0.0
  %716 = vmatpush1.msra.mxu0 %v345
  %717 = vmatprep.subr.mxu0 0.0
  %718 = vmatpush1.msra.mxu0 %v344
  %719 = vmatprep.subr.mxu0 0.0
  %720 = vmatpush1.msra.mxu0 %v343
  %721 = vmatprep.subr.mxu0 0.0
  %722 = vmatpush1.msra.mxu0 %v342
  %723 = vmatprep.subr.mxu0 0.0
  %724 = vmatpush1.msra.mxu0 %v341
  %725 = vmatprep.subr.mxu0 0.0
  %726 = vmatpush1.msra.mxu0 %v340
  %727 = vmatprep.subr.mxu0 0.0
  %728 = vmatpush1.msra.mxu0 %v339
  %729 = vmatprep.subr.mxu0 0.0
  %730 = vmatpush1.msra.mxu0 %v338
  %731 = vmatprep.subr.mxu0 0.0
  %732 = vmatpush1.msra.mxu0 %v337
  %733 = vmatprep.subr.mxu0 0.0
  %734 = vmatpush2.msra.mxu0 %v368
  %735 = vmatprep.subr.mxu0 0.0
  %736 = vmatpush2.msra.mxu0 %v367
  %737 = vmatprep.subr.mxu0 0.0
  %738 = vmatpush2.msra.mxu0 %v366
  %739 = vmatprep.subr.mxu0 0.0
  %740 = vmatpush2.msra.mxu0 %v365
  %741 = vmatprep.subr.mxu0 0.0
  %742 = vmatpush2.msra.mxu0 %v364
  %743 = vmatprep.subr.mxu0 0.0
  %744 = vmatpush2.msra.mxu0 %v363
  %745 = vmatprep.subr.mxu0 0.0
  %746 = vmatpush2.msra.mxu0 %v362
  %747 = vmatprep.subr.mxu0 0.0
  %748 = vmatpush2.msra.mxu0 %v361
  %749 = vmatprep.subr.mxu0 0.0
  %750 = vmatpush2.msra.mxu0 %v360
  %751 = vmatprep.subr.mxu0 0.0
  %752 = vmatpush2.msra.mxu0 %v359
  %753 = vmatprep.subr.mxu0 0.0
  %754 = vmatpush2.msra.mxu0 %v358
  %755 = vmatprep.subr.mxu0 0.0
  %756 = vmatpush2.msra.mxu0 %v357
  %757 = vmatprep.subr.mxu0 0.0
  %758 = vmatpush2.msra.mxu0 %v356
  %759 = vmatprep.subr.mxu0 0.0
  %760 = vmatpush2.msra.mxu0 %v355
  %761 = vmatprep.subr.mxu0 0.0
  %762 = vmatpush2.msra.mxu0 %v354
  %763 = vmatprep.subr.mxu0 0.0
  %764 = vmatpush2.msra.mxu0 %v353
  %765 = vmatprep.mubr.f32.mxu0 %v260
  %766 = vmatmul.mubr.f32.gmra.mxu0 %v259
  %v767 = vpop.f32.mrf.mxu0
  %v768 = vadd.f32 %v698, %v767
  %v769 = vpop.f32.mrf.mxu0
  %770 = vdwg.mxu0
  %771 = vmatprep.subr.mxu0 0.0
  %772 = vmatpush1.msra.mxu0 %v384
  %773 = vmatprep.subr.mxu0 0.0
  %774 = vmatpush1.msra.mxu0 %v383
  %775 = vmatprep.subr.mxu0 0.0
  %776 = vmatpush1.msra.mxu0 %v382
  %777 = vmatprep.subr.mxu0 0.0
  %778 = vmatpush1.msra.mxu0 %v381
  %779 = vmatprep.subr.mxu0 0.0
  %780 = vmatpush1.msra.mxu0 %v380
  %781 = vmatprep.subr.mxu0 0.0
  %782 = vmatpush1.msra.mxu0 %v379
  %783 = vmatprep.subr.mxu0 0.0
  %784 = vmatpush1.msra.mxu0 %v378
  %785 = vmatprep.subr.mxu0 0.0
  %786 = vmatpush1.msra.mxu0 %v377
  %787 = vmatprep.subr.mxu0 0.0
  %788 = vmatpush1.msra.mxu0 %v376
  %789 = vmatprep.subr.mxu0 0.0
  %790 = vmatpush1.msra.mxu0 %v375
  %791 = vmatprep.subr.mxu0 0.0
  %792 = vmatpush1.msra.mxu0 %v374
  %793 = vmatprep.subr.mxu0 0.0
  %794 = vmatpush1.msra.mxu0 %v373
  %795 = vmatprep.subr.mxu0 0.0
  %796 = vmatpush1.msra.mxu0 %v372
  %797 = vmatprep.subr.mxu0 0.0
  %798 = vmatpush1.msra.mxu0 %v371
  %799 = vmatprep.subr.mxu0 0.0
  %800 = vmatpush1.msra.mxu0 %v370
  %801 = vmatprep.subr.mxu0 0.0
  %802 = vmatpush1.msra.mxu0 %v369
  %803 = vmatprep.subr.mxu0 0.0
  %804 = vmatpush2.msra.mxu0 %v400
  %805 = vmatprep.subr.mxu0 0.0
  %806 = vmatpush2.msra.mxu0 %v399
  %807 = vmatprep.subr.mxu0 0.0
  %808 = vmatpush2.msra.mxu0 %v398
  %809 = vmatprep.subr.mxu0 0.0
  %810 = vmatpush2.msra.mxu0 %v397
  %811 = vmatprep.subr.mxu0 0.0
  %812 = vmatpush2.msra.mxu0 %v396
  %813 = vmatprep.subr.mxu0 0.0
  %814 = vmatpush2.msra.mxu0 %v395
  %815 = vmatprep.subr.mxu0 0.0
  %816 = vmatpush2.msra.mxu0 %v394
  %817 = vmatprep.subr.mxu0 0.0
  %818 = vmatpush2.msra.mxu0 %v393
  %819 = vmatprep.subr.mxu0 0.0
  %820 = vmatpush2.msra.mxu0 %v392
  %821 = vmatprep.subr.mxu0 0.0
  %822 = vmatpush2.msra.mxu0 %v391
  %823 = vmatprep.subr.mxu0 0.0
  %824 = vmatpush2.msra.mxu0 %v390
  %825 = vmatprep.subr.mxu0 0.0
  %826 = vmatpush2.msra.mxu0 %v389
  %827 = vmatprep.subr.mxu0 0.0
  %828 = vmatpush2.msra.mxu0 %v388
  %829 = vmatprep.subr.mxu0 0.0
  %830 = vmatpush2.msra.mxu0 %v387
  %831 = vmatprep.subr.mxu0 0.0
  %832 = vmatpush2.msra.mxu0 %v386
  %833 = vmatprep.subr.mxu0 0.0
  %834 = vmatpush2.msra.mxu0 %v385
  %835 = vmatprep.mubr.f32.mxu0 %v262
  %836 = vmatmul.mubr.f32.gmra.mxu0 %v261
  %v837 = vpop.f32.mrf.mxu0
  %v838 = vadd.f32 %v768, %v837
  %v839 = vpop.f32.mrf.mxu0
  %840 = vdwg.mxu0
  %841 = vmatprep.subr.mxu0 0.0
  %842 = vmatpush1.msra.mxu0 %v416
  %843 = vmatprep.subr.mxu0 0.0
  %844 = vmatpush1.msra.mxu0 %v415
  %845 = vmatprep.subr.mxu0 0.0
  %846 = vmatpush1.msra.mxu0 %v414
  %847 = vmatprep.subr.mxu0 0.0
  %848 = vmatpush1.msra.mxu0 %v413
  %849 = vmatprep.subr.mxu0 0.0
  %850 = vmatpush1.msra.mxu0 %v412
  %851 = vmatprep.subr.mxu0 0.0
  %852 = vmatpush1.msra.mxu0 %v411
  %853 = vmatprep.subr.mxu0 0.0
  %854 = vmatpush1.msra.mxu0 %v410
  %855 = vmatprep.subr.mxu0 0.0
  %856 = vmatpush1.msra.mxu0 %v409
  %857 = vmatprep.subr.mxu0 0.0
  %858 = vmatpush1.msra.mxu0 %v408
  %859 = vmatprep.subr.mxu0 0.0
  %860 = vmatpush1.msra.mxu0 %v407
  %861 = vmatprep.subr.mxu0 0.0
  %862 = vmatpush1.msra.mxu0 %v406
  %863 = vmatprep.subr.mxu0 0.0
  %864 = vmatpush1.msra.mxu0 %v405
  %865 = vmatprep.subr.mxu0 0.0
  %866 = vmatpush1.msra.mxu0 %v404
  %867 = vmatprep.subr.mxu0 0.0
  %868 = vmatpush1.msra.mxu0 %v403
  %869 = vmatprep.subr.mxu0 0.0
  %870 = vmatpush1.msra.mxu0 %v402
  %871 = vmatprep.subr.mxu0 0.0
  %872 = vmatpush1.msra.mxu0 %v401
  %873 = vmatprep.subr.mxu0 0.0
  %874 = vmatpush2.msra.mxu0 %v432
  %875 = vmatprep.subr.mxu0 0.0
  %876 = vmatpush2.msra.mxu0 %v431
  %877 = vmatprep.subr.mxu0 0.0
  %878 = vmatpush2.msra.mxu0 %v430
  %879 = vmatprep.subr.mxu0 0.0
  %880 = vmatpush2.msra.mxu0 %v429
  %881 = vmatprep.subr.mxu0 0.0
  %882 = vmatpush2.msra.mxu0 %v428
  %883 = vmatprep.subr.mxu0 0.0
  %884 = vmatpush2.msra.mxu0 %v427
  %885 = vmatprep.subr.mxu0 0.0
  %886 = vmatpush2.msra.mxu0 %v426
  %887 = vmatprep.subr.mxu0 0.0
  %888 = vmatpush2.msra.mxu0 %v425
  %889 = vmatprep.subr.mxu0 0.0
  %890 = vmatpush2.msra.mxu0 %v424
  %891 = vmatprep.subr.mxu0 0.0
  %892 = vmatpush2.msra.mxu0 %v423
  %893 = vmatprep.subr.mxu0 0.0
  %894 = vmatpush2.msra.mxu0 %v422
  %895 = vmatprep.subr.mxu0 0.0
  %896 = vmatpush2.msra.mxu0 %v421
  %897 = vmatprep.subr.mxu0 0.0
  %898 = vmatpush2.msra.mxu0 %v420
  %899 = vmatprep.subr.mxu0 0.0
  %900 = vmatpush2.msra.mxu0 %v419
  %901 = vmatprep.subr.mxu0 0.0
  %902 = vmatpush2.msra.mxu0 %v418
  %903 = vmatprep.subr.mxu0 0.0
  %904 = vmatpush2.msra.mxu0 %v417
  %905 = vmatprep.mubr.f32.mxu0 %v264
  %906 = vmatmul.mubr.f32.gmra.mxu0 %v263
  %v907 = vpop.f32.mrf.mxu0
  %v908 = vadd.f32 %v838, %v907
  %v909 = vpop.f32.mrf.mxu0
  %910 = vdwg.mxu0
  %911 = vmatprep.subr.mxu0 0.0
  %912 = vmatpush1.msra.mxu0 %v448
  %913 = vmatprep.subr.mxu0 0.0
  %914 = vmatpush1.msra.mxu0 %v447
  %915 = vmatprep.subr.mxu0 0.0
  %916 = vmatpush1.msra.mxu0 %v446
  %917 = vmatprep.subr.mxu0 0.0
  %918 = vmatpush1.msra.mxu0 %v445
  %919 = vmatprep.subr.mxu0 0.0
  %920 = vmatpush1.msra.mxu0 %v444
  %921 = vmatprep.subr.mxu0 0.0
  %922 = vmatpush1.msra.mxu0 %v443
  %923 = vmatprep.subr.mxu0 0.0
  %924 = vmatpush1.msra.mxu0 %v442
  %925 = vmatprep.subr.mxu0 0.0
  %926 = vmatpush1.msra.mxu0 %v441
  %927 = vmatprep.subr.mxu0 0.0
  %928 = vmatpush1.msra.mxu0 %v440
  %929 = vmatprep.subr.mxu0 0.0
  %930 = vmatpush1.msra.mxu0 %v439
  %931 = vmatprep.subr.mxu0 0.0
  %932 = vmatpush1.msra.mxu0 %v438
  %933 = vmatprep.subr.mxu0 0.0
  %934 = vmatpush1.msra.mxu0 %v437
  %935 = vmatprep.subr.mxu0 0.0
  %936 = vmatpush1.msra.mxu0 %v436
  %937 = vmatprep.subr.mxu0 0.0
  %938 = vmatpush1.msra.mxu0 %v435
  %939 = vmatprep.subr.mxu0 0.0
  %940 = vmatpush1.msra.mxu0 %v434
  %941 = vmatprep.subr.mxu0 0.0
  %942 = vmatpush1.msra.mxu0 %v433
  %943 = vmatprep.subr.mxu0 0.0
  %944 = vmatpush2.msra.mxu0 %v464
  %945 = vmatprep.subr.mxu0 0.0
  %946 = vmatpush2.msra.mxu0 %v463
  %947 = vmatprep.subr.mxu0 0.0
  %948 = vmatpush2.msra.mxu0 %v462
  %949 = vmatprep.subr.mxu0 0.0
  %950 = vmatpush2.msra.mxu0 %v461
  %951 = vmatprep.subr.mxu0 0.0
  %952 = vmatpush2.msra.mxu0 %v460
  %953 = vmatprep.subr.mxu0 0.0
  %954 = vmatpush2.msra.mxu0 %v459
  %955 = vmatprep.subr.mxu0 0.0
  %956 = vmatpush2.msra.mxu0 %v458
  %957 = vmatprep.subr.mxu0 0.0
  %958 = vmatpush2.msra.mxu0 %v457
  %959 = vmatprep.subr.mxu0 0.0
  %960 = vmatpush2.msra.mxu0 %v456
  %961 = vmatprep.subr.mxu0 0.0
  %962 = vmatpush2.msra.mxu0 %v455
  %963 = vmatprep.subr.mxu0 0.0
  %964 = vmatpush2.msra.mxu0 %v454
  %965 = vmatprep.subr.mxu0 0.0
  %966 = vmatpush2.msra.mxu0 %v453
  %967 = vmatprep.subr.mxu0 0.0
  %968 = vmatpush2.msra.mxu0 %v452
  %969 = vmatprep.subr.mxu0 0.0
  %970 = vmatpush2.msra.mxu0 %v451
  %971 = vmatprep.subr.mxu0 0.0
  %972 = vmatpush2.msra.mxu0 %v450
  %973 = vmatprep.subr.mxu0 0.0
  %974 = vmatpush2.msra.mxu0 %v449
  %975 = vmatprep.mubr.f32.mxu0 %v266
  %976 = vmatmul.mubr.f32.gmra.mxu0 %v265
  %v977 = vpop.f32.mrf.mxu0
  %v978 = vadd.f32 %v908, %v977
  %v979 = vpop.f32.mrf.mxu0
  %980 = vdwg.mxu0
  %981 = vmatprep.subr.mxu0 0.0
  %982 = vmatpush1.msra.mxu0 %v480
  %983 = vmatprep.subr.mxu0 0.0
  %984 = vmatpush1.msra.mxu0 %v479
  %985 = vmatprep.subr.mxu0 0.0
  %986 = vmatpush1.msra.mxu0 %v478
  %987 = vmatprep.subr.mxu0 0.0
  %988 = vmatpush1.msra.mxu0 %v477
  %989 = vmatprep.subr.mxu0 0.0
  %990 = vmatpush1.msra.mxu0 %v476
  %991 = vmatprep.subr.mxu0 0.0
  %992 = vmatpush1.msra.mxu0 %v475
  %993 = vmatprep.subr.mxu0 0.0
  %994 = vmatpush1.msra.mxu0 %v474
  %995 = vmatprep.subr.mxu0 0.0
  %996 = vmatpush1.msra.mxu0 %v473
  %997 = vmatprep.subr.mxu0 0.0
  %998 = vmatpush1.msra.mxu0 %v472
  %999 = vmatprep.subr.mxu0 0.0
  %1000 = vmatpush1.msra.mxu0 %v471
  %1001 = vmatprep.subr.mxu0 0.0
  %1002 = vmatpush1.msra.mxu0 %v470
  %1003 = vmatprep.subr.mxu0 0.0
  %1004 = vmatpush1.msra.mxu0 %v469
  %1005 = vmatprep.subr.mxu0 0.0
  %1006 = vmatpush1.msra.mxu0 %v468
  %1007 = vmatprep.subr.mxu0 0.0
  %1008 = vmatpush1.msra.mxu0 %v467
  %1009 = vmatprep.subr.mxu0 0.0
  %1010 = vmatpush1.msra.mxu0 %v466
  %1011 = vmatprep.subr.mxu0 0.0
  %1012 = vmatpush1.msra.mxu0 %v465
  %1013 = vmatprep.subr.mxu0 0.0
  %1014 = vmatpush2.msra.mxu0 %v496
  %1015 = vmatprep.subr.mxu0 0.0
  %1016 = vmatpush2.msra.mxu0 %v495
  %1017 = vmatprep.subr.mxu0 0.0
  %1018 = vmatpush2.msra.mxu0 %v494
  %1019 = vmatprep.subr.mxu0 0.0
  %1020 = vmatpush2.msra.mxu0 %v493
  %1021 = vmatprep.subr.mxu0 0.0
  %1022 = vmatpush2.msra.mxu0 %v492
  %1023 = vmatprep.subr.mxu0 0.0
  %1024 = vmatpush2.msra.mxu0 %v491
  %1025 = vmatprep.subr.mxu0 0.0
  %1026 = vmatpush2.msra.mxu0 %v490
  %1027 = vmatprep.subr.mxu0 0.0
  %1028 = vmatpush2.msra.mxu0 %v489
  %1029 = vmatprep.subr.mxu0 0.0
  %1030 = vmatpush2.msra.mxu0 %v488
  %1031 = vmatprep.subr.mxu0 0.0
  %1032 = vmatpush2.msra.mxu0 %v487
  %1033 = vmatprep.subr.mxu0 0.0
  %1034 = vmatpush2.msra.mxu0 %v486
  %1035 = vmatprep.subr.mxu0 0.0
  %1036 = vmatpush2.msra.mxu0 %v485
  %1037 = vmatprep.subr.mxu0 0.0
  %1038 = vmatpush2.msra.mxu0 %v484
  %1039 = vmatprep.subr.mxu0 0.0
  %1040 = vmatpush2.msra.mxu0 %v483
  %1041 = vmatprep.subr.mxu0 0.0
  %1042 = vmatpush2.msra.mxu0 %v482
  %1043 = vmatprep.subr.mxu0 0.0
  %1044 = vmatpush2.msra.mxu0 %v481
  %1045 = vmatprep.mubr.f32.mxu0 %v268
  %1046 = vmatmul.mubr.f32.gmra.mxu0 %v267
  %v1047 = vpop.f32.mrf.mxu0
  %v1048 = vadd.f32 %v978, %v1047
  %v1049 = vpop.f32.mrf.mxu0
  %1050 = vdwg.mxu0
  %1051 = vmatprep.subr.mxu0 0.0
  %1052 = vmatpush1.msra.mxu0 %v512
  %1053 = vmatprep.subr.mxu0 0.0
  %1054 = vmatpush1.msra.mxu0 %v511
  %1055 = vmatprep.subr.mxu0 0.0
  %1056 = vmatpush1.msra.mxu0 %v510
  %1057 = vmatprep.subr.mxu0 0.0
  %1058 = vmatpush1.msra.mxu0 %v509
  %1059 = vmatprep.subr.mxu0 0.0
  %1060 = vmatpush1.msra.mxu0 %v508
  %1061 = vmatprep.subr.mxu0 0.0
  %1062 = vmatpush1.msra.mxu0 %v507
  %1063 = vmatprep.subr.mxu0 0.0
  %1064 = vmatpush1.msra.mxu0 %v506
  %1065 = vmatprep.subr.mxu0 0.0
  %1066 = vmatpush1.msra.mxu0 %v505
  %1067 = vmatprep.subr.mxu0 0.0
  %1068 = vmatpush1.msra.mxu0 %v504
  %1069 = vmatprep.subr.mxu0 0.0
  %1070 = vmatpush1.msra.mxu0 %v503
  %1071 = vmatprep.subr.mxu0 0.0
  %1072 = vmatpush1.msra.mxu0 %v502
  %1073 = vmatprep.subr.mxu0 0.0
  %1074 = vmatpush1.msra.mxu0 %v501
  %1075 = vmatprep.subr.mxu0 0.0
  %1076 = vmatpush1.msra.mxu0 %v500
  %1077 = vmatprep.subr.mxu0 0.0
  %1078 = vmatpush1.msra.mxu0 %v499
  %1079 = vmatprep.subr.mxu0 0.0
  %1080 = vmatpush1.msra.mxu0 %v498
  %1081 = vmatprep.subr.mxu0 0.0
  %1082 = vmatpush1.msra.mxu0 %v497
  %1083 = vmatprep.subr.mxu0 0.0
  %1084 = vmatpush2.msra.mxu0 %v528
  %1085 = vmatprep.subr.mxu0 0.0
  %1086 = vmatpush2.msra.mxu0 %v527
  %1087 = vmatprep.subr.mxu0 0.0
  %1088 = vmatpush2.msra.mxu0 %v526
  %1089 = vmatprep.subr.mxu0 0.0
  %1090 = vmatpush2.msra.mxu0 %v525
  %1091 = vmatprep.subr.mxu0 0.0
  %1092 = vmatpush2.msra.mxu0 %v524
  %1093 = vmatprep.subr.mxu0 0.0
  %1094 = vmatpush2.msra.mxu0 %v523
  %1095 = vmatprep.subr.mxu0 0.0
  %1096 = vmatpush2.msra.mxu0 %v522
  %1097 = vmatprep.subr.mxu0 0.0
  %1098 = vmatpush2.msra.mxu0 %v521
  %1099 = vmatprep.subr.mxu0 0.0
  %1100 = vmatpush2.msra.mxu0 %v520
  %1101 = vmatprep.subr.mxu0 0.0
  %1102 = vmatpush2.msra.mxu0 %v519
  %1103 = vmatprep.subr.mxu0 0.0
  %1104 = vmatpush2.msra.mxu0 %v518
  %1105 = vmatprep.subr.mxu0 0.0
  %1106 = vmatpush2.msra.mxu0 %v517
  %1107 = vmatprep.subr.mxu0 0.0
  %1108 = vmatpush2.msra.mxu0 %v516
  %1109 = vmatprep.subr.mxu0 0.0
  %1110 = vmatpush2.msra.mxu0 %v515
  %1111 = vmatprep.subr.mxu0 0.0
  %1112 = vmatpush2.msra.mxu0 %v514
  %1113 = vmatprep.subr.mxu0 0.0
  %1114 = vmatpush2.msra.mxu0 %v513
  %1115 = vmatprep.mubr.f32.mxu0 %v270
  %1116 = vmatmul.mubr.f32.gmra.mxu0 %v269
  %v1117 = vpop.f32.mrf.mxu0
  %v1118 = vadd.f32 %v1048, %v1117
  %v1119 = vpop.f32.mrf.mxu0
  %1120 = vdwg.mxu0
  %1121 = vmatprep.subr.mxu0 0.0
  %1122 = vmatpush1.msra.mxu0 %v544
  %1123 = vmatprep.subr.mxu0 0.0
  %1124 = vmatpush1.msra.mxu0 %v543
  %1125 = vmatprep.subr.mxu0 0.0
  %1126 = vmatpush1.msra.mxu0 %v542
  %1127 = vmatprep.subr.mxu0 0.0
  %1128 = vmatpush1.msra.mxu0 %v541
  %1129 = vmatprep.subr.mxu0 0.0
  %1130 = vmatpush1.msra.mxu0 %v540
  %1131 = vmatprep.subr.mxu0 0.0
  %1132 = vmatpush1.msra.mxu0 %v539
  %1133 = vmatprep.subr.mxu0 0.0
  %1134 = vmatpush1.msra.mxu0 %v538
  %1135 = vmatprep.subr.mxu0 0.0
  %1136 = vmatpush1.msra.mxu0 %v537
  %1137 = vmatprep.subr.mxu0 0.0
  %1138 = vmatpush1.msra.mxu0 %v536
  %1139 = vmatprep.subr.mxu0 0.0
  %1140 = vmatpush1.msra.mxu0 %v535
  %1141 = vmatprep.subr.mxu0 0.0
  %1142 = vmatpush1.msra.mxu0 %v534
  %1143 = vmatprep.subr.mxu0 0.0
  %1144 = vmatpush1.msra.mxu0 %v533
  %1145 = vmatprep.subr.mxu0 0.0
  %1146 = vmatpush1.msra.mxu0 %v532
  %1147 = vmatprep.subr.mxu0 0.0
  %1148 = vmatpush1.msra.mxu0 %v531
  %1149 = vmatprep.subr.mxu0 0.0
  %1150 = vmatpush1.msra.mxu0 %v530
  %1151 = vmatprep.subr.mxu0 0.0
  %1152 = vmatpush1.msra.mxu0 %v529
  %1153 = vmatprep.subr.mxu0 0.0
  %1154 = vmatpush2.msra.mxu0 %v560
  %1155 = vmatprep.subr.mxu0 0.0
  %1156 = vmatpush2.msra.mxu0 %v559
  %1157 = vmatprep.subr.mxu0 0.0
  %1158 = vmatpush2.msra.mxu0 %v558
  %1159 = vmatprep.subr.mxu0 0.0
  %1160 = vmatpush2.msra.mxu0 %v557
  %1161 = vmatprep.subr.mxu0 0.0
  %1162 = vmatpush2.msra.mxu0 %v556
  %1163 = vmatprep.subr.mxu0 0.0
  %1164 = vmatpush2.msra.mxu0 %v555
  %1165 = vmatprep.subr.mxu0 0.0
  %1166 = vmatpush2.msra.mxu0 %v554
  %1167 = vmatprep.subr.mxu0 0.0
  %1168 = vmatpush2.msra.mxu0 %v553
  %1169 = vmatprep.subr.mxu0 0.0
  %1170 = vmatpush2.msra.mxu0 %v552
  %1171 = vmatprep.subr.mxu0 0.0
  %1172 = vmatpush2.msra.mxu0 %v551
  %1173 = vmatprep.subr.mxu0 0.0
  %1174 = vmatpush2.msra.mxu0 %v550
  %1175 = vmatprep.subr.mxu0 0.0
  %1176 = vmatpush2.msra.mxu0 %v549
  %1177 = vmatprep.subr.mxu0 0.0
  %1178 = vmatpush2.msra.mxu0 %v548
  %1179 = vmatprep.subr.mxu0 0.0
  %1180 = vmatpush2.msra.mxu0 %v547
  %1181 = vmatprep.subr.mxu0 0.0
  %1182 = vmatpush2.msra.mxu0 %v546
  %1183 = vmatprep.subr.mxu0 0.0
  %1184 = vmatpush2.msra.mxu0 %v545
  %1185 = vmatprep.mubr.f32.mxu0 %v272
  %1186 = vmatmul.mubr.f32.gmra.mxu0 %v271
  %v1187 = vpop.f32.mrf.mxu0
  %v1188 = vadd.f32 %v1118, %v1187
  %v1189 = vpop.f32.mrf.mxu0
  %1190 = vdwg.mxu0
  %v1191 = vrcp.pop %v1188
  %1193 = vset.pattern.permute.xlu0 64
  %1194 = vperm.xlu0 %1193, %v1191
  %v1195 = vpop.permute.xlu0 %1194
  %v1197 = vmul.f32 %v1188, %v1195
  %v1198 = vadd.f32 %v245, %v1197
  %v1199 = vld [vmem:[%s3] sm:$0xff]
  %v1200 = vld [vmem:[%s3 + $0x8] sm:$0xff]
  %v1201 = vld [vmem:[%s3 + $0x10] sm:$0xff]
  %v1202 = vld [vmem:[%s3 + $0x18] sm:$0xff]
  %v1203 = vld [vmem:[%s3 + $0x20] sm:$0xff]
  %v1204 = vld [vmem:[%s3 + $0x28] sm:$0xff]
  %v1205 = vld [vmem:[%s3 + $0x30] sm:$0xff]
  %v1206 = vld [vmem:[%s3 + $0x38] sm:$0xff]
  %v1207 = vld [vmem:[%s3 + $0x40] sm:$0xff]
  %v1208 = vld [vmem:[%s3 + $0x48] sm:$0xff]
  %v1209 = vld [vmem:[%s3 + $0x50] sm:$0xff]
  %v1210 = vld [vmem:[%s3 + $0x58] sm:$0xff]
  %v1211 = vld [vmem:[%s3 + $0x60] sm:$0xff]
  %v1212 = vld [vmem:[%s3 + $0x68] sm:$0xff]
  %v1213 = vld [vmem:[%s3 + $0x70] sm:$0xff]
  %v1214 = vld [vmem:[%s3 + $0x78] sm:$0xff]
  %v1215 = vld [vmem:[%s3 + $0x80] sm:$0xff]
  %v1216 = vld [vmem:[%s3 + $0x88] sm:$0xff]
  %v1217 = vld [vmem:[%s3 + $0x90] sm:$0xff]
  %v1218 = vld [vmem:[%s3 + $0x98] sm:$0xff]
  %v1219 = vld [vmem:[%s3 + $0xa0] sm:$0xff]
  %v1220 = vld [vmem:[%s3 + $0xa8] sm:$0xff]
  %v1221 = vld [vmem:[%s3 + $0xb0] sm:$0xff]
  %v1222 = vld [vmem:[%s3 + $0xb8] sm:$0xff]
  %v1223 = vld [vmem:[%s3 + $0xc0] sm:$0xff]
  %v1224 = vld [vmem:[%s3 + $0xc8] sm:$0xff]
  %v1225 = vld [vmem:[%s3 + $0xd0] sm:$0xff]
  %v1226 = vld [vmem:[%s3 + $0xd8] sm:$0xff]
  %v1227 = vld [vmem:[%s3 + $0xe0] sm:$0xff]
  %v1228 = vld [vmem:[%s3 + $0xe8] sm:$0xff]
  %v1229 = vld [vmem:[%s3 + $0xf0] sm:$0xff]
  %v1230 = vld [vmem:[%s3 + $0xf8] sm:$0xf]
  %v1231 = vunpack.c.l.bf16 %v1199
  %v1232 = vunpack.c.h.bf16 %v1199
  %v1233 = vunpack.c.l.bf16 %v1200
  %v1234 = vunpack.c.h.bf16 %v1200
  %v1235 = vunpack.c.l.bf16 %v1201
  %v1236 = vunpack.c.h.bf16 %v1201
  %v1237 = vunpack.c.l.bf16 %v1202
  %v1238 = vunpack.c.h.bf16 %v1202
  %v1239 = vunpack.c.l.bf16 %v1203
  %v1240 = vunpack.c.h.bf16 %v1203
  %v1241 = vunpack.c.l.bf16 %v1204
  %v1242 = vunpack.c.h.bf16 %v1204
  %v1243 = vunpack.c.l.bf16 %v1205
  %v1244 = vunpack.c.h.bf16 %v1205
  %v1245 = vunpack.c.l.bf16 %v1206
  %v1246 = vunpack.c.h.bf16 %v1206
  %v1247 = vunpack.c.l.bf16 %v1207
  %v1248 = vunpack.c.h.bf16 %v1207
  %v1249 = vunpack.c.l.bf16 %v1208
  %v1250 = vunpack.c.h.bf16 %v1208
  %v1251 = vunpack.c.l.bf16 %v1209
  %v1252 = vunpack.c.h.bf16 %v1209
  %v1253 = vunpack.c.l.bf16 %v1210
  %v1254 = vunpack.c.h.bf16 %v1210
  %v1255 = vunpack.c.l.bf16 %v1211
  %v1256 = vunpack.c.h.bf16 %v1211
  %v1257 = vunpack.c.l.bf16 %v1212
  %v1258 = vunpack.c.h.bf16 %v1212
  %v1259 = vunpack.c.l.bf16 %v1213
  %v1260 = vunpack.c.h.bf16 %v1213
  %v1261 = vunpack.c.l.bf16 %v1214
  %v1262 = vunpack.c.h.bf16 %v1214
  %v1263 = vunpack.c.l.bf16 %v1215
  %v1264 = vunpack.c.h.bf16 %v1215
  %v1265 = vunpack.c.l.bf16 %v1216
  %v1266 = vunpack.c.h.bf16 %v1216
  %v1267 = vunpack.c.l.bf16 %v1217
  %v1268 = vunpack.c.h.bf16 %v1217
  %v1269 = vunpack.c.l.bf16 %v1218
  %v1270 = vunpack.c.h.bf16 %v1218
  %v1271 = vunpack.c.l.bf16 %v1219
  %v1272 = vunpack.c.h.bf16 %v1219
  %v1273 = vunpack.c.l.bf16 %v1220
  %v1274 = vunpack.c.h.bf16 %v1220
  %v1275 = vunpack.c.l.bf16 %v1221
  %v1276 = vunpack.c.h.bf16 %v1221
  %v1277 = vunpack.c.l.bf16 %v1222
  %v1278 = vunpack.c.h.bf16 %v1222
  %v1279 = vunpack.c.l.bf16 %v1223
  %v1280 = vunpack.c.h.bf16 %v1223
  %v1281 = vunpack.c.l.bf16 %v1224
  %v1282 = vunpack.c.h.bf16 %v1224
  %v1283 = vunpack.c.l.bf16 %v1225
  %v1284 = vunpack.c.h.bf16 %v1225
  %v1285 = vunpack.c.l.bf16 %v1226
  %v1286 = vunpack.c.h.bf16 %v1226
  %v1287 = vunpack.c.l.bf16 %v1227
  %v1288 = vunpack.c.h.bf16 %v1227
  %v1289 = vunpack.c.l.bf16 %v1228
  %v1290 = vunpack.c.h.bf16 %v1228
  %v1291 = vunpack.c.l.bf16 %v1229
  %v1292 = vunpack.c.h.bf16 %v1229
  %v1293 = vunpack.c.l.bf16 %v1230
  %v1294 = vld [vmem:[%s6] sm:$0xff]
  %v1295 = vld [vmem:[%s6 + $0x8] sm:$0xff]
  %v1296 = vld [vmem:[%s6 + $0x10] sm:$0xff]
  %v1297 = vld [vmem:[%s6 + $0x18] sm:$0xff]
  %v1298 = vld [vmem:[%s6 + $0x20] sm:$0xff]
  %v1299 = vld [vmem:[%s6 + $0x28] sm:$0xff]
  %v1300 = vld [vmem:[%s6 + $0x30] sm:$0xff]
  %v1301 = vld [vmem:[%s6 + $0x38] sm:$0xff]
  %v1302 = vld [vmem:[%s6 + $0x40] sm:$0xff]
  %v1303 = vld [vmem:[%s6 + $0x48] sm:$0xff]
  %v1304 = vld [vmem:[%s6 + $0x50] sm:$0xff]
  %v1305 = vld [vmem:[%s6 + $0x58] sm:$0xff]
  %v1306 = vld [vmem:[%s6 + $0x60] sm:$0xff]
  %v1307 = vld [vmem:[%s6 + $0x68] sm:$0xff]
  %v1308 = vld [vmem:[%s6 + $0x70] sm:$0xff]
  %v1309 = vld [vmem:[%s6 + $0x78] sm:$0xff]
  %v1310 = vld [vmem:[%s6 + $0x80] sm:$0xff]
  %v1311 = vld [vmem:[%s6 + $0x88] sm:$0xff]
  %v1312 = vld [vmem:[%s6 + $0x90] sm:$0xff]
  %v1313 = vld [vmem:[%s6 + $0x98] sm:$0xff]
  %v1314 = vld [vmem:[%s6 + $0xa0] sm:$0xff]
  %v1315 = vld [vmem:[%s6 + $0xa8] sm:$0xff]
  %v1316 = vld [vmem:[%s6 + $0xb0] sm:$0xff]
  %v1317 = vld [vmem:[%s6 + $0xb8] sm:$0xff]
  %v1318 = vld [vmem:[%s6 + $0xc0] sm:$0xff]
  %v1319 = vld [vmem:[%s6 + $0xc8] sm:$0xff]
  %v1320 = vld [vmem:[%s6 + $0xd0] sm:$0xff]
  %v1321 = vld [vmem:[%s6 + $0xd8] sm:$0xff]
  %v1322 = vld [vmem:[%s6 + $0xe0] sm:$0xff]
  %v1323 = vld [vmem:[%s6 + $0xe8] sm:$0xff]
  %v1324 = vld [vmem:[%s6 + $0xf0] sm:$0xff]
  %v1325 = vld [vmem:[%s6 + $0xf8] sm:$0xff]
  %v1326 = vld [vmem:[%s6 + $0x100] sm:$0xff]
  %v1327 = vld [vmem:[%s6 + $0x108] sm:$0xff]
  %v1328 = vld [vmem:[%s6 + $0x110] sm:$0xff]
  %v1329 = vld [vmem:[%s6 + $0x118] sm:$0xff]
  %v1330 = vld [vmem:[%s6 + $0x120] sm:$0xff]
  %v1331 = vld [vmem:[%s6 + $0x128] sm:$0xff]
  %v1332 = vld [vmem:[%s6 + $0x130] sm:$0xff]
  %v1333 = vld [vmem:[%s6 + $0x138] sm:$0xff]
  %v1334 = vld [vmem:[%s6 + $0x140] sm:$0xff]
  %v1335 = vld [vmem:[%s6 + $0x148] sm:$0xff]
  %v1336 = vld [vmem:[%s6 + $0x150] sm:$0xff]
  %v1337 = vld [vmem:[%s6 + $0x158] sm:$0xff]
  %v1338 = vld [vmem:[%s6 + $0x160] sm:$0xff]
  %v1339 = vld [vmem:[%s6 + $0x168] sm:$0xff]
  %v1340 = vld [vmem:[%s6 + $0x170] sm:$0xff]
  %v1341 = vld [vmem:[%s6 + $0x178] sm:$0xff]
  %v1342 = vld [vmem:[%s6 + $0x180] sm:$0xff]
  %v1343 = vld [vmem:[%s6 + $0x188] sm:$0xff]
  %v1344 = vld [vmem:[%s6 + $0x190] sm:$0xff]
  %v1345 = vld [vmem:[%s6 + $0x198] sm:$0xff]
  %v1346 = vld [vmem:[%s6 + $0x1a0] sm:$0xff]
  %v1347 = vld [vmem:[%s6 + $0x1a8] sm:$0xff]
  %v1348 = vld [vmem:[%s6 + $0x1b0] sm:$0xff]
  %v1349 = vld [vmem:[%s6 + $0x1b8] sm:$0xff]
  %v1350 = vld [vmem:[%s6 + $0x1c0] sm:$0xff]
  %v1351 = vld [vmem:[%s6 + $0x1c8] sm:$0xff]
  %v1352 = vld [vmem:[%s6 + $0x1d0] sm:$0xff]
  %v1353 = vld [vmem:[%s6 + $0x1d8] sm:$0xff]
  %v1354 = vld [vmem:[%s6 + $0x1e0] sm:$0xff]
  %v1355 = vld [vmem:[%s6 + $0x1e8] sm:$0xff]
  %v1356 = vld [vmem:[%s6 + $0x1f0] sm:$0xff]
  %v1357 = vld [vmem:[%s6 + $0x1f8] sm:$0xff]
  %v1358 = vld [vmem:[%s6 + $0x200] sm:$0xff]
  %v1359 = vld [vmem:[%s6 + $0x208] sm:$0xff]
  %v1360 = vld [vmem:[%s6 + $0x210] sm:$0xff]
  %v1361 = vld [vmem:[%s6 + $0x218] sm:$0xff]
  %v1362 = vld [vmem:[%s6 + $0x220] sm:$0xff]
  %v1363 = vld [vmem:[%s6 + $0x228] sm:$0xff]
  %v1364 = vld [vmem:[%s6 + $0x230] sm:$0xff]
  %v1365 = vld [vmem:[%s6 + $0x238] sm:$0xff]
  %v1366 = vld [vmem:[%s6 + $0x240] sm:$0xff]
  %v1367 = vld [vmem:[%s6 + $0x248] sm:$0xff]
  %v1368 = vld [vmem:[%s6 + $0x250] sm:$0xff]
  %v1369 = vld [vmem:[%s6 + $0x258] sm:$0xff]
  %v1370 = vld [vmem:[%s6 + $0x260] sm:$0xff]
  %v1371 = vld [vmem:[%s6 + $0x268] sm:$0xff]
  %v1372 = vld [vmem:[%s6 + $0x270] sm:$0xff]
  %v1373 = vld [vmem:[%s6 + $0x278] sm:$0xff]
  %v1374 = vld [vmem:[%s6 + $0x280] sm:$0xff]
  %v1375 = vld [vmem:[%s6 + $0x288] sm:$0xff]
  %v1376 = vld [vmem:[%s6 + $0x290] sm:$0xff]
  %v1377 = vld [vmem:[%s6 + $0x298] sm:$0xff]
  %v1378 = vld [vmem:[%s6 + $0x2a0] sm:$0xff]
  %v1379 = vld [vmem:[%s6 + $0x2a8] sm:$0xff]
  %v1380 = vld [vmem:[%s6 + $0x2b0] sm:$0xff]
  %v1381 = vld [vmem:[%s6 + $0x2b8] sm:$0xff]
  %v1382 = vld [vmem:[%s6 + $0x2c0] sm:$0xff]
  %v1383 = vld [vmem:[%s6 + $0x2c8] sm:$0xff]
  %v1384 = vld [vmem:[%s6 + $0x2d0] sm:$0xff]
  %v1385 = vld [vmem:[%s6 + $0x2d8] sm:$0xff]
  %v1386 = vld [vmem:[%s6 + $0x2e0] sm:$0xff]
  %v1387 = vld [vmem:[%s6 + $0x2e8] sm:$0xff]
  %v1388 = vld [vmem:[%s6 + $0x2f0] sm:$0xff]
  %v1389 = vld [vmem:[%s6 + $0x2f8] sm:$0xff]
  %v1390 = vld [vmem:[%s6 + $0x300] sm:$0xff]
  %v1391 = vld [vmem:[%s6 + $0x308] sm:$0xff]
  %v1392 = vld [vmem:[%s6 + $0x310] sm:$0xff]
  %v1393 = vld [vmem:[%s6 + $0x318] sm:$0xff]
  %v1394 = vld [vmem:[%s6 + $0x320] sm:$0xff]
  %v1395 = vld [vmem:[%s6 + $0x328] sm:$0xff]
  %v1396 = vld [vmem:[%s6 + $0x330] sm:$0xff]
  %v1397 = vld [vmem:[%s6 + $0x338] sm:$0xff]
  %v1398 = vld [vmem:[%s6 + $0x340] sm:$0xff]
  %v1399 = vld [vmem:[%s6 + $0x348] sm:$0xff]
  %v1400 = vld [vmem:[%s6 + $0x350] sm:$0xff]
  %v1401 = vld [vmem:[%s6 + $0x358] sm:$0xff]
  %v1402 = vld [vmem:[%s6 + $0x360] sm:$0xff]
  %v1403 = vld [vmem:[%s6 + $0x368] sm:$0xff]
  %v1404 = vld [vmem:[%s6 + $0x370] sm:$0xff]
  %v1405 = vld [vmem:[%s6 + $0x378] sm:$0xff]
  %v1406 = vld [vmem:[%s6 + $0x380] sm:$0xff]
  %v1407 = vld [vmem:[%s6 + $0x388] sm:$0xff]
  %v1408 = vld [vmem:[%s6 + $0x390] sm:$0xff]
  %v1409 = vld [vmem:[%s6 + $0x398] sm:$0xff]
  %v1410 = vld [vmem:[%s6 + $0x3a0] sm:$0xff]
  %v1411 = vld [vmem:[%s6 + $0x3a8] sm:$0xff]
  %v1412 = vld [vmem:[%s6 + $0x3b0] sm:$0xff]
  %v1413 = vld [vmem:[%s6 + $0x3b8] sm:$0xff]
  %v1414 = vld [vmem:[%s6 + $0x3c0] sm:$0xff]
  %v1415 = vld [vmem:[%s6 + $0x3c8] sm:$0xff]
  %v1416 = vld [vmem:[%s6 + $0x3d0] sm:$0xff]
  %v1417 = vld [vmem:[%s6 + $0x3d8] sm:$0xff]
  %v1418 = vld [vmem:[%s6 + $0x3e0] sm:$0xff]
  %v1419 = vld [vmem:[%s6 + $0x3e8] sm:$0xff]
  %v1420 = vld [vmem:[%s6 + $0x3f0] sm:$0xff]
  %v1421 = vld [vmem:[%s6 + $0x3f8] sm:$0xff]
  %v1422 = vld [vmem:[%s6 + $0x400] sm:$0xff]
  %v1423 = vld [vmem:[%s6 + $0x408] sm:$0xff]
  %v1424 = vld [vmem:[%s6 + $0x410] sm:$0xff]
  %v1425 = vld [vmem:[%s6 + $0x418] sm:$0xff]
  %v1426 = vld [vmem:[%s6 + $0x420] sm:$0xff]
  %v1427 = vld [vmem:[%s6 + $0x428] sm:$0xff]
  %v1428 = vld [vmem:[%s6 + $0x430] sm:$0xff]
  %v1429 = vld [vmem:[%s6 + $0x438] sm:$0xff]
  %v1430 = vld [vmem:[%s6 + $0x440] sm:$0xff]
  %v1431 = vld [vmem:[%s6 + $0x448] sm:$0xff]
  %v1432 = vld [vmem:[%s6 + $0x450] sm:$0xff]
  %v1433 = vld [vmem:[%s6 + $0x458] sm:$0xff]
  %v1434 = vld [vmem:[%s6 + $0x460] sm:$0xff]
  %v1435 = vld [vmem:[%s6 + $0x468] sm:$0xff]
  %v1436 = vld [vmem:[%s6 + $0x470] sm:$0xff]
  %v1437 = vld [vmem:[%s6 + $0x478] sm:$0xff]
  %v1438 = vld [vmem:[%s6 + $0x480] sm:$0xff]
  %v1439 = vld [vmem:[%s6 + $0x488] sm:$0xff]
  %v1440 = vld [vmem:[%s6 + $0x490] sm:$0xff]
  %v1441 = vld [vmem:[%s6 + $0x498] sm:$0xff]
  %v1442 = vld [vmem:[%s6 + $0x4a0] sm:$0xff]
  %v1443 = vld [vmem:[%s6 + $0x4a8] sm:$0xff]
  %v1444 = vld [vmem:[%s6 + $0x4b0] sm:$0xff]
  %v1445 = vld [vmem:[%s6 + $0x4b8] sm:$0xff]
  %v1446 = vld [vmem:[%s6 + $0x4c0] sm:$0xff]
  %v1447 = vld [vmem:[%s6 + $0x4c8] sm:$0xff]
  %v1448 = vld [vmem:[%s6 + $0x4d0] sm:$0xff]
  %v1449 = vld [vmem:[%s6 + $0x4d8] sm:$0xff]
  %v1450 = vld [vmem:[%s6 + $0x4e0] sm:$0xff]
  %v1451 = vld [vmem:[%s6 + $0x4e8] sm:$0xff]
  %v1452 = vld [vmem:[%s6 + $0x4f0] sm:$0xff]
  %v1453 = vld [vmem:[%s6 + $0x4f8] sm:$0xff]
  %v1454 = vld [vmem:[%s6 + $0x500] sm:$0xff]
  %v1455 = vld [vmem:[%s6 + $0x508] sm:$0xff]
  %v1456 = vld [vmem:[%s6 + $0x510] sm:$0xff]
  %v1457 = vld [vmem:[%s6 + $0x518] sm:$0xff]
  %v1458 = vld [vmem:[%s6 + $0x520] sm:$0xff]
  %v1459 = vld [vmem:[%s6 + $0x528] sm:$0xff]
  %v1460 = vld [vmem:[%s6 + $0x530] sm:$0xff]
  %v1461 = vld [vmem:[%s6 + $0x538] sm:$0xff]
  %v1462 = vld [vmem:[%s6 + $0x540] sm:$0xff]
  %v1463 = vld [vmem:[%s6 + $0x548] sm:$0xff]
  %v1464 = vld [vmem:[%s6 + $0x550] sm:$0xff]
  %v1465 = vld [vmem:[%s6 + $0x558] sm:$0xff]
  %v1466 = vld [vmem:[%s6 + $0x560] sm:$0xff]
  %v1467 = vld [vmem:[%s6 + $0x568] sm:$0xff]
  %v1468 = vld [vmem:[%s6 + $0x570] sm:$0xff]
  %v1469 = vld [vmem:[%s6 + $0x578] sm:$0xff]
  %v1470 = vld [vmem:[%s6 + $0x580] sm:$0xff]
  %v1471 = vld [vmem:[%s6 + $0x588] sm:$0xff]
  %v1472 = vld [vmem:[%s6 + $0x590] sm:$0xff]
  %v1473 = vld [vmem:[%s6 + $0x598] sm:$0xff]
  %v1474 = vld [vmem:[%s6 + $0x5a0] sm:$0xff]
  %v1475 = vld [vmem:[%s6 + $0x5a8] sm:$0xff]
  %v1476 = vld [vmem:[%s6 + $0x5b0] sm:$0xff]
  %v1477 = vld [vmem:[%s6 + $0x5b8] sm:$0xff]
  %v1478 = vld [vmem:[%s6 + $0x5c0] sm:$0xff]
  %v1479 = vld [vmem:[%s6 + $0x5c8] sm:$0xff]
  %v1480 = vld [vmem:[%s6 + $0x5d0] sm:$0xff]
  %v1481 = vld [vmem:[%s6 + $0x5d8] sm:$0xff]
  %v1482 = vld [vmem:[%s6 + $0x5e0] sm:$0xff]
  %v1483 = vld [vmem:[%s6 + $0x5e8] sm:$0xff]
  %v1484 = vld [vmem:[%s6 + $0x5f0] sm:$0xff]
  %v1485 = vld [vmem:[%s6 + $0x5f8] sm:$0xff]
  %v1486 = vld [vmem:[%s6 + $0x600] sm:$0xff]
  %v1487 = vld [vmem:[%s6 + $0x608] sm:$0xff]
  %v1488 = vld [vmem:[%s6 + $0x610] sm:$0xff]
  %v1489 = vld [vmem:[%s6 + $0x618] sm:$0xff]
  %v1490 = vld [vmem:[%s6 + $0x620] sm:$0xff]
  %v1491 = vld [vmem:[%s6 + $0x628] sm:$0xff]
  %v1492 = vld [vmem:[%s6 + $0x630] sm:$0xff]
  %v1493 = vld [vmem:[%s6 + $0x638] sm:$0xff]
  %v1494 = vld [vmem:[%s6 + $0x640] sm:$0xff]
  %v1495 = vld [vmem:[%s6 + $0x648] sm:$0xff]
  %v1496 = vld [vmem:[%s6 + $0x650] sm:$0xff]
  %v1497 = vld [vmem:[%s6 + $0x658] sm:$0xff]
  %v1498 = vld [vmem:[%s6 + $0x660] sm:$0xff]
  %v1499 = vld [vmem:[%s6 + $0x668] sm:$0xff]
  %v1500 = vld [vmem:[%s6 + $0x670] sm:$0xff]
  %v1501 = vld [vmem:[%s6 + $0x678] sm:$0xff]
  %v1502 = vld [vmem:[%s6 + $0x680] sm:$0xff]
  %v1503 = vld [vmem:[%s6 + $0x688] sm:$0xff]
  %v1504 = vld [vmem:[%s6 + $0x690] sm:$0xff]
  %v1505 = vld [vmem:[%s6 + $0x698] sm:$0xff]
  %v1506 = vld [vmem:[%s6 + $0x6a0] sm:$0xff]
  %v1507 = vld [vmem:[%s6 + $0x6a8] sm:$0xff]
  %v1508 = vld [vmem:[%s6 + $0x6b0] sm:$0xff]
  %v1509 = vld [vmem:[%s6 + $0x6b8] sm:$0xff]
  %v1510 = vld [vmem:[%s6 + $0x6c0] sm:$0xff]
  %v1511 = vld [vmem:[%s6 + $0x6c8] sm:$0xff]
  %v1512 = vld [vmem:[%s6 + $0x6d0] sm:$0xff]
  %v1513 = vld [vmem:[%s6 + $0x6d8] sm:$0xff]
  %v1514 = vld [vmem:[%s6 + $0x6e0] sm:$0xff]
  %v1515 = vld [vmem:[%s6 + $0x6e8] sm:$0xff]
  %v1516 = vld [vmem:[%s6 + $0x6f0] sm:$0xff]
  %v1517 = vld [vmem:[%s6 + $0x6f8] sm:$0xff]
  %v1518 = vld [vmem:[%s6 + $0x700] sm:$0xff]
  %v1519 = vld [vmem:[%s6 + $0x708] sm:$0xff]
  %v1520 = vld [vmem:[%s6 + $0x710] sm:$0xff]
  %v1521 = vld [vmem:[%s6 + $0x718] sm:$0xff]
  %v1522 = vld [vmem:[%s6 + $0x720] sm:$0xff]
  %v1523 = vld [vmem:[%s6 + $0x728] sm:$0xff]
  %v1524 = vld [vmem:[%s6 + $0x730] sm:$0xff]
  %v1525 = vld [vmem:[%s6 + $0x738] sm:$0xff]
  %v1526 = vld [vmem:[%s6 + $0x740] sm:$0xff]
  %v1527 = vld [vmem:[%s6 + $0x748] sm:$0xff]
  %v1528 = vld [vmem:[%s6 + $0x750] sm:$0xff]
  %v1529 = vld [vmem:[%s6 + $0x758] sm:$0xff]
  %v1530 = vld [vmem:[%s6 + $0x760] sm:$0xff]
  %v1531 = vld [vmem:[%s6 + $0x768] sm:$0xff]
  %v1532 = vld [vmem:[%s6 + $0x770] sm:$0xff]
  %v1533 = vld [vmem:[%s6 + $0x778] sm:$0xff]
  %v1534 = vld [vmem:[%s6 + $0x780] sm:$0xff]
  %v1535 = vld [vmem:[%s6 + $0x788] sm:$0xff]
  %v1536 = vld [vmem:[%s6 + $0x790] sm:$0xff]
  %v1537 = vld [vmem:[%s6 + $0x798] sm:$0xff]
  %v1538 = vld [vmem:[%s6 + $0x7a0] sm:$0xff]
  %v1539 = vld [vmem:[%s6 + $0x7a8] sm:$0xff]
  %v1540 = vld [vmem:[%s6 + $0x7b0] sm:$0xff]
  %v1541 = vld [vmem:[%s6 + $0x7b8] sm:$0xff]
  %v1542 = vld [vmem:[%s6 + $0x7c0] sm:$0xff]
  %v1543 = vld [vmem:[%s6 + $0x7c8] sm:$0xff]
  %v1544 = vld [vmem:[%s6 + $0x7d0] sm:$0xff]
  %v1545 = vld [vmem:[%s6 + $0x7d8] sm:$0xff]
  %v1546 = vld [vmem:[%s6 + $0x7e0] sm:$0xff]
  %v1547 = vld [vmem:[%s6 + $0x7e8] sm:$0xff]
  %v1548 = vld [vmem:[%s6 + $0x7f0] sm:$0xff]
  %v1549 = vld [vmem:[%s6 + $0x7f8] sm:$0xff]
  %v1550 = vld [vmem:[%s6 + $0x800] sm:$0xff]
  %v1551 = vld [vmem:[%s6 + $0x808] sm:$0xff]
  %v1552 = vld [vmem:[%s6 + $0x810] sm:$0xff]
  %v1553 = vld [vmem:[%s6 + $0x818] sm:$0xff]
  %v1554 = vld [vmem:[%s6 + $0x820] sm:$0xff]
  %v1555 = vld [vmem:[%s6 + $0x828] sm:$0xff]
  %v1556 = vld [vmem:[%s6 + $0x830] sm:$0xff]
  %v1557 = vld [vmem:[%s6 + $0x838] sm:$0xff]
  %v1558 = vld [vmem:[%s6 + $0x840] sm:$0xff]
  %v1559 = vld [vmem:[%s6 + $0x848] sm:$0xff]
  %v1560 = vld [vmem:[%s6 + $0x850] sm:$0xff]
  %v1561 = vld [vmem:[%s6 + $0x858] sm:$0xff]
  %v1562 = vld [vmem:[%s6 + $0x860] sm:$0xff]
  %v1563 = vld [vmem:[%s6 + $0x868] sm:$0xff]
  %v1564 = vld [vmem:[%s6 + $0x870] sm:$0xff]
  %v1565 = vld [vmem:[%s6 + $0x878] sm:$0xff]
  %v1566 = vld [vmem:[%s6 + $0x880] sm:$0xff]
  %v1567 = vld [vmem:[%s6 + $0x888] sm:$0xff]
  %v1568 = vld [vmem:[%s6 + $0x890] sm:$0xff]
  %v1569 = vld [vmem:[%s6 + $0x898] sm:$0xff]
  %v1570 = vld [vmem:[%s6 + $0x8a0] sm:$0xff]
  %v1571 = vld [vmem:[%s6 + $0x8a8] sm:$0xff]
  %v1572 = vld [vmem:[%s6 + $0x8b0] sm:$0xff]
  %v1573 = vld [vmem:[%s6 + $0x8b8] sm:$0xff]
  %v1574 = vld [vmem:[%s6 + $0x8c0] sm:$0xff]
  %v1575 = vld [vmem:[%s6 + $0x8c8] sm:$0xff]
  %v1576 = vld [vmem:[%s6 + $0x8d0] sm:$0xff]
  %v1577 = vld [vmem:[%s6 + $0x8d8] sm:$0xff]
  %v1578 = vld [vmem:[%s6 + $0x8e0] sm:$0xff]
  %v1579 = vld [vmem:[%s6 + $0x8e8] sm:$0xff]
  %v1580 = vld [vmem:[%s6 + $0x8f0] sm:$0xff]
  %v1581 = vld [vmem:[%s6 + $0x8f8] sm:$0xff]
  %v1582 = vld [vmem:[%s6 + $0x900] sm:$0xff]
  %v1583 = vld [vmem:[%s6 + $0x908] sm:$0xff]
  %v1584 = vld [vmem:[%s6 + $0x910] sm:$0xff]
  %v1585 = vld [vmem:[%s6 + $0x918] sm:$0xff]
  %v1586 = vld [vmem:[%s6 + $0x920] sm:$0xff]
  %v1587 = vld [vmem:[%s6 + $0x928] sm:$0xff]
  %v1588 = vld [vmem:[%s6 + $0x930] sm:$0xff]
  %v1589 = vld [vmem:[%s6 + $0x938] sm:$0xff]
  %v1590 = vld [vmem:[%s6 + $0x940] sm:$0xff]
  %v1591 = vld [vmem:[%s6 + $0x948] sm:$0xff]
  %v1592 = vld [vmem:[%s6 + $0x950] sm:$0xff]
  %v1593 = vld [vmem:[%s6 + $0x958] sm:$0xff]
  %v1594 = vld [vmem:[%s6 + $0x960] sm:$0xff]
  %v1595 = vld [vmem:[%s6 + $0x968] sm:$0xff]
  %v1596 = vld [vmem:[%s6 + $0x970] sm:$0xff]
  %v1597 = vld [vmem:[%s6 + $0x978] sm:$0xff]
  %v1598 = vld [vmem:[%s6 + $0x980] sm:$0xff]
  %v1599 = vld [vmem:[%s6 + $0x988] sm:$0xff]
  %v1600 = vld [vmem:[%s6 + $0x990] sm:$0xff]
  %v1601 = vld [vmem:[%s6 + $0x998] sm:$0xff]
  %v1602 = vld [vmem:[%s6 + $0x9a0] sm:$0xff]
  %v1603 = vld [vmem:[%s6 + $0x9a8] sm:$0xff]
  %v1604 = vld [vmem:[%s6 + $0x9b0] sm:$0xff]
  %v1605 = vld [vmem:[%s6 + $0x9b8] sm:$0xff]
  %v1606 = vld [vmem:[%s6 + $0x9c0] sm:$0xff]
  %v1607 = vld [vmem:[%s6 + $0x9c8] sm:$0xff]
  %v1608 = vld [vmem:[%s6 + $0x9d0] sm:$0xff]
  %v1609 = vld [vmem:[%s6 + $0x9d8] sm:$0xff]
  %v1610 = vld [vmem:[%s6 + $0x9e0] sm:$0xff]
  %v1611 = vld [vmem:[%s6 + $0x9e8] sm:$0xff]
  %v1612 = vld [vmem:[%s6 + $0x9f0] sm:$0xff]
  %v1613 = vld [vmem:[%s6 + $0x9f8] sm:$0xff]
  %v1614 = vld [vmem:[%s6 + $0xa00] sm:$0xff]
  %v1615 = vld [vmem:[%s6 + $0xa08] sm:$0xff]
  %v1616 = vld [vmem:[%s6 + $0xa10] sm:$0xff]
  %v1617 = vld [vmem:[%s6 + $0xa18] sm:$0xff]
  %v1618 = vld [vmem:[%s6 + $0xa20] sm:$0xff]
  %v1619 = vld [vmem:[%s6 + $0xa28] sm:$0xff]
  %v1620 = vld [vmem:[%s6 + $0xa30] sm:$0xff]
  %v1621 = vld [vmem:[%s6 + $0xa38] sm:$0xff]
  %v1622 = vld [vmem:[%s6 + $0xa40] sm:$0xff]
  %v1623 = vld [vmem:[%s6 + $0xa48] sm:$0xff]
  %v1624 = vld [vmem:[%s6 + $0xa50] sm:$0xff]
  %v1625 = vld [vmem:[%s6 + $0xa58] sm:$0xff]
  %v1626 = vld [vmem:[%s6 + $0xa60] sm:$0xff]
  %v1627 = vld [vmem:[%s6 + $0xa68] sm:$0xff]
  %v1628 = vld [vmem:[%s6 + $0xa70] sm:$0xff]
  %v1629 = vld [vmem:[%s6 + $0xa78] sm:$0xff]
  %v1630 = vld [vmem:[%s6 + $0xa80] sm:$0xff]
  %v1631 = vld [vmem:[%s6 + $0xa88] sm:$0xff]
  %v1632 = vld [vmem:[%s6 + $0xa90] sm:$0xff]
  %v1633 = vld [vmem:[%s6 + $0xa98] sm:$0xff]
  %v1634 = vld [vmem:[%s6 + $0xaa0] sm:$0xff]
  %v1635 = vld [vmem:[%s6 + $0xaa8] sm:$0xff]
  %v1636 = vld [vmem:[%s6 + $0xab0] sm:$0xff]
  %v1637 = vld [vmem:[%s6 + $0xab8] sm:$0xff]
  %v1638 = vld [vmem:[%s6 + $0xac0] sm:$0xff]
  %v1639 = vld [vmem:[%s6 + $0xac8] sm:$0xff]
  %v1640 = vld [vmem:[%s6 + $0xad0] sm:$0xff]
  %v1641 = vld [vmem:[%s6 + $0xad8] sm:$0xff]
  %v1642 = vld [vmem:[%s6 + $0xae0] sm:$0xff]
  %v1643 = vld [vmem:[%s6 + $0xae8] sm:$0xff]
  %v1644 = vld [vmem:[%s6 + $0xaf0] sm:$0xff]
  %v1645 = vld [vmem:[%s6 + $0xaf8] sm:$0xff]
  %v1646 = vld [vmem:[%s6 + $0xb00] sm:$0xff]
  %v1647 = vld [vmem:[%s6 + $0xb08] sm:$0xff]
  %v1648 = vld [vmem:[%s6 + $0xb10] sm:$0xff]
  %v1649 = vld [vmem:[%s6 + $0xb18] sm:$0xff]
  %v1650 = vld [vmem:[%s6 + $0xb20] sm:$0xff]
  %v1651 = vld [vmem:[%s6 + $0xb28] sm:$0xff]
  %v1652 = vld [vmem:[%s6 + $0xb30] sm:$0xff]
  %v1653 = vld [vmem:[%s6 + $0xb38] sm:$0xff]
  %v1654 = vld [vmem:[%s6 + $0xb40] sm:$0xff]
  %v1655 = vld [vmem:[%s6 + $0xb48] sm:$0xff]
  %v1656 = vld [vmem:[%s6 + $0xb50] sm:$0xff]
  %v1657 = vld [vmem:[%s6 + $0xb58] sm:$0xff]
  %v1658 = vld [vmem:[%s6 + $0xb60] sm:$0xff]
  %v1659 = vld [vmem:[%s6 + $0xb68] sm:$0xff]
  %v1660 = vld [vmem:[%s6 + $0xb70] sm:$0xff]
  %v1661 = vld [vmem:[%s6 + $0xb78] sm:$0xff]
  %v1662 = vld [vmem:[%s6 + $0xb80] sm:$0xff]
  %v1663 = vld [vmem:[%s6 + $0xb88] sm:$0xff]
  %v1664 = vld [vmem:[%s6 + $0xb90] sm:$0xff]
  %v1665 = vld [vmem:[%s6 + $0xb98] sm:$0xff]
  %v1666 = vld [vmem:[%s6 + $0xba0] sm:$0xff]
  %v1667 = vld [vmem:[%s6 + $0xba8] sm:$0xff]
  %v1668 = vld [vmem:[%s6 + $0xbb0] sm:$0xff]
  %v1669 = vld [vmem:[%s6 + $0xbb8] sm:$0xff]
  %v1670 = vld [vmem:[%s6 + $0xbc0] sm:$0xff]
  %v1671 = vld [vmem:[%s6 + $0xbc8] sm:$0xff]
  %v1672 = vld [vmem:[%s6 + $0xbd0] sm:$0xff]
  %v1673 = vld [vmem:[%s6 + $0xbd8] sm:$0xff]
  %v1674 = vld [vmem:[%s6 + $0xbe0] sm:$0xff]
  %v1675 = vld [vmem:[%s6 + $0xbe8] sm:$0xff]
  %v1676 = vld [vmem:[%s6 + $0xbf0] sm:$0xff]
  %v1677 = vld [vmem:[%s6 + $0xbf8] sm:$0xff]
  %v1678 = vld [vmem:[%s6 + $0xc00] sm:$0xff]
  %v1679 = vld [vmem:[%s6 + $0xc08] sm:$0xff]
  %v1680 = vld [vmem:[%s6 + $0xc10] sm:$0xff]
  %v1681 = vld [vmem:[%s6 + $0xc18] sm:$0xff]
  %v1682 = vld [vmem:[%s6 + $0xc20] sm:$0xff]
  %v1683 = vld [vmem:[%s6 + $0xc28] sm:$0xff]
  %v1684 = vld [vmem:[%s6 + $0xc30] sm:$0xff]
  %v1685 = vld [vmem:[%s6 + $0xc38] sm:$0xff]
  %v1686 = vld [vmem:[%s6 + $0xc40] sm:$0xff]
  %v1687 = vld [vmem:[%s6 + $0xc48] sm:$0xff]
  %v1688 = vld [vmem:[%s6 + $0xc50] sm:$0xff]
  %v1689 = vld [vmem:[%s6 + $0xc58] sm:$0xff]
  %v1690 = vld [vmem:[%s6 + $0xc60] sm:$0xff]
  %v1691 = vld [vmem:[%s6 + $0xc68] sm:$0xff]
  %v1692 = vld [vmem:[%s6 + $0xc70] sm:$0xff]
  %v1693 = vld [vmem:[%s6 + $0xc78] sm:$0xff]
  %v1694 = vld [vmem:[%s6 + $0xc80] sm:$0xff]
  %v1695 = vld [vmem:[%s6 + $0xc88] sm:$0xff]
  %v1696 = vld [vmem:[%s6 + $0xc90] sm:$0xff]
  %v1697 = vld [vmem:[%s6 + $0xc98] sm:$0xff]
  %v1698 = vld [vmem:[%s6 + $0xca0] sm:$0xff]
  %v1699 = vld [vmem:[%s6 + $0xca8] sm:$0xff]
  %v1700 = vld [vmem:[%s6 + $0xcb0] sm:$0xff]
  %v1701 = vld [vmem:[%s6 + $0xcb8] sm:$0xff]
  %v1702 = vld [vmem:[%s6 + $0xcc0] sm:$0xff]
  %v1703 = vld [vmem:[%s6 + $0xcc8] sm:$0xff]
  %v1704 = vld [vmem:[%s6 + $0xcd0] sm:$0xff]
  %v1705 = vld [vmem:[%s6 + $0xcd8] sm:$0xff]
  %v1706 = vld [vmem:[%s6 + $0xce0] sm:$0xff]
  %v1707 = vld [vmem:[%s6 + $0xce8] sm:$0xff]
  %v1708 = vld [vmem:[%s6 + $0xcf0] sm:$0xff]
  %v1709 = vld [vmem:[%s6 + $0xcf8] sm:$0xff]
  %v1710 = vld [vmem:[%s6 + $0xd00] sm:$0xff]
  %v1711 = vld [vmem:[%s6 + $0xd08] sm:$0xff]
  %v1712 = vld [vmem:[%s6 + $0xd10] sm:$0xff]
  %v1713 = vld [vmem:[%s6 + $0xd18] sm:$0xff]
  %v1714 = vld [vmem:[%s6 + $0xd20] sm:$0xff]
  %v1715 = vld [vmem:[%s6 + $0xd28] sm:$0xff]
  %v1716 = vld [vmem:[%s6 + $0xd30] sm:$0xff]
  %v1717 = vld [vmem:[%s6 + $0xd38] sm:$0xff]
  %v1718 = vld [vmem:[%s6 + $0xd40] sm:$0xff]
  %v1719 = vld [vmem:[%s6 + $0xd48] sm:$0xff]
  %v1720 = vld [vmem:[%s6 + $0xd50] sm:$0xff]
  %v1721 = vld [vmem:[%s6 + $0xd58] sm:$0xff]
  %v1722 = vld [vmem:[%s6 + $0xd60] sm:$0xff]
  %v1723 = vld [vmem:[%s6 + $0xd68] sm:$0xff]
  %v1724 = vld [vmem:[%s6 + $0xd70] sm:$0xff]
  %v1725 = vld [vmem:[%s6 + $0xd78] sm:$0xff]
  %v1726 = vld [vmem:[%s6 + $0xd80] sm:$0xff]
  %v1727 = vld [vmem:[%s6 + $0xd88] sm:$0xff]
  %v1728 = vld [vmem:[%s6 + $0xd90] sm:$0xff]
  %v1729 = vld [vmem:[%s6 + $0xd98] sm:$0xff]
  %v1730 = vld [vmem:[%s6 + $0xda0] sm:$0xff]
  %v1731 = vld [vmem:[%s6 + $0xda8] sm:$0xff]
  %v1732 = vld [vmem:[%s6 + $0xdb0] sm:$0xff]
  %v1733 = vld [vmem:[%s6 + $0xdb8] sm:$0xff]
  %v1734 = vld [vmem:[%s6 + $0xdc0] sm:$0xff]
  %v1735 = vld [vmem:[%s6 + $0xdc8] sm:$0xff]
  %v1736 = vld [vmem:[%s6 + $0xdd0] sm:$0xff]
  %v1737 = vld [vmem:[%s6 + $0xdd8] sm:$0xff]
  %v1738 = vld [vmem:[%s6 + $0xde0] sm:$0xff]
  %v1739 = vld [vmem:[%s6 + $0xde8] sm:$0xff]
  %v1740 = vld [vmem:[%s6 + $0xdf0] sm:$0xff]
  %v1741 = vld [vmem:[%s6 + $0xdf8] sm:$0xff]
  %v1742 = vld [vmem:[%s6 + $0xe00] sm:$0xff]
  %v1743 = vld [vmem:[%s6 + $0xe08] sm:$0xff]
  %v1744 = vld [vmem:[%s6 + $0xe10] sm:$0xff]
  %v1745 = vld [vmem:[%s6 + $0xe18] sm:$0xff]
  %v1746 = vld [vmem:[%s6 + $0xe20] sm:$0xff]
  %v1747 = vld [vmem:[%s6 + $0xe28] sm:$0xff]
  %v1748 = vld [vmem:[%s6 + $0xe30] sm:$0xff]
  %v1749 = vld [vmem:[%s6 + $0xe38] sm:$0xff]
  %v1750 = vld [vmem:[%s6 + $0xe40] sm:$0xff]
  %v1751 = vld [vmem:[%s6 + $0xe48] sm:$0xff]
  %v1752 = vld [vmem:[%s6 + $0xe50] sm:$0xff]
  %v1753 = vld [vmem:[%s6 + $0xe58] sm:$0xff]
  %v1754 = vld [vmem:[%s6 + $0xe60] sm:$0xff]
  %v1755 = vld [vmem:[%s6 + $0xe68] sm:$0xff]
  %v1756 = vld [vmem:[%s6 + $0xe70] sm:$0xff]
  %v1757 = vld [vmem:[%s6 + $0xe78] sm:$0xff]
  %v1758 = vld [vmem:[%s6 + $0xe80] sm:$0xff]
  %v1759 = vld [vmem:[%s6 + $0xe88] sm:$0xff]
  %v1760 = vld [vmem:[%s6 + $0xe90] sm:$0xff]
  %v1761 = vld [vmem:[%s6 + $0xe98] sm:$0xff]
  %v1762 = vld [vmem:[%s6 + $0xea0] sm:$0xff]
  %v1763 = vld [vmem:[%s6 + $0xea8] sm:$0xff]
  %v1764 = vld [vmem:[%s6 + $0xeb0] sm:$0xff]
  %v1765 = vld [vmem:[%s6 + $0xeb8] sm:$0xff]
  %v1766 = vld [vmem:[%s6 + $0xec0] sm:$0xff]
  %v1767 = vld [vmem:[%s6 + $0xec8] sm:$0xff]
  %v1768 = vld [vmem:[%s6 + $0xed0] sm:$0xff]
  %v1769 = vld [vmem:[%s6 + $0xed8] sm:$0xff]
  %v1770 = vld [vmem:[%s6 + $0xee0] sm:$0xff]
  %v1771 = vld [vmem:[%s6 + $0xee8] sm:$0xff]
  %v1772 = vld [vmem:[%s6 + $0xef0] sm:$0xff]
  %v1773 = vld [vmem:[%s6 + $0xef8] sm:$0xff]
  %v1774 = vld [vmem:[%s6 + $0xf00] sm:$0xff]
  %v1775 = vld [vmem:[%s6 + $0xf08] sm:$0xff]
  %v1776 = vld [vmem:[%s6 + $0xf10] sm:$0xff]
  %v1777 = vld [vmem:[%s6 + $0xf18] sm:$0xff]
  %v1778 = vld [vmem:[%s6 + $0xf20] sm:$0xff]
  %v1779 = vld [vmem:[%s6 + $0xf28] sm:$0xff]
  %v1780 = vld [vmem:[%s6 + $0xf30] sm:$0xff]
  %v1781 = vld [vmem:[%s6 + $0xf38] sm:$0xff]
  %v1782 = vld [vmem:[%s6 + $0xf40] sm:$0xff]
  %v1783 = vld [vmem:[%s6 + $0xf48] sm:$0xff]
  %v1784 = vld [vmem:[%s6 + $0xf50] sm:$0xff]
  %v1785 = vld [vmem:[%s6 + $0xf58] sm:$0xff]
  %v1786 = vld [vmem:[%s6 + $0xf60] sm:$0xff]
  %v1787 = vld [vmem:[%s6 + $0xf68] sm:$0xff]
  %v1788 = vld [vmem:[%s6 + $0xf70] sm:$0xff]
  %v1789 = vld [vmem:[%s6 + $0xf78] sm:$0xff]
  %v1790 = vld [vmem:[%s6 + $0xf80] sm:$0xff]
  %v1791 = vld [vmem:[%s6 + $0xf88] sm:$0xff]
  %v1792 = vld [vmem:[%s6 + $0xf90] sm:$0xff]
  %v1793 = vld [vmem:[%s6 + $0xf98] sm:$0xff]
  %v1794 = vld [vmem:[%s6 + $0xfa0] sm:$0xff]
  %v1795 = vld [vmem:[%s6 + $0xfa8] sm:$0xff]
  %v1796 = vld [vmem:[%s6 + $0xfb0] sm:$0xff]
  %v1797 = vld [vmem:[%s6 + $0xfb8] sm:$0xff]
  %v1798 = vld [vmem:[%s6 + $0xfc0] sm:$0xff]
  %v1799 = vld [vmem:[%s6 + $0xfc8] sm:$0xff]
  %v1800 = vld [vmem:[%s6 + $0xfd0] sm:$0xff]
  %v1801 = vld [vmem:[%s6 + $0xfd8] sm:$0xff]
  %v1802 = vld [vmem:[%s6 + $0xfe0] sm:$0xff]
  %v1803 = vld [vmem:[%s6 + $0xfe8] sm:$0xff]
  %v1804 = vld [vmem:[%s6 + $0xff0] sm:$0xff]
  %v1805 = vld [vmem:[%s6 + $0xff8] sm:$0xff]
  %v1806 = vld [vmem:[%s6 + $0x1000] sm:$0xff]
  %v1807 = vld [vmem:[%s6 + $0x1008] sm:$0xff]
  %v1808 = vld [vmem:[%s6 + $0x1010] sm:$0xff]
  %v1809 = vld [vmem:[%s6 + $0x1018] sm:$0xff]
  %v1810 = vld [vmem:[%s6 + $0x1020] sm:$0xff]
  %v1811 = vld [vmem:[%s6 + $0x1028] sm:$0xff]
  %v1812 = vld [vmem:[%s6 + $0x1030] sm:$0xff]
  %v1813 = vld [vmem:[%s6 + $0x1038] sm:$0xff]
  %v1814 = vld [vmem:[%s6 + $0x1040] sm:$0xff]
  %v1815 = vld [vmem:[%s6 + $0x1048] sm:$0xff]
  %v1816 = vld [vmem:[%s6 + $0x1050] sm:$0xff]
  %v1817 = vld [vmem:[%s6 + $0x1058] sm:$0xff]
  %v1818 = vld [vmem:[%s6 + $0x1060] sm:$0xff]
  %v1819 = vld [vmem:[%s6 + $0x1068] sm:$0xff]
  %v1820 = vld [vmem:[%s6 + $0x1070] sm:$0xff]
  %v1821 = vld [vmem:[%s6 + $0x1078] sm:$0xff]
  %v1822 = vld [vmem:[%s6 + $0x1080] sm:$0xff]
  %v1823 = vld [vmem:[%s6 + $0x1088] sm:$0xff]
  %v1824 = vld [vmem:[%s6 + $0x1090] sm:$0xff]
  %v1825 = vld [vmem:[%s6 + $0x1098] sm:$0xff]
  %v1826 = vld [vmem:[%s6 + $0x10a0] sm:$0xff]
  %v1827 = vld [vmem:[%s6 + $0x10a8] sm:$0xff]
  %v1828 = vld [vmem:[%s6 + $0x10b0] sm:$0xff]
  %v1829 = vld [vmem:[%s6 + $0x10b8] sm:$0xff]
  %v1830 = vld [vmem:[%s6 + $0x10c0] sm:$0xff]
  %v1831 = vld [vmem:[%s6 + $0x10c8] sm:$0xff]
  %v1832 = vld [vmem:[%s6 + $0x10d0] sm:$0xff]
  %v1833 = vld [vmem:[%s6 + $0x10d8] sm:$0xff]
  %v1834 = vld [vmem:[%s6 + $0x10e0] sm:$0xff]
  %v1835 = vld [vmem:[%s6 + $0x10e8] sm:$0xff]
  %v1836 = vld [vmem:[%s6 + $0x10f0] sm:$0xff]
  %v1837 = vld [vmem:[%s6 + $0x10f8] sm:$0xff]
  %v1838 = vld [vmem:[%s6 + $0x1100] sm:$0xff]
  %v1839 = vld [vmem:[%s6 + $0x1108] sm:$0xff]
  %v1840 = vld [vmem:[%s6 + $0x1110] sm:$0xff]
  %v1841 = vld [vmem:[%s6 + $0x1118] sm:$0xff]
  %v1842 = vld [vmem:[%s6 + $0x1120] sm:$0xff]
  %v1843 = vld [vmem:[%s6 + $0x1128] sm:$0xff]
  %v1844 = vld [vmem:[%s6 + $0x1130] sm:$0xff]
  %v1845 = vld [vmem:[%s6 + $0x1138] sm:$0xff]
  %v1846 = vld [vmem:[%s6 + $0x1140] sm:$0xff]
  %v1847 = vld [vmem:[%s6 + $0x1148] sm:$0xff]
  %v1848 = vld [vmem:[%s6 + $0x1150] sm:$0xff]
  %v1849 = vld [vmem:[%s6 + $0x1158] sm:$0xff]
  %v1850 = vld [vmem:[%s6 + $0x1160] sm:$0xff]
  %v1851 = vld [vmem:[%s6 + $0x1168] sm:$0xff]
  %v1852 = vld [vmem:[%s6 + $0x1170] sm:$0xff]
  %v1853 = vld [vmem:[%s6 + $0x1178] sm:$0xff]
  %v1854 = vld [vmem:[%s6 + $0x1180] sm:$0xff]
  %v1855 = vld [vmem:[%s6 + $0x1188] sm:$0xff]
  %v1856 = vld [vmem:[%s6 + $0x1190] sm:$0xff]
  %v1857 = vld [vmem:[%s6 + $0x1198] sm:$0xff]
  %v1858 = vld [vmem:[%s6 + $0x11a0] sm:$0xff]
  %v1859 = vld [vmem:[%s6 + $0x11a8] sm:$0xff]
  %v1860 = vld [vmem:[%s6 + $0x11b0] sm:$0xff]
  %v1861 = vld [vmem:[%s6 + $0x11b8] sm:$0xff]
  %v1862 = vld [vmem:[%s6 + $0x11c0] sm:$0xff]
  %v1863 = vld [vmem:[%s6 + $0x11c8] sm:$0xff]
  %v1864 = vld [vmem:[%s6 + $0x11d0] sm:$0xff]
  %v1865 = vld [vmem:[%s6 + $0x11d8] sm:$0xff]
  %v1866 = vld [vmem:[%s6 + $0x11e0] sm:$0xff]
  %v1867 = vld [vmem:[%s6 + $0x11e8] sm:$0xff]
  %v1868 = vld [vmem:[%s6 + $0x11f0] sm:$0xff]
  %v1869 = vld [vmem:[%s6 + $0x11f8] sm:$0xff]
  %v1870 = vld [vmem:[%s6 + $0x1200] sm:$0xff]
  %v1871 = vld [vmem:[%s6 + $0x1208] sm:$0xff]
  %v1872 = vld [vmem:[%s6 + $0x1210] sm:$0xff]
  %v1873 = vld [vmem:[%s6 + $0x1218] sm:$0xff]
  %v1874 = vld [vmem:[%s6 + $0x1220] sm:$0xff]
  %v1875 = vld [vmem:[%s6 + $0x1228] sm:$0xff]
  %v1876 = vld [vmem:[%s6 + $0x1230] sm:$0xff]
  %v1877 = vld [vmem:[%s6 + $0x1238] sm:$0xff]
  %v1878 = vld [vmem:[%s6 + $0x1240] sm:$0xff]
  %v1879 = vld [vmem:[%s6 + $0x1248] sm:$0xff]
  %v1880 = vld [vmem:[%s6 + $0x1250] sm:$0xff]
  %v1881 = vld [vmem:[%s6 + $0x1258] sm:$0xff]
  %v1882 = vld [vmem:[%s6 + $0x1260] sm:$0xff]
  %v1883 = vld [vmem:[%s6 + $0x1268] sm:$0xff]
  %v1884 = vld [vmem:[%s6 + $0x1270] sm:$0xff]
  %v1885 = vld [vmem:[%s6 + $0x1278] sm:$0xff]
  %v1886 = vld [vmem:[%s6 + $0x1280] sm:$0xff]
  %v1887 = vld [vmem:[%s6 + $0x1288] sm:$0xff]
  %v1888 = vld [vmem:[%s6 + $0x1290] sm:$0xff]
  %v1889 = vld [vmem:[%s6 + $0x1298] sm:$0xff]
  %v1890 = vld [vmem:[%s6 + $0x12a0] sm:$0xff]
  %v1891 = vld [vmem:[%s6 + $0x12a8] sm:$0xff]
  %v1892 = vld [vmem:[%s6 + $0x12b0] sm:$0xff]
  %v1893 = vld [vmem:[%s6 + $0x12b8] sm:$0xff]
  %v1894 = vld [vmem:[%s6 + $0x12c0] sm:$0xff]
  %v1895 = vld [vmem:[%s6 + $0x12c8] sm:$0xff]
  %v1896 = vld [vmem:[%s6 + $0x12d0] sm:$0xff]
  %v1897 = vld [vmem:[%s6 + $0x12d8] sm:$0xff]
  %v1898 = vld [vmem:[%s6 + $0x12e0] sm:$0xff]
  %v1899 = vld [vmem:[%s6 + $0x12e8] sm:$0xff]
  %v1900 = vld [vmem:[%s6 + $0x12f0] sm:$0xff]
  %v1901 = vld [vmem:[%s6 + $0x12f8] sm:$0xff]
  %v1902 = vld [vmem:[%s6 + $0x1300] sm:$0xff]
  %v1903 = vld [vmem:[%s6 + $0x1308] sm:$0xff]
  %v1904 = vld [vmem:[%s6 + $0x1310] sm:$0xff]
  %v1905 = vld [vmem:[%s6 + $0x1318] sm:$0xff]
  %v1906 = vld [vmem:[%s6 + $0x1320] sm:$0xff]
  %v1907 = vld [vmem:[%s6 + $0x1328] sm:$0xff]
  %v1908 = vld [vmem:[%s6 + $0x1330] sm:$0xff]
  %v1909 = vld [vmem:[%s6 + $0x1338] sm:$0xff]
  %v1910 = vld [vmem:[%s6 + $0x1340] sm:$0xff]
  %v1911 = vld [vmem:[%s6 + $0x1348] sm:$0xff]
  %v1912 = vld [vmem:[%s6 + $0x1350] sm:$0xff]
  %v1913 = vld [vmem:[%s6 + $0x1358] sm:$0xff]
  %v1914 = vld [vmem:[%s6 + $0x1360] sm:$0xff]
  %v1915 = vld [vmem:[%s6 + $0x1368] sm:$0xff]
  %v1916 = vld [vmem:[%s6 + $0x1370] sm:$0xff]
  %v1917 = vld [vmem:[%s6 + $0x1378] sm:$0xff]
  %v1918 = vld [vmem:[%s6 + $0x1380] sm:$0xff]
  %v1919 = vld [vmem:[%s6 + $0x1388] sm:$0xff]
  %v1920 = vld [vmem:[%s6 + $0x1390] sm:$0xff]
  %v1921 = vld [vmem:[%s6 + $0x1398] sm:$0xff]
  %v1922 = vld [vmem:[%s6 + $0x13a0] sm:$0xff]
  %v1923 = vld [vmem:[%s6 + $0x13a8] sm:$0xff]
  %v1924 = vld [vmem:[%s6 + $0x13b0] sm:$0xff]
  %v1925 = vld [vmem:[%s6 + $0x13b8] sm:$0xff]
  %v1926 = vld [vmem:[%s6 + $0x13c0] sm:$0xff]
  %v1927 = vld [vmem:[%s6 + $0x13c8] sm:$0xff]
  %v1928 = vld [vmem:[%s6 + $0x13d0] sm:$0xff]
  %v1929 = vld [vmem:[%s6 + $0x13d8] sm:$0xff]
  %v1930 = vld [vmem:[%s6 + $0x13e0] sm:$0xff]
  %v1931 = vld [vmem:[%s6 + $0x13e8] sm:$0xff]
  %v1932 = vld [vmem:[%s6 + $0x13f0] sm:$0xff]
  %v1933 = vld [vmem:[%s6 + $0x13f8] sm:$0xff]
  %v1934 = vld [vmem:[%s6 + $0x1400] sm:$0xff]
  %v1935 = vld [vmem:[%s6 + $0x1408] sm:$0xff]
  %v1936 = vld [vmem:[%s6 + $0x1410] sm:$0xff]
  %v1937 = vld [vmem:[%s6 + $0x1418] sm:$0xff]
  %v1938 = vld [vmem:[%s6 + $0x1420] sm:$0xff]
  %v1939 = vld [vmem:[%s6 + $0x1428] sm:$0xff]
  %v1940 = vld [vmem:[%s6 + $0x1430] sm:$0xff]
  %v1941 = vld [vmem:[%s6 + $0x1438] sm:$0xff]
  %v1942 = vld [vmem:[%s6 + $0x1440] sm:$0xff]
  %v1943 = vld [vmem:[%s6 + $0x1448] sm:$0xff]
  %v1944 = vld [vmem:[%s6 + $0x1450] sm:$0xff]
  %v1945 = vld [vmem:[%s6 + $0x1458] sm:$0xff]
  %v1946 = vld [vmem:[%s6 + $0x1460] sm:$0xff]
  %v1947 = vld [vmem:[%s6 + $0x1468] sm:$0xff]
  %v1948 = vld [vmem:[%s6 + $0x1470] sm:$0xff]
  %v1949 = vld [vmem:[%s6 + $0x1478] sm:$0xff]
  %v1950 = vld [vmem:[%s6 + $0x1480] sm:$0xff]
  %v1951 = vld [vmem:[%s6 + $0x1488] sm:$0xff]
  %v1952 = vld [vmem:[%s6 + $0x1490] sm:$0xff]
  %v1953 = vld [vmem:[%s6 + $0x1498] sm:$0xff]
  %v1954 = vld [vmem:[%s6 + $0x14a0] sm:$0xff]
  %v1955 = vld [vmem:[%s6 + $0x14a8] sm:$0xff]
  %v1956 = vld [vmem:[%s6 + $0x14b0] sm:$0xff]
  %v1957 = vld [vmem:[%s6 + $0x14b8] sm:$0xff]
  %v1958 = vld [vmem:[%s6 + $0x14c0] sm:$0xff]
  %v1959 = vld [vmem:[%s6 + $0x14c8] sm:$0xff]
  %v1960 = vld [vmem:[%s6 + $0x14d0] sm:$0xff]
  %v1961 = vld [vmem:[%s6 + $0x14d8] sm:$0xff]
  %v1962 = vld [vmem:[%s6 + $0x14e0] sm:$0xff]
  %v1963 = vld [vmem:[%s6 + $0x14e8] sm:$0xff]
  %v1964 = vld [vmem:[%s6 + $0x14f0] sm:$0xff]
  %v1965 = vld [vmem:[%s6 + $0x14f8] sm:$0xff]
  %v1966 = vld [vmem:[%s6 + $0x1500] sm:$0xff]
  %v1967 = vld [vmem:[%s6 + $0x1508] sm:$0xff]
  %v1968 = vld [vmem:[%s6 + $0x1510] sm:$0xff]
  %v1969 = vld [vmem:[%s6 + $0x1518] sm:$0xff]
  %v1970 = vld [vmem:[%s6 + $0x1520] sm:$0xff]
  %v1971 = vld [vmem:[%s6 + $0x1528] sm:$0xff]
  %v1972 = vld [vmem:[%s6 + $0x1530] sm:$0xff]
  %v1973 = vld [vmem:[%s6 + $0x1538] sm:$0xff]
  %v1974 = vld [vmem:[%s6 + $0x1540] sm:$0xff]
  %v1975 = vld [vmem:[%s6 + $0x1548] sm:$0xff]
  %v1976 = vld [vmem:[%s6 + $0x1550] sm:$0xff]
  %v1977 = vld [vmem:[%s6 + $0x1558] sm:$0xff]
  %v1978 = vld [vmem:[%s6 + $0x1560] sm:$0xff]
  %v1979 = vld [vmem:[%s6 + $0x1568] sm:$0xff]
  %v1980 = vld [vmem:[%s6 + $0x1570] sm:$0xff]
  %v1981 = vld [vmem:[%s6 + $0x1578] sm:$0xff]
  %v1982 = vld [vmem:[%s6 + $0x1580] sm:$0xff]
  %v1983 = vld [vmem:[%s6 + $0x1588] sm:$0xff]
  %v1984 = vld [vmem:[%s6 + $0x1590] sm:$0xff]
  %v1985 = vld [vmem:[%s6 + $0x1598] sm:$0xff]
  %v1986 = vld [vmem:[%s6 + $0x15a0] sm:$0xff]
  %v1987 = vld [vmem:[%s6 + $0x15a8] sm:$0xff]
  %v1988 = vld [vmem:[%s6 + $0x15b0] sm:$0xff]
  %v1989 = vld [vmem:[%s6 + $0x15b8] sm:$0xff]
  %v1990 = vld [vmem:[%s6 + $0x15c0] sm:$0xff]
  %v1991 = vld [vmem:[%s6 + $0x15c8] sm:$0xff]
  %v1992 = vld [vmem:[%s6 + $0x15d0] sm:$0xff]
  %v1993 = vld [vmem:[%s6 + $0x15d8] sm:$0xff]
  %v1994 = vld [vmem:[%s6 + $0x15e0] sm:$0xff]
  %v1995 = vld [vmem:[%s6 + $0x15e8] sm:$0xff]
  %v1996 = vld [vmem:[%s6 + $0x15f0] sm:$0xff]
  %v1997 = vld [vmem:[%s6 + $0x15f8] sm:$0xff]
  %v1998 = vld [vmem:[%s6 + $0x1600] sm:$0xff]
  %v1999 = vld [vmem:[%s6 + $0x1608] sm:$0xff]
  %v2000 = vld [vmem:[%s6 + $0x1610] sm:$0xff]
  %v2001 = vld [vmem:[%s6 + $0x1618] sm:$0xff]
  %v2002 = vld [vmem:[%s6 + $0x1620] sm:$0xff]
  %v2003 = vld [vmem:[%s6 + $0x1628] sm:$0xff]
  %v2004 = vld [vmem:[%s6 + $0x1630] sm:$0xff]
  %v2005 = vld [vmem:[%s6 + $0x1638] sm:$0xff]
  %v2006 = vld [vmem:[%s6 + $0x1640] sm:$0xff]
  %v2007 = vld [vmem:[%s6 + $0x1648] sm:$0xff]
  %v2008 = vld [vmem:[%s6 + $0x1650] sm:$0xff]
  %v2009 = vld [vmem:[%s6 + $0x1658] sm:$0xff]
  %v2010 = vld [vmem:[%s6 + $0x1660] sm:$0xff]
  %v2011 = vld [vmem:[%s6 + $0x1668] sm:$0xff]
  %v2012 = vld [vmem:[%s6 + $0x1670] sm:$0xff]
  %v2013 = vld [vmem:[%s6 + $0x1678] sm:$0xff]
  %v2014 = vld [vmem:[%s6 + $0x1680] sm:$0xff]
  %v2015 = vld [vmem:[%s6 + $0x1688] sm:$0xff]
  %v2016 = vld [vmem:[%s6 + $0x1690] sm:$0xff]
  %v2017 = vld [vmem:[%s6 + $0x1698] sm:$0xff]
  %v2018 = vld [vmem:[%s6 + $0x16a0] sm:$0xff]
  %v2019 = vld [vmem:[%s6 + $0x16a8] sm:$0xff]
  %v2020 = vld [vmem:[%s6 + $0x16b0] sm:$0xff]
  %v2021 = vld [vmem:[%s6 + $0x16b8] sm:$0xff]
  %v2022 = vld [vmem:[%s6 + $0x16c0] sm:$0xff]
  %v2023 = vld [vmem:[%s6 + $0x16c8] sm:$0xff]
  %v2024 = vld [vmem:[%s6 + $0x16d0] sm:$0xff]
  %v2025 = vld [vmem:[%s6 + $0x16d8] sm:$0xff]
  %v2026 = vld [vmem:[%s6 + $0x16e0] sm:$0xff]
  %v2027 = vld [vmem:[%s6 + $0x16e8] sm:$0xff]
  %v2028 = vld [vmem:[%s6 + $0x16f0] sm:$0xff]
  %v2029 = vld [vmem:[%s6 + $0x16f8] sm:$0xff]
  %v2030 = vld [vmem:[%s6 + $0x1700] sm:$0xff]
  %v2031 = vld [vmem:[%s6 + $0x1708] sm:$0xff]
  %v2032 = vld [vmem:[%s6 + $0x1710] sm:$0xff]
  %v2033 = vld [vmem:[%s6 + $0x1718] sm:$0xff]
  %v2034 = vld [vmem:[%s6 + $0x1720] sm:$0xff]
  %v2035 = vld [vmem:[%s6 + $0x1728] sm:$0xff]
  %v2036 = vld [vmem:[%s6 + $0x1730] sm:$0xff]
  %v2037 = vld [vmem:[%s6 + $0x1738] sm:$0xff]
  %v2038 = vld [vmem:[%s6 + $0x1740] sm:$0xff]
  %v2039 = vld [vmem:[%s6 + $0x1748] sm:$0xff]
  %v2040 = vld [vmem:[%s6 + $0x1750] sm:$0xff]
  %v2041 = vld [vmem:[%s6 + $0x1758] sm:$0xff]
  %v2042 = vld [vmem:[%s6 + $0x1760] sm:$0xff]
  %v2043 = vld [vmem:[%s6 + $0x1768] sm:$0xff]
  %v2044 = vld [vmem:[%s6 + $0x1770] sm:$0xff]
  %v2045 = vld [vmem:[%s6 + $0x1778] sm:$0xff]
  %v2046 = vld [vmem:[%s6 + $0x1780] sm:$0xff]
  %v2047 = vld [vmem:[%s6 + $0x1788] sm:$0xff]
  %v2048 = vld [vmem:[%s6 + $0x1790] sm:$0xff]
  %v2049 = vld [vmem:[%s6 + $0x1798] sm:$0xff]
  %v2050 = vld [vmem:[%s6 + $0x17a0] sm:$0xff]
  %v2051 = vld [vmem:[%s6 + $0x17a8] sm:$0xff]
  %v2052 = vld [vmem:[%s6 + $0x17b0] sm:$0xff]
  %v2053 = vld [vmem:[%s6 + $0x17b8] sm:$0xff]
  %v2054 = vld [vmem:[%s6 + $0x17c0] sm:$0xff]
  %v2055 = vld [vmem:[%s6 + $0x17c8] sm:$0xff]
  %v2056 = vld [vmem:[%s6 + $0x17d0] sm:$0xff]
  %v2057 = vld [vmem:[%s6 + $0x17d8] sm:$0xff]
  %v2058 = vld [vmem:[%s6 + $0x17e0] sm:$0xff]
  %v2059 = vld [vmem:[%s6 + $0x17e8] sm:$0xff]
  %v2060 = vld [vmem:[%s6 + $0x17f0] sm:$0xff]
  %v2061 = vld [vmem:[%s6 + $0x17f8] sm:$0xff]
  %v2062 = vld [vmem:[%s6 + $0x1800] sm:$0xff]
  %v2063 = vld [vmem:[%s6 + $0x1808] sm:$0xff]
  %v2064 = vld [vmem:[%s6 + $0x1810] sm:$0xff]
  %v2065 = vld [vmem:[%s6 + $0x1818] sm:$0xff]
  %v2066 = vld [vmem:[%s6 + $0x1820] sm:$0xff]
  %v2067 = vld [vmem:[%s6 + $0x1828] sm:$0xff]
  %v2068 = vld [vmem:[%s6 + $0x1830] sm:$0xff]
  %v2069 = vld [vmem:[%s6 + $0x1838] sm:$0xff]
  %v2070 = vld [vmem:[%s6 + $0x1840] sm:$0xff]
  %v2071 = vld [vmem:[%s6 + $0x1848] sm:$0xff]
  %v2072 = vld [vmem:[%s6 + $0x1850] sm:$0xff]
  %v2073 = vld [vmem:[%s6 + $0x1858] sm:$0xff]
  %v2074 = vld [vmem:[%s6 + $0x1860] sm:$0xff]
  %v2075 = vld [vmem:[%s6 + $0x1868] sm:$0xff]
  %v2076 = vld [vmem:[%s6 + $0x1870] sm:$0xff]
  %v2077 = vld [vmem:[%s6 + $0x1878] sm:$0xff]
  %v2078 = vld [vmem:[%s6 + $0x1880] sm:$0xff]
  %v2079 = vld [vmem:[%s6 + $0x1888] sm:$0xff]
  %v2080 = vld [vmem:[%s6 + $0x1890] sm:$0xff]
  %v2081 = vld [vmem:[%s6 + $0x1898] sm:$0xff]
  %v2082 = vld [vmem:[%s6 + $0x18a0] sm:$0xff]
  %v2083 = vld [vmem:[%s6 + $0x18a8] sm:$0xff]
  %v2084 = vld [vmem:[%s6 + $0x18b0] sm:$0xff]
  %v2085 = vld [vmem:[%s6 + $0x18b8] sm:$0xff]
  %v2086 = vld [vmem:[%s6 + $0x18c0] sm:$0xff]
  %v2087 = vld [vmem:[%s6 + $0x18c8] sm:$0xff]
  %v2088 = vld [vmem:[%s6 + $0x18d0] sm:$0xff]
  %v2089 = vld [vmem:[%s6 + $0x18d8] sm:$0xff]
  %v2090 = vld [vmem:[%s6 + $0x18e0] sm:$0xff]
  %v2091 = vld [vmem:[%s6 + $0x18e8] sm:$0xff]
  %v2092 = vld [vmem:[%s6 + $0x18f0] sm:$0xff]
  %v2093 = vld [vmem:[%s6 + $0x18f8] sm:$0xff]
  %v2094 = vld [vmem:[%s6 + $0x1900] sm:$0xff]
  %v2095 = vld [vmem:[%s6 + $0x1908] sm:$0xff]
  %v2096 = vld [vmem:[%s6 + $0x1910] sm:$0xff]
  %v2097 = vld [vmem:[%s6 + $0x1918] sm:$0xff]
  %v2098 = vld [vmem:[%s6 + $0x1920] sm:$0xff]
  %v2099 = vld [vmem:[%s6 + $0x1928] sm:$0xff]
  %v2100 = vld [vmem:[%s6 + $0x1930] sm:$0xff]
  %v2101 = vld [vmem:[%s6 + $0x1938] sm:$0xff]
  %v2102 = vld [vmem:[%s6 + $0x1940] sm:$0xff]
  %v2103 = vld [vmem:[%s6 + $0x1948] sm:$0xff]
  %v2104 = vld [vmem:[%s6 + $0x1950] sm:$0xff]
  %v2105 = vld [vmem:[%s6 + $0x1958] sm:$0xff]
  %v2106 = vld [vmem:[%s6 + $0x1960] sm:$0xff]
  %v2107 = vld [vmem:[%s6 + $0x1968] sm:$0xff]
  %v2108 = vld [vmem:[%s6 + $0x1970] sm:$0xff]
  %v2109 = vld [vmem:[%s6 + $0x1978] sm:$0xff]
  %v2110 = vld [vmem:[%s6 + $0x1980] sm:$0xff]
  %v2111 = vld [vmem:[%s6 + $0x1988] sm:$0xff]
  %v2112 = vld [vmem:[%s6 + $0x1990] sm:$0xff]
  %v2113 = vld [vmem:[%s6 + $0x1998] sm:$0xff]
  %v2114 = vld [vmem:[%s6 + $0x19a0] sm:$0xff]
  %v2115 = vld [vmem:[%s6 + $0x19a8] sm:$0xff]
  %v2116 = vld [vmem:[%s6 + $0x19b0] sm:$0xff]
  %v2117 = vld [vmem:[%s6 + $0x19b8] sm:$0xff]
  %v2118 = vld [vmem:[%s6 + $0x19c0] sm:$0xff]
  %v2119 = vld [vmem:[%s6 + $0x19c8] sm:$0xff]
  %v2120 = vld [vmem:[%s6 + $0x19d0] sm:$0xff]
  %v2121 = vld [vmem:[%s6 + $0x19d8] sm:$0xff]
  %v2122 = vld [vmem:[%s6 + $0x19e0] sm:$0xff]
  %v2123 = vld [vmem:[%s6 + $0x19e8] sm:$0xff]
  %v2124 = vld [vmem:[%s6 + $0x19f0] sm:$0xff]
  %v2125 = vld [vmem:[%s6 + $0x19f8] sm:$0xff]
  %v2126 = vld [vmem:[%s6 + $0x1a00] sm:$0xff]
  %v2127 = vld [vmem:[%s6 + $0x1a08] sm:$0xff]
  %v2128 = vld [vmem:[%s6 + $0x1a10] sm:$0xff]
  %v2129 = vld [vmem:[%s6 + $0x1a18] sm:$0xff]
  %v2130 = vld [vmem:[%s6 + $0x1a20] sm:$0xff]
  %v2131 = vld [vmem:[%s6 + $0x1a28] sm:$0xff]
  %v2132 = vld [vmem:[%s6 + $0x1a30] sm:$0xff]
  %v2133 = vld [vmem:[%s6 + $0x1a38] sm:$0xff]
  %v2134 = vld [vmem:[%s6 + $0x1a40] sm:$0xff]
  %v2135 = vld [vmem:[%s6 + $0x1a48] sm:$0xff]
  %v2136 = vld [vmem:[%s6 + $0x1a50] sm:$0xff]
  %v2137 = vld [vmem:[%s6 + $0x1a58] sm:$0xff]
  %v2138 = vld [vmem:[%s6 + $0x1a60] sm:$0xff]
  %v2139 = vld [vmem:[%s6 + $0x1a68] sm:$0xff]
  %v2140 = vld [vmem:[%s6 + $0x1a70] sm:$0xff]
  %v2141 = vld [vmem:[%s6 + $0x1a78] sm:$0xff]
  %v2142 = vld [vmem:[%s6 + $0x1a80] sm:$0xff]
  %v2143 = vld [vmem:[%s6 + $0x1a88] sm:$0xff]
  %v2144 = vld [vmem:[%s6 + $0x1a90] sm:$0xff]
  %v2145 = vld [vmem:[%s6 + $0x1a98] sm:$0xff]
  %v2146 = vld [vmem:[%s6 + $0x1aa0] sm:$0xff]
  %v2147 = vld [vmem:[%s6 + $0x1aa8] sm:$0xff]
  %v2148 = vld [vmem:[%s6 + $0x1ab0] sm:$0xff]
  %v2149 = vld [vmem:[%s6 + $0x1ab8] sm:$0xff]
  %v2150 = vld [vmem:[%s6 + $0x1ac0] sm:$0xff]
  %v2151 = vld [vmem:[%s6 + $0x1ac8] sm:$0xff]
  %v2152 = vld [vmem:[%s6 + $0x1ad0] sm:$0xff]
  %v2153 = vld [vmem:[%s6 + $0x1ad8] sm:$0xff]
  %v2154 = vld [vmem:[%s6 + $0x1ae0] sm:$0xff]
  %v2155 = vld [vmem:[%s6 + $0x1ae8] sm:$0xff]
  %v2156 = vld [vmem:[%s6 + $0x1af0] sm:$0xff]
  %v2157 = vld [vmem:[%s6 + $0x1af8] sm:$0xff]
  %v2158 = vld [vmem:[%s6 + $0x1b00] sm:$0xff]
  %v2159 = vld [vmem:[%s6 + $0x1b08] sm:$0xff]
  %v2160 = vld [vmem:[%s6 + $0x1b10] sm:$0xff]
  %v2161 = vld [vmem:[%s6 + $0x1b18] sm:$0xff]
  %v2162 = vld [vmem:[%s6 + $0x1b20] sm:$0xff]
  %v2163 = vld [vmem:[%s6 + $0x1b28] sm:$0xff]
  %v2164 = vld [vmem:[%s6 + $0x1b30] sm:$0xff]
  %v2165 = vld [vmem:[%s6 + $0x1b38] sm:$0xff]
  %v2166 = vld [vmem:[%s6 + $0x1b40] sm:$0xff]
  %v2167 = vld [vmem:[%s6 + $0x1b48] sm:$0xff]
  %v2168 = vld [vmem:[%s6 + $0x1b50] sm:$0xff]
  %v2169 = vld [vmem:[%s6 + $0x1b58] sm:$0xff]
  %v2170 = vld [vmem:[%s6 + $0x1b60] sm:$0xff]
  %v2171 = vld [vmem:[%s6 + $0x1b68] sm:$0xff]
  %v2172 = vld [vmem:[%s6 + $0x1b70] sm:$0xff]
  %v2173 = vld [vmem:[%s6 + $0x1b78] sm:$0xff]
  %v2174 = vld [vmem:[%s6 + $0x1b80] sm:$0xff]
  %v2175 = vld [vmem:[%s6 + $0x1b88] sm:$0xff]
  %v2176 = vld [vmem:[%s6 + $0x1b90] sm:$0xff]
  %v2177 = vld [vmem:[%s6 + $0x1b98] sm:$0xff]
  %v2178 = vld [vmem:[%s6 + $0x1ba0] sm:$0xff]
  %v2179 = vld [vmem:[%s6 + $0x1ba8] sm:$0xff]
  %v2180 = vld [vmem:[%s6 + $0x1bb0] sm:$0xff]
  %v2181 = vld [vmem:[%s6 + $0x1bb8] sm:$0xff]
  %v2182 = vld [vmem:[%s6 + $0x1bc0] sm:$0xff]
  %v2183 = vld [vmem:[%s6 + $0x1bc8] sm:$0xff]
  %v2184 = vld [vmem:[%s6 + $0x1bd0] sm:$0xff]
  %v2185 = vld [vmem:[%s6 + $0x1bd8] sm:$0xff]
  %v2186 = vld [vmem:[%s6 + $0x1be0] sm:$0xff]
  %v2187 = vld [vmem:[%s6 + $0x1be8] sm:$0xff]
  %v2188 = vld [vmem:[%s6 + $0x1bf0] sm:$0xff]
  %v2189 = vld [vmem:[%s6 + $0x1bf8] sm:$0xff]
  %v2190 = vld [vmem:[%s6 + $0x1c00] sm:$0xff]
  %v2191 = vld [vmem:[%s6 + $0x1c08] sm:$0xff]
  %v2192 = vld [vmem:[%s6 + $0x1c10] sm:$0xff]
  %v2193 = vld [vmem:[%s6 + $0x1c18] sm:$0xff]
  %v2194 = vld [vmem:[%s6 + $0x1c20] sm:$0xff]
  %v2195 = vld [vmem:[%s6 + $0x1c28] sm:$0xff]
  %v2196 = vld [vmem:[%s6 + $0x1c30] sm:$0xff]
  %v2197 = vld [vmem:[%s6 + $0x1c38] sm:$0xff]
  %v2198 = vld [vmem:[%s6 + $0x1c40] sm:$0xff]
  %v2199 = vld [vmem:[%s6 + $0x1c48] sm:$0xff]
  %v2200 = vld [vmem:[%s6 + $0x1c50] sm:$0xff]
  %v2201 = vld [vmem:[%s6 + $0x1c58] sm:$0xff]
  %v2202 = vld [vmem:[%s6 + $0x1c60] sm:$0xff]
  %v2203 = vld [vmem:[%s6 + $0x1c68] sm:$0xff]
  %v2204 = vld [vmem:[%s6 + $0x1c70] sm:$0xff]
  %v2205 = vld [vmem:[%s6 + $0x1c78] sm:$0xff]
  %v2206 = vld [vmem:[%s6 + $0x1c80] sm:$0xff]
  %v2207 = vld [vmem:[%s6 + $0x1c88] sm:$0xff]
  %v2208 = vld [vmem:[%s6 + $0x1c90] sm:$0xff]
  %v2209 = vld [vmem:[%s6 + $0x1c98] sm:$0xff]
  %v2210 = vld [vmem:[%s6 + $0x1ca0] sm:$0xff]
  %v2211 = vld [vmem:[%s6 + $0x1ca8] sm:$0xff]
  %v2212 = vld [vmem:[%s6 + $0x1cb0] sm:$0xff]
  %v2213 = vld [vmem:[%s6 + $0x1cb8] sm:$0xff]
  %v2214 = vld [vmem:[%s6 + $0x1cc0] sm:$0xff]
  %v2215 = vld [vmem:[%s6 + $0x1cc8] sm:$0xff]
  %v2216 = vld [vmem:[%s6 + $0x1cd0] sm:$0xff]
  %v2217 = vld [vmem:[%s6 + $0x1cd8] sm:$0xff]
  %v2218 = vld [vmem:[%s6 + $0x1ce0] sm:$0xff]
  %v2219 = vld [vmem:[%s6 + $0x1ce8] sm:$0xff]
  %v2220 = vld [vmem:[%s6 + $0x1cf0] sm:$0xff]
  %v2221 = vld [vmem:[%s6 + $0x1cf8] sm:$0xff]
  %v2222 = vld [vmem:[%s6 + $0x1d00] sm:$0xff]
  %v2223 = vld [vmem:[%s6 + $0x1d08] sm:$0xff]
  %v2224 = vld [vmem:[%s6 + $0x1d10] sm:$0xff]
  %v2225 = vld [vmem:[%s6 + $0x1d18] sm:$0xff]
  %v2226 = vld [vmem:[%s6 + $0x1d20] sm:$0xff]
  %v2227 = vld [vmem:[%s6 + $0x1d28] sm:$0xff]
  %v2228 = vld [vmem:[%s6 + $0x1d30] sm:$0xff]
  %v2229 = vld [vmem:[%s6 + $0x1d38] sm:$0xff]
  %v2230 = vld [vmem:[%s6 + $0x1d40] sm:$0xff]
  %v2231 = vld [vmem:[%s6 + $0x1d48] sm:$0xff]
  %v2232 = vld [vmem:[%s6 + $0x1d50] sm:$0xff]
  %v2233 = vld [vmem:[%s6 + $0x1d58] sm:$0xff]
  %v2234 = vld [vmem:[%s6 + $0x1d60] sm:$0xff]
  %v2235 = vld [vmem:[%s6 + $0x1d68] sm:$0xff]
  %v2236 = vld [vmem:[%s6 + $0x1d70] sm:$0xff]
  %v2237 = vld [vmem:[%s6 + $0x1d78] sm:$0xff]
  %v2238 = vld [vmem:[%s6 + $0x1d80] sm:$0xff]
  %v2239 = vld [vmem:[%s6 + $0x1d88] sm:$0xff]
  %v2240 = vld [vmem:[%s6 + $0x1d90] sm:$0xff]
  %v2241 = vld [vmem:[%s6 + $0x1d98] sm:$0xff]
  %v2242 = vld [vmem:[%s6 + $0x1da0] sm:$0xff]
  %v2243 = vld [vmem:[%s6 + $0x1da8] sm:$0xff]
  %v2244 = vld [vmem:[%s6 + $0x1db0] sm:$0xff]
  %v2245 = vld [vmem:[%s6 + $0x1db8] sm:$0xff]
  %v2246 = vld [vmem:[%s6 + $0x1dc0] sm:$0xff]
  %v2247 = vld [vmem:[%s6 + $0x1dc8] sm:$0xff]
  %v2248 = vld [vmem:[%s6 + $0x1dd0] sm:$0xff]
  %v2249 = vld [vmem:[%s6 + $0x1dd8] sm:$0xff]
  %v2250 = vld [vmem:[%s6 + $0x1de0] sm:$0xff]
  %v2251 = vld [vmem:[%s6 + $0x1de8] sm:$0xff]
  %v2252 = vld [vmem:[%s6 + $0x1df0] sm:$0xff]
  %v2253 = vld [vmem:[%s6 + $0x1df8] sm:$0xff]
  %v2254 = vld [vmem:[%s6 + $0x1e00] sm:$0xff]
  %v2255 = vld [vmem:[%s6 + $0x1e08] sm:$0xff]
  %v2256 = vld [vmem:[%s6 + $0x1e10] sm:$0xff]
  %v2257 = vld [vmem:[%s6 + $0x1e18] sm:$0xff]
  %v2258 = vld [vmem:[%s6 + $0x1e20] sm:$0xff]
  %v2259 = vld [vmem:[%s6 + $0x1e28] sm:$0xff]
  %v2260 = vld [vmem:[%s6 + $0x1e30] sm:$0xff]
  %v2261 = vld [vmem:[%s6 + $0x1e38] sm:$0xff]
  %v2262 = vld [vmem:[%s6 + $0x1e40] sm:$0xff]
  %v2263 = vld [vmem:[%s6 + $0x1e48] sm:$0xff]
  %v2264 = vld [vmem:[%s6 + $0x1e50] sm:$0xff]
  %v2265 = vld [vmem:[%s6 + $0x1e58] sm:$0xff]
  %v2266 = vld [vmem:[%s6 + $0x1e60] sm:$0xff]
  %v2267 = vld [vmem:[%s6 + $0x1e68] sm:$0xff]
  %v2268 = vld [vmem:[%s6 + $0x1e70] sm:$0xff]
  %v2269 = vld [vmem:[%s6 + $0x1e78] sm:$0xff]
  %v2270 = vld [vmem:[%s6 + $0x1e80] sm:$0xff]
  %v2271 = vld [vmem:[%s6 + $0x1e88] sm:$0xff]
  %v2272 = vld [vmem:[%s6 + $0x1e90] sm:$0xff]
  %v2273 = vld [vmem:[%s6 + $0x1e98] sm:$0xff]
  %v2274 = vld [vmem:[%s6 + $0x1ea0] sm:$0xff]
  %v2275 = vld [vmem:[%s6 + $0x1ea8] sm:$0xff]
  %v2276 = vld [vmem:[%s6 + $0x1eb0] sm:$0xff]
  %v2277 = vld [vmem:[%s6 + $0x1eb8] sm:$0xff]
  %v2278 = vld [vmem:[%s6 + $0x1ec0] sm:$0xff]
  %v2279 = vld [vmem:[%s6 + $0x1ec8] sm:$0xff]
  %v2280 = vld [vmem:[%s6 + $0x1ed0] sm:$0xff]
  %v2281 = vld [vmem:[%s6 + $0x1ed8] sm:$0xff]
  %v2282 = vld [vmem:[%s6 + $0x1ee0] sm:$0xff]
  %v2283 = vld [vmem:[%s6 + $0x1ee8] sm:$0xff]
  %v2284 = vld [vmem:[%s6 + $0x1ef0] sm:$0xff]
  %v2285 = vld [vmem:[%s6 + $0x1ef8] sm:$0xff]
  %v2286 = vld [vmem:[%s6 + $0x1f00] sm:$0xff]
  %v2287 = vld [vmem:[%s6 + $0x1f08] sm:$0xff]
  %v2288 = vld [vmem:[%s6 + $0x1f10] sm:$0xff]
  %v2289 = vld [vmem:[%s6 + $0x1f18] sm:$0xff]
  %v2290 = vld [vmem:[%s6 + $0x1f20] sm:$0xff]
  %v2291 = vld [vmem:[%s6 + $0x1f28] sm:$0xff]
  %v2292 = vld [vmem:[%s6 + $0x1f30] sm:$0xff]
  %v2293 = vld [vmem:[%s6 + $0x1f38] sm:$0xff]
  %v2294 = vld [vmem:[%s6 + $0x1f40] sm:$0xff]
  %v2295 = vld [vmem:[%s6 + $0x1f48] sm:$0xff]
  %v2296 = vld [vmem:[%s6 + $0x1f50] sm:$0xff]
  %v2297 = vld [vmem:[%s6 + $0x1f58] sm:$0xff]
  %v2298 = vld [vmem:[%s6 + $0x1f60] sm:$0xff]
  %v2299 = vld [vmem:[%s6 + $0x1f68] sm:$0xff]
  %v2300 = vld [vmem:[%s6 + $0x1f70] sm:$0xff]
  %v2301 = vld [vmem:[%s6 + $0x1f78] sm:$0xff]
  %2302 = vmatprep.subr.mxu0 0.0
  %2303 = vmatpush1.msra.mxu0 %v1309
  %2304 = vmatprep.subr.mxu0 0.0
  %2305 = vmatpush1.msra.mxu0 %v1308
  %2306 = vmatprep.subr.mxu0 0.0
  %2307 = vmatpush1.msra.mxu0 %v1307
  %2308 = vmatprep.subr.mxu0 0.0
  %2309 = vmatpush1.msra.mxu0 %v1306
  %2310 = vmatprep.subr.mxu0 0.0
  %2311 = vmatpush1.msra.mxu0 %v1305
  %2312 = vmatprep.subr.mxu0 0.0
  %2313 = vmatpush1.msra.mxu0 %v1304
  %2314 = vmatprep.subr.mxu0 0.0
  %2315 = vmatpush1.msra.mxu0 %v1303
  %2316 = vmatprep.subr.mxu0 0.0
  %2317 = vmatpush1.msra.mxu0 %v1302
  %2318 = vmatprep.subr.mxu0 0.0
  %2319 = vmatpush1.msra.mxu0 %v1301
  %2320 = vmatprep.subr.mxu0 0.0
  %2321 = vmatpush1.msra.mxu0 %v1300
  %2322 = vmatprep.subr.mxu0 0.0
  %2323 = vmatpush1.msra.mxu0 %v1299
  %2324 = vmatprep.subr.mxu0 0.0
  %2325 = vmatpush1.msra.mxu0 %v1298
  %2326 = vmatprep.subr.mxu0 0.0
  %2327 = vmatpush1.msra.mxu0 %v1297
  %2328 = vmatprep.subr.mxu0 0.0
  %2329 = vmatpush1.msra.mxu0 %v1296
  %2330 = vmatprep.subr.mxu0 0.0
  %2331 = vmatpush1.msra.mxu0 %v1295
  %2332 = vmatprep.subr.mxu0 0.0
  %2333 = vmatpush1.msra.mxu0 %v1294
  %2334 = vmatprep.subr.mxu0 0.0
  %2335 = vmatpush2.msra.mxu0 %v1325
  %2336 = vmatprep.subr.mxu0 0.0
  %2337 = vmatpush2.msra.mxu0 %v1324
  %2338 = vmatprep.subr.mxu0 0.0
  %2339 = vmatpush2.msra.mxu0 %v1323
  %2340 = vmatprep.subr.mxu0 0.0
  %2341 = vmatpush2.msra.mxu0 %v1322
  %2342 = vmatprep.subr.mxu0 0.0
  %2343 = vmatpush2.msra.mxu0 %v1321
  %2344 = vmatprep.subr.mxu0 0.0
  %2345 = vmatpush2.msra.mxu0 %v1320
  %2346 = vmatprep.subr.mxu0 0.0
  %2347 = vmatpush2.msra.mxu0 %v1319
  %2348 = vmatprep.subr.mxu0 0.0
  %2349 = vmatpush2.msra.mxu0 %v1318
  %2350 = vmatprep.subr.mxu0 0.0
  %2351 = vmatpush2.msra.mxu0 %v1317
  %2352 = vmatprep.subr.mxu0 0.0
  %2353 = vmatpush2.msra.mxu0 %v1316
  %2354 = vmatprep.subr.mxu0 0.0
  %2355 = vmatpush2.msra.mxu0 %v1315
  %2356 = vmatprep.subr.mxu0 0.0
  %2357 = vmatpush2.msra.mxu0 %v1314
  %2358 = vmatprep.subr.mxu0 0.0
  %2359 = vmatpush2.msra.mxu0 %v1313
  %2360 = vmatprep.subr.mxu0 0.0
  %2361 = vmatpush2.msra.mxu0 %v1312
  %2362 = vmatprep.subr.mxu0 0.0
  %2363 = vmatpush2.msra.mxu0 %v1311
  %2364 = vmatprep.subr.mxu0 0.0
  %2365 = vmatpush2.msra.mxu0 %v1310
  %2366 = vmatprep.mubr.f32.mxu0 %v1232
  %2367 = vmatmul.mubr.f32.gmra.mxu0 %v1231
  %v2368 = vpop.f32.mrf.mxu0
  %v2369 = vadd.f32 0.0, %v2368
  %v2370 = vpop.f32.mrf.mxu0
  %2371 = vdwg.mxu0
  %2372 = vmatprep.subr.mxu0 0.0
  %2373 = vmatpush1.msra.mxu0 %v1341
  %2374 = vmatprep.subr.mxu0 0.0
  %2375 = vmatpush1.msra.mxu0 %v1340
  %2376 = vmatprep.subr.mxu0 0.0
  %2377 = vmatpush1.msra.mxu0 %v1339
  %2378 = vmatprep.subr.mxu0 0.0
  %2379 = vmatpush1.msra.mxu0 %v1338
  %2380 = vmatprep.subr.mxu0 0.0
  %2381 = vmatpush1.msra.mxu0 %v1337
  %2382 = vmatprep.subr.mxu0 0.0
  %2383 = vmatpush1.msra.mxu0 %v1336
  %2384 = vmatprep.subr.mxu0 0.0
  %2385 = vmatpush1.msra.mxu0 %v1335
  %2386 = vmatprep.subr.mxu0 0.0
  %2387 = vmatpush1.msra.mxu0 %v1334
  %2388 = vmatprep.subr.mxu0 0.0
  %2389 = vmatpush1.msra.mxu0 %v1333
  %2390 = vmatprep.subr.mxu0 0.0
  %2391 = vmatpush1.msra.mxu0 %v1332
  %2392 = vmatprep.subr.mxu0 0.0
  %2393 = vmatpush1.msra.mxu0 %v1331
  %2394 = vmatprep.subr.mxu0 0.0
  %2395 = vmatpush1.msra.mxu0 %v1330
  %2396 = vmatprep.subr.mxu0 0.0
  %2397 = vmatpush1.msra.mxu0 %v1329
  %2398 = vmatprep.subr.mxu0 0.0
  %2399 = vmatpush1.msra.mxu0 %v1328
  %2400 = vmatprep.subr.mxu0 0.0
  %2401 = vmatpush1.msra.mxu0 %v1327
  %2402 = vmatprep.subr.mxu0 0.0
  %2403 = vmatpush1.msra.mxu0 %v1326
  %2404 = vmatprep.subr.mxu0 0.0
  %2405 = vmatpush2.msra.mxu0 %v1357
  %2406 = vmatprep.subr.mxu0 0.0
  %2407 = vmatpush2.msra.mxu0 %v1356
  %2408 = vmatprep.subr.mxu0 0.0
  %2409 = vmatpush2.msra.mxu0 %v1355
  %2410 = vmatprep.subr.mxu0 0.0
  %2411 = vmatpush2.msra.mxu0 %v1354
  %2412 = vmatprep.subr.mxu0 0.0
  %2413 = vmatpush2.msra.mxu0 %v1353
  %2414 = vmatprep.subr.mxu0 0.0
  %2415 = vmatpush2.msra.mxu0 %v1352
  %2416 = vmatprep.subr.mxu0 0.0
  %2417 = vmatpush2.msra.mxu0 %v1351
  %2418 = vmatprep.subr.mxu0 0.0
  %2419 = vmatpush2.msra.mxu0 %v1350
  %2420 = vmatprep.subr.mxu0 0.0
  %2421 = vmatpush2.msra.mxu0 %v1349
  %2422 = vmatprep.subr.mxu0 0.0
  %2423 = vmatpush2.msra.mxu0 %v1348
  %2424 = vmatprep.subr.mxu0 0.0
  %2425 = vmatpush2.msra.mxu0 %v1347
  %2426 = vmatprep.subr.mxu0 0.0
  %2427 = vmatpush2.msra.mxu0 %v1346
  %2428 = vmatprep.subr.mxu0 0.0
  %2429 = vmatpush2.msra.mxu0 %v1345
  %2430 = vmatprep.subr.mxu0 0.0
  %2431 = vmatpush2.msra.mxu0 %v1344
  %2432 = vmatprep.subr.mxu0 0.0
  %2433 = vmatpush2.msra.mxu0 %v1343
  %2434 = vmatprep.subr.mxu0 0.0
  %2435 = vmatpush2.msra.mxu0 %v1342
  %2436 = vmatprep.mubr.f32.mxu0 %v1234
  %2437 = vmatmul.mubr.f32.gmra.mxu0 %v1233
  %v2438 = vpop.f32.mrf.mxu0
  %v2439 = vadd.f32 %v2369, %v2438
  %v2440 = vpop.f32.mrf.mxu0
  %2441 = vdwg.mxu0
  %2442 = vmatprep.subr.mxu0 0.0
  %2443 = vmatpush1.msra.mxu0 %v1373
  %2444 = vmatprep.subr.mxu0 0.0
  %2445 = vmatpush1.msra.mxu0 %v1372
  %2446 = vmatprep.subr.mxu0 0.0
  %2447 = vmatpush1.msra.mxu0 %v1371
  %2448 = vmatprep.subr.mxu0 0.0
  %2449 = vmatpush1.msra.mxu0 %v1370
  %2450 = vmatprep.subr.mxu0 0.0
  %2451 = vmatpush1.msra.mxu0 %v1369
  %2452 = vmatprep.subr.mxu0 0.0
  %2453 = vmatpush1.msra.mxu0 %v1368
  %2454 = vmatprep.subr.mxu0 0.0
  %2455 = vmatpush1.msra.mxu0 %v1367
  %2456 = vmatprep.subr.mxu0 0.0
  %2457 = vmatpush1.msra.mxu0 %v1366
  %2458 = vmatprep.subr.mxu0 0.0
  %2459 = vmatpush1.msra.mxu0 %v1365
  %2460 = vmatprep.subr.mxu0 0.0
  %2461 = vmatpush1.msra.mxu0 %v1364
  %2462 = vmatprep.subr.mxu0 0.0
  %2463 = vmatpush1.msra.mxu0 %v1363
  %2464 = vmatprep.subr.mxu0 0.0
  %2465 = vmatpush1.msra.mxu0 %v1362
  %2466 = vmatprep.subr.mxu0 0.0
  %2467 = vmatpush1.msra.mxu0 %v1361
  %2468 = vmatprep.subr.mxu0 0.0
  %2469 = vmatpush1.msra.mxu0 %v1360
  %2470 = vmatprep.subr.mxu0 0.0
  %2471 = vmatpush1.msra.mxu0 %v1359
  %2472 = vmatprep.subr.mxu0 0.0
  %2473 = vmatpush1.msra.mxu0 %v1358
  %2474 = vmatprep.subr.mxu0 0.0
  %2475 = vmatpush2.msra.mxu0 %v1389
  %2476 = vmatprep.subr.mxu0 0.0
  %2477 = vmatpush2.msra.mxu0 %v1388
  %2478 = vmatprep.subr.mxu0 0.0
  %2479 = vmatpush2.msra.mxu0 %v1387
  %2480 = vmatprep.subr.mxu0 0.0
  %2481 = vmatpush2.msra.mxu0 %v1386
  %2482 = vmatprep.subr.mxu0 0.0
  %2483 = vmatpush2.msra.mxu0 %v1385
  %2484 = vmatprep.subr.mxu0 0.0
  %2485 = vmatpush2.msra.mxu0 %v1384
  %2486 = vmatprep.subr.mxu0 0.0
  %2487 = vmatpush2.msra.mxu0 %v1383
  %2488 = vmatprep.subr.mxu0 0.0
  %2489 = vmatpush2.msra.mxu0 %v1382
  %2490 = vmatprep.subr.mxu0 0.0
  %2491 = vmatpush2.msra.mxu0 %v1381
  %2492 = vmatprep.subr.mxu0 0.0
  %2493 = vmatpush2.msra.mxu0 %v1380
  %2494 = vmatprep.subr.mxu0 0.0
  %2495 = vmatpush2.msra.mxu0 %v1379
  %2496 = vmatprep.subr.mxu0 0.0
  %2497 = vmatpush2.msra.mxu0 %v1378
  %2498 = vmatprep.subr.mxu0 0.0
  %2499 = vmatpush2.msra.mxu0 %v1377
  %2500 = vmatprep.subr.mxu0 0.0
  %2501 = vmatpush2.msra.mxu0 %v1376
  %2502 = vmatprep.subr.mxu0 0.0
  %2503 = vmatpush2.msra.mxu0 %v1375
  %2504 = vmatprep.subr.mxu0 0.0
  %2505 = vmatpush2.msra.mxu0 %v1374
  %2506 = vmatprep.mubr.f32.mxu0 %v1236
  %2507 = vmatmul.mubr.f32.gmra.mxu0 %v1235
  %v2508 = vpop.f32.mrf.mxu0
  %v2509 = vadd.f32 %v2439, %v2508
  %v2510 = vpop.f32.mrf.mxu0
  %2511 = vdwg.mxu0
  %2512 = vmatprep.subr.mxu0 0.0
  %2513 = vmatpush1.msra.mxu0 %v1405
  %2514 = vmatprep.subr.mxu0 0.0
  %2515 = vmatpush1.msra.mxu0 %v1404
  %2516 = vmatprep.subr.mxu0 0.0
  %2517 = vmatpush1.msra.mxu0 %v1403
  %2518 = vmatprep.subr.mxu0 0.0
  %2519 = vmatpush1.msra.mxu0 %v1402
  %2520 = vmatprep.subr.mxu0 0.0
  %2521 = vmatpush1.msra.mxu0 %v1401
  %2522 = vmatprep.subr.mxu0 0.0
  %2523 = vmatpush1.msra.mxu0 %v1400
  %2524 = vmatprep.subr.mxu0 0.0
  %2525 = vmatpush1.msra.mxu0 %v1399
  %2526 = vmatprep.subr.mxu0 0.0
  %2527 = vmatpush1.msra.mxu0 %v1398
  %2528 = vmatprep.subr.mxu0 0.0
  %2529 = vmatpush1.msra.mxu0 %v1397
  %2530 = vmatprep.subr.mxu0 0.0
  %2531 = vmatpush1.msra.mxu0 %v1396
  %2532 = vmatprep.subr.mxu0 0.0
  %2533 = vmatpush1.msra.mxu0 %v1395
  %2534 = vmatprep.subr.mxu0 0.0
  %2535 = vmatpush1.msra.mxu0 %v1394
  %2536 = vmatprep.subr.mxu0 0.0
  %2537 = vmatpush1.msra.mxu0 %v1393
  %2538 = vmatprep.subr.mxu0 0.0
  %2539 = vmatpush1.msra.mxu0 %v1392
  %2540 = vmatprep.subr.mxu0 0.0
  %2541 = vmatpush1.msra.mxu0 %v1391
  %2542 = vmatprep.subr.mxu0 0.0
  %2543 = vmatpush1.msra.mxu0 %v1390
  %2544 = vmatprep.subr.mxu0 0.0
  %2545 = vmatpush2.msra.mxu0 %v1421
  %2546 = vmatprep.subr.mxu0 0.0
  %2547 = vmatpush2.msra.mxu0 %v1420
  %2548 = vmatprep.subr.mxu0 0.0
  %2549 = vmatpush2.msra.mxu0 %v1419
  %2550 = vmatprep.subr.mxu0 0.0
  %2551 = vmatpush2.msra.mxu0 %v1418
  %2552 = vmatprep.subr.mxu0 0.0
  %2553 = vmatpush2.msra.mxu0 %v1417
  %2554 = vmatprep.subr.mxu0 0.0
  %2555 = vmatpush2.msra.mxu0 %v1416
  %2556 = vmatprep.subr.mxu0 0.0
  %2557 = vmatpush2.msra.mxu0 %v1415
  %2558 = vmatprep.subr.mxu0 0.0
  %2559 = vmatpush2.msra.mxu0 %v1414
  %2560 = vmatprep.subr.mxu0 0.0
  %2561 = vmatpush2.msra.mxu0 %v1413
  %2562 = vmatprep.subr.mxu0 0.0
  %2563 = vmatpush2.msra.mxu0 %v1412
  %2564 = vmatprep.subr.mxu0 0.0
  %2565 = vmatpush2.msra.mxu0 %v1411
  %2566 = vmatprep.subr.mxu0 0.0
  %2567 = vmatpush2.msra.mxu0 %v1410
  %2568 = vmatprep.subr.mxu0 0.0
  %2569 = vmatpush2.msra.mxu0 %v1409
  %2570 = vmatprep.subr.mxu0 0.0
  %2571 = vmatpush2.msra.mxu0 %v1408
  %2572 = vmatprep.subr.mxu0 0.0
  %2573 = vmatpush2.msra.mxu0 %v1407
  %2574 = vmatprep.subr.mxu0 0.0
  %2575 = vmatpush2.msra.mxu0 %v1406
  %2576 = vmatprep.mubr.f32.mxu0 %v1238
  %2577 = vmatmul.mubr.f32.gmra.mxu0 %v1237
  %v2578 = vpop.f32.mrf.mxu0
  %v2579 = vadd.f32 %v2509, %v2578
  %v2580 = vpop.f32.mrf.mxu0
  %2581 = vdwg.mxu0
  %2582 = vmatprep.subr.mxu0 0.0
  %2583 = vmatpush1.msra.mxu0 %v1437
  %2584 = vmatprep.subr.mxu0 0.0
  %2585 = vmatpush1.msra.mxu0 %v1436
  %2586 = vmatprep.subr.mxu0 0.0
  %2587 = vmatpush1.msra.mxu0 %v1435
  %2588 = vmatprep.subr.mxu0 0.0
  %2589 = vmatpush1.msra.mxu0 %v1434
  %2590 = vmatprep.subr.mxu0 0.0
  %2591 = vmatpush1.msra.mxu0 %v1433
  %2592 = vmatprep.subr.mxu0 0.0
  %2593 = vmatpush1.msra.mxu0 %v1432
  %2594 = vmatprep.subr.mxu0 0.0
  %2595 = vmatpush1.msra.mxu0 %v1431
  %2596 = vmatprep.subr.mxu0 0.0
  %2597 = vmatpush1.msra.mxu0 %v1430
  %2598 = vmatprep.subr.mxu0 0.0
  %2599 = vmatpush1.msra.mxu0 %v1429
  %2600 = vmatprep.subr.mxu0 0.0
  %2601 = vmatpush1.msra.mxu0 %v1428
  %2602 = vmatprep.subr.mxu0 0.0
  %2603 = vmatpush1.msra.mxu0 %v1427
  %2604 = vmatprep.subr.mxu0 0.0
  %2605 = vmatpush1.msra.mxu0 %v1426
  %2606 = vmatprep.subr.mxu0 0.0
  %2607 = vmatpush1.msra.mxu0 %v1425
  %2608 = vmatprep.subr.mxu0 0.0
  %2609 = vmatpush1.msra.mxu0 %v1424
  %2610 = vmatprep.subr.mxu0 0.0
  %2611 = vmatpush1.msra.mxu0 %v1423
  %2612 = vmatprep.subr.mxu0 0.0
  %2613 = vmatpush1.msra.mxu0 %v1422
  %2614 = vmatprep.subr.mxu0 0.0
  %2615 = vmatpush2.msra.mxu0 %v1453
  %2616 = vmatprep.subr.mxu0 0.0
  %2617 = vmatpush2.msra.mxu0 %v1452
  %2618 = vmatprep.subr.mxu0 0.0
  %2619 = vmatpush2.msra.mxu0 %v1451
  %2620 = vmatprep.subr.mxu0 0.0
  %2621 = vmatpush2.msra.mxu0 %v1450
  %2622 = vmatprep.subr.mxu0 0.0
  %2623 = vmatpush2.msra.mxu0 %v1449
  %2624 = vmatprep.subr.mxu0 0.0
  %2625 = vmatpush2.msra.mxu0 %v1448
  %2626 = vmatprep.subr.mxu0 0.0
  %2627 = vmatpush2.msra.mxu0 %v1447
  %2628 = vmatprep.subr.mxu0 0.0
  %2629 = vmatpush2.msra.mxu0 %v1446
  %2630 = vmatprep.subr.mxu0 0.0
  %2631 = vmatpush2.msra.mxu0 %v1445
  %2632 = vmatprep.subr.mxu0 0.0
  %2633 = vmatpush2.msra.mxu0 %v1444
  %2634 = vmatprep.subr.mxu0 0.0
  %2635 = vmatpush2.msra.mxu0 %v1443
  %2636 = vmatprep.subr.mxu0 0.0
  %2637 = vmatpush2.msra.mxu0 %v1442
  %2638 = vmatprep.subr.mxu0 0.0
  %2639 = vmatpush2.msra.mxu0 %v1441
  %2640 = vmatprep.subr.mxu0 0.0
  %2641 = vmatpush2.msra.mxu0 %v1440
  %2642 = vmatprep.subr.mxu0 0.0
  %2643 = vmatpush2.msra.mxu0 %v1439
  %2644 = vmatprep.subr.mxu0 0.0
  %2645 = vmatpush2.msra.mxu0 %v1438
  %2646 = vmatprep.mubr.f32.mxu0 %v1240
  %2647 = vmatmul.mubr.f32.gmra.mxu0 %v1239
  %v2648 = vpop.f32.mrf.mxu0
  %v2649 = vadd.f32 %v2579, %v2648
  %v2650 = vpop.f32.mrf.mxu0
  %2651 = vdwg.mxu0
  %2652 = vmatprep.subr.mxu0 0.0
  %2653 = vmatpush1.msra.mxu0 %v1469
  %2654 = vmatprep.subr.mxu0 0.0
  %2655 = vmatpush1.msra.mxu0 %v1468
  %2656 = vmatprep.subr.mxu0 0.0
  %2657 = vmatpush1.msra.mxu0 %v1467
  %2658 = vmatprep.subr.mxu0 0.0
  %2659 = vmatpush1.msra.mxu0 %v1466
  %2660 = vmatprep.subr.mxu0 0.0
  %2661 = vmatpush1.msra.mxu0 %v1465
  %2662 = vmatprep.subr.mxu0 0.0
  %2663 = vmatpush1.msra.mxu0 %v1464
  %2664 = vmatprep.subr.mxu0 0.0
  %2665 = vmatpush1.msra.mxu0 %v1463
  %2666 = vmatprep.subr.mxu0 0.0
  %2667 = vmatpush1.msra.mxu0 %v1462
  %2668 = vmatprep.subr.mxu0 0.0
  %2669 = vmatpush1.msra.mxu0 %v1461
  %2670 = vmatprep.subr.mxu0 0.0
  %2671 = vmatpush1.msra.mxu0 %v1460
  %2672 = vmatprep.subr.mxu0 0.0
  %2673 = vmatpush1.msra.mxu0 %v1459
  %2674 = vmatprep.subr.mxu0 0.0
  %2675 = vmatpush1.msra.mxu0 %v1458
  %2676 = vmatprep.subr.mxu0 0.0
  %2677 = vmatpush1.msra.mxu0 %v1457
  %2678 = vmatprep.subr.mxu0 0.0
  %2679 = vmatpush1.msra.mxu0 %v1456
  %2680 = vmatprep.subr.mxu0 0.0
  %2681 = vmatpush1.msra.mxu0 %v1455
  %2682 = vmatprep.subr.mxu0 0.0
  %2683 = vmatpush1.msra.mxu0 %v1454
  %2684 = vmatprep.subr.mxu0 0.0
  %2685 = vmatpush2.msra.mxu0 %v1485
  %2686 = vmatprep.subr.mxu0 0.0
  %2687 = vmatpush2.msra.mxu0 %v1484
  %2688 = vmatprep.subr.mxu0 0.0
  %2689 = vmatpush2.msra.mxu0 %v1483
  %2690 = vmatprep.subr.mxu0 0.0
  %2691 = vmatpush2.msra.mxu0 %v1482
  %2692 = vmatprep.subr.mxu0 0.0
  %2693 = vmatpush2.msra.mxu0 %v1481
  %2694 = vmatprep.subr.mxu0 0.0
  %2695 = vmatpush2.msra.mxu0 %v1480
  %2696 = vmatprep.subr.mxu0 0.0
  %2697 = vmatpush2.msra.mxu0 %v1479
  %2698 = vmatprep.subr.mxu0 0.0
  %2699 = vmatpush2.msra.mxu0 %v1478
  %2700 = vmatprep.subr.mxu0 0.0
  %2701 = vmatpush2.msra.mxu0 %v1477
  %2702 = vmatprep.subr.mxu0 0.0
  %2703 = vmatpush2.msra.mxu0 %v1476
  %2704 = vmatprep.subr.mxu0 0.0
  %2705 = vmatpush2.msra.mxu0 %v1475
  %2706 = vmatprep.subr.mxu0 0.0
  %2707 = vmatpush2.msra.mxu0 %v1474
  %2708 = vmatprep.subr.mxu0 0.0
  %2709 = vmatpush2.msra.mxu0 %v1473
  %2710 = vmatprep.subr.mxu0 0.0
  %2711 = vmatpush2.msra.mxu0 %v1472
  %2712 = vmatprep.subr.mxu0 0.0
  %2713 = vmatpush2.msra.mxu0 %v1471
  %2714 = vmatprep.subr.mxu0 0.0
  %2715 = vmatpush2.msra.mxu0 %v1470
  %2716 = vmatprep.mubr.f32.mxu0 %v1242
  %2717 = vmatmul.mubr.f32.gmra.mxu0 %v1241
  %v2718 = vpop.f32.mrf.mxu0
  %v2719 = vadd.f32 %v2649, %v2718
  %v2720 = vpop.f32.mrf.mxu0
  %2721 = vdwg.mxu0
  %2722 = vmatprep.subr.mxu0 0.0
  %2723 = vmatpush1.msra.mxu0 %v1501
  %2724 = vmatprep.subr.mxu0 0.0
  %2725 = vmatpush1.msra.mxu0 %v1500
  %2726 = vmatprep.subr.mxu0 0.0
  %2727 = vmatpush1.msra.mxu0 %v1499
  %2728 = vmatprep.subr.mxu0 0.0
  %2729 = vmatpush1.msra.mxu0 %v1498
  %2730 = vmatprep.subr.mxu0 0.0
  %2731 = vmatpush1.msra.mxu0 %v1497
  %2732 = vmatprep.subr.mxu0 0.0
  %2733 = vmatpush1.msra.mxu0 %v1496
  %2734 = vmatprep.subr.mxu0 0.0
  %2735 = vmatpush1.msra.mxu0 %v1495
  %2736 = vmatprep.subr.mxu0 0.0
  %2737 = vmatpush1.msra.mxu0 %v1494
  %2738 = vmatprep.subr.mxu0 0.0
  %2739 = vmatpush1.msra.mxu0 %v1493
  %2740 = vmatprep.subr.mxu0 0.0
  %2741 = vmatpush1.msra.mxu0 %v1492
  %2742 = vmatprep.subr.mxu0 0.0
  %2743 = vmatpush1.msra.mxu0 %v1491
  %2744 = vmatprep.subr.mxu0 0.0
  %2745 = vmatpush1.msra.mxu0 %v1490
  %2746 = vmatprep.subr.mxu0 0.0
  %2747 = vmatpush1.msra.mxu0 %v1489
  %2748 = vmatprep.subr.mxu0 0.0
  %2749 = vmatpush1.msra.mxu0 %v1488
  %2750 = vmatprep.subr.mxu0 0.0
  %2751 = vmatpush1.msra.mxu0 %v1487
  %2752 = vmatprep.subr.mxu0 0.0
  %2753 = vmatpush1.msra.mxu0 %v1486
  %2754 = vmatprep.subr.mxu0 0.0
  %2755 = vmatpush2.msra.mxu0 %v1517
  %2756 = vmatprep.subr.mxu0 0.0
  %2757 = vmatpush2.msra.mxu0 %v1516
  %2758 = vmatprep.subr.mxu0 0.0
  %2759 = vmatpush2.msra.mxu0 %v1515
  %2760 = vmatprep.subr.mxu0 0.0
  %2761 = vmatpush2.msra.mxu0 %v1514
  %2762 = vmatprep.subr.mxu0 0.0
  %2763 = vmatpush2.msra.mxu0 %v1513
  %2764 = vmatprep.subr.mxu0 0.0
  %2765 = vmatpush2.msra.mxu0 %v1512
  %2766 = vmatprep.subr.mxu0 0.0
  %2767 = vmatpush2.msra.mxu0 %v1511
  %2768 = vmatprep.subr.mxu0 0.0
  %2769 = vmatpush2.msra.mxu0 %v1510
  %2770 = vmatprep.subr.mxu0 0.0
  %2771 = vmatpush2.msra.mxu0 %v1509
  %2772 = vmatprep.subr.mxu0 0.0
  %2773 = vmatpush2.msra.mxu0 %v1508
  %2774 = vmatprep.subr.mxu0 0.0
  %2775 = vmatpush2.msra.mxu0 %v1507
  %2776 = vmatprep.subr.mxu0 0.0
  %2777 = vmatpush2.msra.mxu0 %v1506
  %2778 = vmatprep.subr.mxu0 0.0
  %2779 = vmatpush2.msra.mxu0 %v1505
  %2780 = vmatprep.subr.mxu0 0.0
  %2781 = vmatpush2.msra.mxu0 %v1504
  %2782 = vmatprep.subr.mxu0 0.0
  %2783 = vmatpush2.msra.mxu0 %v1503
  %2784 = vmatprep.subr.mxu0 0.0
  %2785 = vmatpush2.msra.mxu0 %v1502
  %2786 = vmatprep.mubr.f32.mxu0 %v1244
  %2787 = vmatmul.mubr.f32.gmra.mxu0 %v1243
  %v2788 = vpop.f32.mrf.mxu0
  %v2789 = vadd.f32 %v2719, %v2788
  %v2790 = vpop.f32.mrf.mxu0
  %2791 = vdwg.mxu0
  %2792 = vmatprep.subr.mxu0 0.0
  %2793 = vmatpush1.msra.mxu0 %v1533
  %2794 = vmatprep.subr.mxu0 0.0
  %2795 = vmatpush1.msra.mxu0 %v1532
  %2796 = vmatprep.subr.mxu0 0.0
  %2797 = vmatpush1.msra.mxu0 %v1531
  %2798 = vmatprep.subr.mxu0 0.0
  %2799 = vmatpush1.msra.mxu0 %v1530
  %2800 = vmatprep.subr.mxu0 0.0
  %2801 = vmatpush1.msra.mxu0 %v1529
  %2802 = vmatprep.subr.mxu0 0.0
  %2803 = vmatpush1.msra.mxu0 %v1528
  %2804 = vmatprep.subr.mxu0 0.0
  %2805 = vmatpush1.msra.mxu0 %v1527
  %2806 = vmatprep.subr.mxu0 0.0
  %2807 = vmatpush1.msra.mxu0 %v1526
  %2808 = vmatprep.subr.mxu0 0.0
  %2809 = vmatpush1.msra.mxu0 %v1525
  %2810 = vmatprep.subr.mxu0 0.0
  %2811 = vmatpush1.msra.mxu0 %v1524
  %2812 = vmatprep.subr.mxu0 0.0
  %2813 = vmatpush1.msra.mxu0 %v1523
  %2814 = vmatprep.subr.mxu0 0.0
  %2815 = vmatpush1.msra.mxu0 %v1522
  %2816 = vmatprep.subr.mxu0 0.0
  %2817 = vmatpush1.msra.mxu0 %v1521
  %2818 = vmatprep.subr.mxu0 0.0
  %2819 = vmatpush1.msra.mxu0 %v1520
  %2820 = vmatprep.subr.mxu0 0.0
  %2821 = vmatpush1.msra.mxu0 %v1519
  %2822 = vmatprep.subr.mxu0 0.0
  %2823 = vmatpush1.msra.mxu0 %v1518
  %2824 = vmatprep.subr.mxu0 0.0
  %2825 = vmatpush2.msra.mxu0 %v1549
  %2826 = vmatprep.subr.mxu0 0.0
  %2827 = vmatpush2.msra.mxu0 %v1548
  %2828 = vmatprep.subr.mxu0 0.0
  %2829 = vmatpush2.msra.mxu0 %v1547
  %2830 = vmatprep.subr.mxu0 0.0
  %2831 = vmatpush2.msra.mxu0 %v1546
  %2832 = vmatprep.subr.mxu0 0.0
  %2833 = vmatpush2.msra.mxu0 %v1545
  %2834 = vmatprep.subr.mxu0 0.0
  %2835 = vmatpush2.msra.mxu0 %v1544
  %2836 = vmatprep.subr.mxu0 0.0
  %2837 = vmatpush2.msra.mxu0 %v1543
  %2838 = vmatprep.subr.mxu0 0.0
  %2839 = vmatpush2.msra.mxu0 %v1542
  %2840 = vmatprep.subr.mxu0 0.0
  %2841 = vmatpush2.msra.mxu0 %v1541
  %2842 = vmatprep.subr.mxu0 0.0
  %2843 = vmatpush2.msra.mxu0 %v1540
  %2844 = vmatprep.subr.mxu0 0.0
  %2845 = vmatpush2.msra.mxu0 %v1539
  %2846 = vmatprep.subr.mxu0 0.0
  %2847 = vmatpush2.msra.mxu0 %v1538
  %2848 = vmatprep.subr.mxu0 0.0
  %2849 = vmatpush2.msra.mxu0 %v1537
  %2850 = vmatprep.subr.mxu0 0.0
  %2851 = vmatpush2.msra.mxu0 %v1536
  %2852 = vmatprep.subr.mxu0 0.0
  %2853 = vmatpush2.msra.mxu0 %v1535
  %2854 = vmatprep.subr.mxu0 0.0
  %2855 = vmatpush2.msra.mxu0 %v1534
  %2856 = vmatprep.mubr.f32.mxu0 %v1246
  %2857 = vmatmul.mubr.f32.gmra.mxu0 %v1245
  %v2858 = vpop.f32.mrf.mxu0
  %v2859 = vadd.f32 %v2789, %v2858
  %v2860 = vpop.f32.mrf.mxu0
  %2861 = vdwg.mxu0
  %2862 = vmatprep.subr.mxu0 0.0
  %2863 = vmatpush1.msra.mxu0 %v1565
  %2864 = vmatprep.subr.mxu0 0.0
  %2865 = vmatpush1.msra.mxu0 %v1564
  %2866 = vmatprep.subr.mxu0 0.0
  %2867 = vmatpush1.msra.mxu0 %v1563
  %2868 = vmatprep.subr.mxu0 0.0
  %2869 = vmatpush1.msra.mxu0 %v1562
  %2870 = vmatprep.subr.mxu0 0.0
  %2871 = vmatpush1.msra.mxu0 %v1561
  %2872 = vmatprep.subr.mxu0 0.0
  %2873 = vmatpush1.msra.mxu0 %v1560
  %2874 = vmatprep.subr.mxu0 0.0
  %2875 = vmatpush1.msra.mxu0 %v1559
  %2876 = vmatprep.subr.mxu0 0.0
  %2877 = vmatpush1.msra.mxu0 %v1558
  %2878 = vmatprep.subr.mxu0 0.0
  %2879 = vmatpush1.msra.mxu0 %v1557
  %2880 = vmatprep.subr.mxu0 0.0
  %2881 = vmatpush1.msra.mxu0 %v1556
  %2882 = vmatprep.subr.mxu0 0.0
  %2883 = vmatpush1.msra.mxu0 %v1555
  %2884 = vmatprep.subr.mxu0 0.0
  %2885 = vmatpush1.msra.mxu0 %v1554
  %2886 = vmatprep.subr.mxu0 0.0
  %2887 = vmatpush1.msra.mxu0 %v1553
  %2888 = vmatprep.subr.mxu0 0.0
  %2889 = vmatpush1.msra.mxu0 %v1552
  %2890 = vmatprep.subr.mxu0 0.0
  %2891 = vmatpush1.msra.mxu0 %v1551
  %2892 = vmatprep.subr.mxu0 0.0
  %2893 = vmatpush1.msra.mxu0 %v1550
  %2894 = vmatprep.subr.mxu0 0.0
  %2895 = vmatpush2.msra.mxu0 %v1581
  %2896 = vmatprep.subr.mxu0 0.0
  %2897 = vmatpush2.msra.mxu0 %v1580
  %2898 = vmatprep.subr.mxu0 0.0
  %2899 = vmatpush2.msra.mxu0 %v1579
  %2900 = vmatprep.subr.mxu0 0.0
  %2901 = vmatpush2.msra.mxu0 %v1578
  %2902 = vmatprep.subr.mxu0 0.0
  %2903 = vmatpush2.msra.mxu0 %v1577
  %2904 = vmatprep.subr.mxu0 0.0
  %2905 = vmatpush2.msra.mxu0 %v1576
  %2906 = vmatprep.subr.mxu0 0.0
  %2907 = vmatpush2.msra.mxu0 %v1575
  %2908 = vmatprep.subr.mxu0 0.0
  %2909 = vmatpush2.msra.mxu0 %v1574
  %2910 = vmatprep.subr.mxu0 0.0
  %2911 = vmatpush2.msra.mxu0 %v1573
  %2912 = vmatprep.subr.mxu0 0.0
  %2913 = vmatpush2.msra.mxu0 %v1572
  %2914 = vmatprep.subr.mxu0 0.0
  %2915 = vmatpush2.msra.mxu0 %v1571
  %2916 = vmatprep.subr.mxu0 0.0
  %2917 = vmatpush2.msra.mxu0 %v1570
  %2918 = vmatprep.subr.mxu0 0.0
  %2919 = vmatpush2.msra.mxu0 %v1569
  %2920 = vmatprep.subr.mxu0 0.0
  %2921 = vmatpush2.msra.mxu0 %v1568
  %2922 = vmatprep.subr.mxu0 0.0
  %2923 = vmatpush2.msra.mxu0 %v1567
  %2924 = vmatprep.subr.mxu0 0.0
  %2925 = vmatpush2.msra.mxu0 %v1566
  %2926 = vmatprep.mubr.f32.mxu0 %v1248
  %2927 = vmatmul.mubr.f32.gmra.mxu0 %v1247
  %v2928 = vpop.f32.mrf.mxu0
  %v2929 = vadd.f32 %v2859, %v2928
  %v2930 = vpop.f32.mrf.mxu0
  %2931 = vdwg.mxu0
  %2932 = vmatprep.subr.mxu0 0.0
  %2933 = vmatpush1.msra.mxu0 %v1597
  %2934 = vmatprep.subr.mxu0 0.0
  %2935 = vmatpush1.msra.mxu0 %v1596
  %2936 = vmatprep.subr.mxu0 0.0
  %2937 = vmatpush1.msra.mxu0 %v1595
  %2938 = vmatprep.subr.mxu0 0.0
  %2939 = vmatpush1.msra.mxu0 %v1594
  %2940 = vmatprep.subr.mxu0 0.0
  %2941 = vmatpush1.msra.mxu0 %v1593
  %2942 = vmatprep.subr.mxu0 0.0
  %2943 = vmatpush1.msra.mxu0 %v1592
  %2944 = vmatprep.subr.mxu0 0.0
  %2945 = vmatpush1.msra.mxu0 %v1591
  %2946 = vmatprep.subr.mxu0 0.0
  %2947 = vmatpush1.msra.mxu0 %v1590
  %2948 = vmatprep.subr.mxu0 0.0
  %2949 = vmatpush1.msra.mxu0 %v1589
  %2950 = vmatprep.subr.mxu0 0.0
  %2951 = vmatpush1.msra.mxu0 %v1588
  %2952 = vmatprep.subr.mxu0 0.0
  %2953 = vmatpush1.msra.mxu0 %v1587
  %2954 = vmatprep.subr.mxu0 0.0
  %2955 = vmatpush1.msra.mxu0 %v1586
  %2956 = vmatprep.subr.mxu0 0.0
  %2957 = vmatpush1.msra.mxu0 %v1585
  %2958 = vmatprep.subr.mxu0 0.0
  %2959 = vmatpush1.msra.mxu0 %v1584
  %2960 = vmatprep.subr.mxu0 0.0
  %2961 = vmatpush1.msra.mxu0 %v1583
  %2962 = vmatprep.subr.mxu0 0.0
  %2963 = vmatpush1.msra.mxu0 %v1582
  %2964 = vmatprep.subr.mxu0 0.0
  %2965 = vmatpush2.msra.mxu0 %v1613
  %2966 = vmatprep.subr.mxu0 0.0
  %2967 = vmatpush2.msra.mxu0 %v1612
  %2968 = vmatprep.subr.mxu0 0.0
  %2969 = vmatpush2.msra.mxu0 %v1611
  %2970 = vmatprep.subr.mxu0 0.0
  %2971 = vmatpush2.msra.mxu0 %v1610
  %2972 = vmatprep.subr.mxu0 0.0
  %2973 = vmatpush2.msra.mxu0 %v1609
  %2974 = vmatprep.subr.mxu0 0.0
  %2975 = vmatpush2.msra.mxu0 %v1608
  %2976 = vmatprep.subr.mxu0 0.0
  %2977 = vmatpush2.msra.mxu0 %v1607
  %2978 = vmatprep.subr.mxu0 0.0
  %2979 = vmatpush2.msra.mxu0 %v1606
  %2980 = vmatprep.subr.mxu0 0.0
  %2981 = vmatpush2.msra.mxu0 %v1605
  %2982 = vmatprep.subr.mxu0 0.0
  %2983 = vmatpush2.msra.mxu0 %v1604
  %2984 = vmatprep.subr.mxu0 0.0
  %2985 = vmatpush2.msra.mxu0 %v1603
  %2986 = vmatprep.subr.mxu0 0.0
  %2987 = vmatpush2.msra.mxu0 %v1602
  %2988 = vmatprep.subr.mxu0 0.0
  %2989 = vmatpush2.msra.mxu0 %v1601
  %2990 = vmatprep.subr.mxu0 0.0
  %2991 = vmatpush2.msra.mxu0 %v1600
  %2992 = vmatprep.subr.mxu0 0.0
  %2993 = vmatpush2.msra.mxu0 %v1599
  %2994 = vmatprep.subr.mxu0 0.0
  %2995 = vmatpush2.msra.mxu0 %v1598
  %2996 = vmatprep.mubr.f32.mxu0 %v1250
  %2997 = vmatmul.mubr.f32.gmra.mxu0 %v1249
  %v2998 = vpop.f32.mrf.mxu0
  %v2999 = vadd.f32 %v2929, %v2998
  %v3000 = vpop.f32.mrf.mxu0
  %3001 = vdwg.mxu0
  %3002 = vmatprep.subr.mxu0 0.0
  %3003 = vmatpush1.msra.mxu0 %v1629
  %3004 = vmatprep.subr.mxu0 0.0
  %3005 = vmatpush1.msra.mxu0 %v1628
  %3006 = vmatprep.subr.mxu0 0.0
  %3007 = vmatpush1.msra.mxu0 %v1627
  %3008 = vmatprep.subr.mxu0 0.0
  %3009 = vmatpush1.msra.mxu0 %v1626
  %3010 = vmatprep.subr.mxu0 0.0
  %3011 = vmatpush1.msra.mxu0 %v1625
  %3012 = vmatprep.subr.mxu0 0.0
  %3013 = vmatpush1.msra.mxu0 %v1624
  %3014 = vmatprep.subr.mxu0 0.0
  %3015 = vmatpush1.msra.mxu0 %v1623
  %3016 = vmatprep.subr.mxu0 0.0
  %3017 = vmatpush1.msra.mxu0 %v1622
  %3018 = vmatprep.subr.mxu0 0.0
  %3019 = vmatpush1.msra.mxu0 %v1621
  %3020 = vmatprep.subr.mxu0 0.0
  %3021 = vmatpush1.msra.mxu0 %v1620
  %3022 = vmatprep.subr.mxu0 0.0
  %3023 = vmatpush1.msra.mxu0 %v1619
  %3024 = vmatprep.subr.mxu0 0.0
  %3025 = vmatpush1.msra.mxu0 %v1618
  %3026 = vmatprep.subr.mxu0 0.0
  %3027 = vmatpush1.msra.mxu0 %v1617
  %3028 = vmatprep.subr.mxu0 0.0
  %3029 = vmatpush1.msra.mxu0 %v1616
  %3030 = vmatprep.subr.mxu0 0.0
  %3031 = vmatpush1.msra.mxu0 %v1615
  %3032 = vmatprep.subr.mxu0 0.0
  %3033 = vmatpush1.msra.mxu0 %v1614
  %3034 = vmatprep.subr.mxu0 0.0
  %3035 = vmatpush2.msra.mxu0 %v1645
  %3036 = vmatprep.subr.mxu0 0.0
  %3037 = vmatpush2.msra.mxu0 %v1644
  %3038 = vmatprep.subr.mxu0 0.0
  %3039 = vmatpush2.msra.mxu0 %v1643
  %3040 = vmatprep.subr.mxu0 0.0
  %3041 = vmatpush2.msra.mxu0 %v1642
  %3042 = vmatprep.subr.mxu0 0.0
  %3043 = vmatpush2.msra.mxu0 %v1641
  %3044 = vmatprep.subr.mxu0 0.0
  %3045 = vmatpush2.msra.mxu0 %v1640
  %3046 = vmatprep.subr.mxu0 0.0
  %3047 = vmatpush2.msra.mxu0 %v1639
  %3048 = vmatprep.subr.mxu0 0.0
  %3049 = vmatpush2.msra.mxu0 %v1638
  %3050 = vmatprep.subr.mxu0 0.0
  %3051 = vmatpush2.msra.mxu0 %v1637
  %3052 = vmatprep.subr.mxu0 0.0
  %3053 = vmatpush2.msra.mxu0 %v1636
  %3054 = vmatprep.subr.mxu0 0.0
  %3055 = vmatpush2.msra.mxu0 %v1635
  %3056 = vmatprep.subr.mxu0 0.0
  %3057 = vmatpush2.msra.mxu0 %v1634
  %3058 = vmatprep.subr.mxu0 0.0
  %3059 = vmatpush2.msra.mxu0 %v1633
  %3060 = vmatprep.subr.mxu0 0.0
  %3061 = vmatpush2.msra.mxu0 %v1632
  %3062 = vmatprep.subr.mxu0 0.0
  %3063 = vmatpush2.msra.mxu0 %v1631
  %3064 = vmatprep.subr.mxu0 0.0
  %3065 = vmatpush2.msra.mxu0 %v1630
  %3066 = vmatprep.mubr.f32.mxu0 %v1252
  %3067 = vmatmul.mubr.f32.gmra.mxu0 %v1251
  %v3068 = vpop.f32.mrf.mxu0
  %v3069 = vadd.f32 %v2999, %v3068
  %v3070 = vpop.f32.mrf.mxu0
  %3071 = vdwg.mxu0
  %3072 = vmatprep.subr.mxu0 0.0
  %3073 = vmatpush1.msra.mxu0 %v1661
  %3074 = vmatprep.subr.mxu0 0.0
  %3075 = vmatpush1.msra.mxu0 %v1660
  %3076 = vmatprep.subr.mxu0 0.0
  %3077 = vmatpush1.msra.mxu0 %v1659
  %3078 = vmatprep.subr.mxu0 0.0
  %3079 = vmatpush1.msra.mxu0 %v1658
  %3080 = vmatprep.subr.mxu0 0.0
  %3081 = vmatpush1.msra.mxu0 %v1657
  %3082 = vmatprep.subr.mxu0 0.0
  %3083 = vmatpush1.msra.mxu0 %v1656
  %3084 = vmatprep.subr.mxu0 0.0
  %3085 = vmatpush1.msra.mxu0 %v1655
  %3086 = vmatprep.subr.mxu0 0.0
  %3087 = vmatpush1.msra.mxu0 %v1654
  %3088 = vmatprep.subr.mxu0 0.0
  %3089 = vmatpush1.msra.mxu0 %v1653
  %3090 = vmatprep.subr.mxu0 0.0
  %3091 = vmatpush1.msra.mxu0 %v1652
  %3092 = vmatprep.subr.mxu0 0.0
  %3093 = vmatpush1.msra.mxu0 %v1651
  %3094 = vmatprep.subr.mxu0 0.0
  %3095 = vmatpush1.msra.mxu0 %v1650
  %3096 = vmatprep.subr.mxu0 0.0
  %3097 = vmatpush1.msra.mxu0 %v1649
  %3098 = vmatprep.subr.mxu0 0.0
  %3099 = vmatpush1.msra.mxu0 %v1648
  %3100 = vmatprep.subr.mxu0 0.0
  %3101 = vmatpush1.msra.mxu0 %v1647
  %3102 = vmatprep.subr.mxu0 0.0
  %3103 = vmatpush1.msra.mxu0 %v1646
  %3104 = vmatprep.subr.mxu0 0.0
  %3105 = vmatpush2.msra.mxu0 %v1677
  %3106 = vmatprep.subr.mxu0 0.0
  %3107 = vmatpush2.msra.mxu0 %v1676
  %3108 = vmatprep.subr.mxu0 0.0
  %3109 = vmatpush2.msra.mxu0 %v1675
  %3110 = vmatprep.subr.mxu0 0.0
  %3111 = vmatpush2.msra.mxu0 %v1674
  %3112 = vmatprep.subr.mxu0 0.0
  %3113 = vmatpush2.msra.mxu0 %v1673
  %3114 = vmatprep.subr.mxu0 0.0
  %3115 = vmatpush2.msra.mxu0 %v1672
  %3116 = vmatprep.subr.mxu0 0.0
  %3117 = vmatpush2.msra.mxu0 %v1671
  %3118 = vmatprep.subr.mxu0 0.0
  %3119 = vmatpush2.msra.mxu0 %v1670
  %3120 = vmatprep.subr.mxu0 0.0
  %3121 = vmatpush2.msra.mxu0 %v1669
  %3122 = vmatprep.subr.mxu0 0.0
  %3123 = vmatpush2.msra.mxu0 %v1668
  %3124 = vmatprep.subr.mxu0 0.0
  %3125 = vmatpush2.msra.mxu0 %v1667
  %3126 = vmatprep.subr.mxu0 0.0
  %3127 = vmatpush2.msra.mxu0 %v1666
  %3128 = vmatprep.subr.mxu0 0.0
  %3129 = vmatpush2.msra.mxu0 %v1665
  %3130 = vmatprep.subr.mxu0 0.0
  %3131 = vmatpush2.msra.mxu0 %v1664
  %3132 = vmatprep.subr.mxu0 0.0
  %3133 = vmatpush2.msra.mxu0 %v1663
  %3134 = vmatprep.subr.mxu0 0.0
  %3135 = vmatpush2.msra.mxu0 %v1662
  %3136 = vmatprep.mubr.f32.mxu0 %v1254
  %3137 = vmatmul.mubr.f32.gmra.mxu0 %v1253
  %v3138 = vpop.f32.mrf.mxu0
  %v3139 = vadd.f32 %v3069, %v3138
  %v3140 = vpop.f32.mrf.mxu0
  %3141 = vdwg.mxu0
  %3142 = vmatprep.subr.mxu0 0.0
  %3143 = vmatpush1.msra.mxu0 %v1693
  %3144 = vmatprep.subr.mxu0 0.0
  %3145 = vmatpush1.msra.mxu0 %v1692
  %3146 = vmatprep.subr.mxu0 0.0
  %3147 = vmatpush1.msra.mxu0 %v1691
  %3148 = vmatprep.subr.mxu0 0.0
  %3149 = vmatpush1.msra.mxu0 %v1690
  %3150 = vmatprep.subr.mxu0 0.0
  %3151 = vmatpush1.msra.mxu0 %v1689
  %3152 = vmatprep.subr.mxu0 0.0
  %3153 = vmatpush1.msra.mxu0 %v1688
  %3154 = vmatprep.subr.mxu0 0.0
  %3155 = vmatpush1.msra.mxu0 %v1687
  %3156 = vmatprep.subr.mxu0 0.0
  %3157 = vmatpush1.msra.mxu0 %v1686
  %3158 = vmatprep.subr.mxu0 0.0
  %3159 = vmatpush1.msra.mxu0 %v1685
  %3160 = vmatprep.subr.mxu0 0.0
  %3161 = vmatpush1.msra.mxu0 %v1684
  %3162 = vmatprep.subr.mxu0 0.0
  %3163 = vmatpush1.msra.mxu0 %v1683
  %3164 = vmatprep.subr.mxu0 0.0
  %3165 = vmatpush1.msra.mxu0 %v1682
  %3166 = vmatprep.subr.mxu0 0.0
  %3167 = vmatpush1.msra.mxu0 %v1681
  %3168 = vmatprep.subr.mxu0 0.0
  %3169 = vmatpush1.msra.mxu0 %v1680
  %3170 = vmatprep.subr.mxu0 0.0
  %3171 = vmatpush1.msra.mxu0 %v1679
  %3172 = vmatprep.subr.mxu0 0.0
  %3173 = vmatpush1.msra.mxu0 %v1678
  %3174 = vmatprep.subr.mxu0 0.0
  %3175 = vmatpush2.msra.mxu0 %v1709
  %3176 = vmatprep.subr.mxu0 0.0
  %3177 = vmatpush2.msra.mxu0 %v1708
  %3178 = vmatprep.subr.mxu0 0.0
  %3179 = vmatpush2.msra.mxu0 %v1707
  %3180 = vmatprep.subr.mxu0 0.0
  %3181 = vmatpush2.msra.mxu0 %v1706
  %3182 = vmatprep.subr.mxu0 0.0
  %3183 = vmatpush2.msra.mxu0 %v1705
  %3184 = vmatprep.subr.mxu0 0.0
  %3185 = vmatpush2.msra.mxu0 %v1704
  %3186 = vmatprep.subr.mxu0 0.0
  %3187 = vmatpush2.msra.mxu0 %v1703
  %3188 = vmatprep.subr.mxu0 0.0
  %3189 = vmatpush2.msra.mxu0 %v1702
  %3190 = vmatprep.subr.mxu0 0.0
  %3191 = vmatpush2.msra.mxu0 %v1701
  %3192 = vmatprep.subr.mxu0 0.0
  %3193 = vmatpush2.msra.mxu0 %v1700
  %3194 = vmatprep.subr.mxu0 0.0
  %3195 = vmatpush2.msra.mxu0 %v1699
  %3196 = vmatprep.subr.mxu0 0.0
  %3197 = vmatpush2.msra.mxu0 %v1698
  %3198 = vmatprep.subr.mxu0 0.0
  %3199 = vmatpush2.msra.mxu0 %v1697
  %3200 = vmatprep.subr.mxu0 0.0
  %3201 = vmatpush2.msra.mxu0 %v1696
  %3202 = vmatprep.subr.mxu0 0.0
  %3203 = vmatpush2.msra.mxu0 %v1695
  %3204 = vmatprep.subr.mxu0 0.0
  %3205 = vmatpush2.msra.mxu0 %v1694
  %3206 = vmatprep.mubr.f32.mxu0 %v1256
  %3207 = vmatmul.mubr.f32.gmra.mxu0 %v1255
  %v3208 = vpop.f32.mrf.mxu0
  %v3209 = vadd.f32 %v3139, %v3208
  %v3210 = vpop.f32.mrf.mxu0
  %3211 = vdwg.mxu0
  %3212 = vmatprep.subr.mxu0 0.0
  %3213 = vmatpush1.msra.mxu0 %v1725
  %3214 = vmatprep.subr.mxu0 0.0
  %3215 = vmatpush1.msra.mxu0 %v1724
  %3216 = vmatprep.subr.mxu0 0.0
  %3217 = vmatpush1.msra.mxu0 %v1723
  %3218 = vmatprep.subr.mxu0 0.0
  %3219 = vmatpush1.msra.mxu0 %v1722
  %3220 = vmatprep.subr.mxu0 0.0
  %3221 = vmatpush1.msra.mxu0 %v1721
  %3222 = vmatprep.subr.mxu0 0.0
  %3223 = vmatpush1.msra.mxu0 %v1720
  %3224 = vmatprep.subr.mxu0 0.0
  %3225 = vmatpush1.msra.mxu0 %v1719
  %3226 = vmatprep.subr.mxu0 0.0
  %3227 = vmatpush1.msra.mxu0 %v1718
  %3228 = vmatprep.subr.mxu0 0.0
  %3229 = vmatpush1.msra.mxu0 %v1717
  %3230 = vmatprep.subr.mxu0 0.0
  %3231 = vmatpush1.msra.mxu0 %v1716
  %3232 = vmatprep.subr.mxu0 0.0
  %3233 = vmatpush1.msra.mxu0 %v1715
  %3234 = vmatprep.subr.mxu0 0.0
  %3235 = vmatpush1.msra.mxu0 %v1714
  %3236 = vmatprep.subr.mxu0 0.0
  %3237 = vmatpush1.msra.mxu0 %v1713
  %3238 = vmatprep.subr.mxu0 0.0
  %3239 = vmatpush1.msra.mxu0 %v1712
  %3240 = vmatprep.subr.mxu0 0.0
  %3241 = vmatpush1.msra.mxu0 %v1711
  %3242 = vmatprep.subr.mxu0 0.0
  %3243 = vmatpush1.msra.mxu0 %v1710
  %3244 = vmatprep.subr.mxu0 0.0
  %3245 = vmatpush2.msra.mxu0 %v1741
  %3246 = vmatprep.subr.mxu0 0.0
  %3247 = vmatpush2.msra.mxu0 %v1740
  %3248 = vmatprep.subr.mxu0 0.0
  %3249 = vmatpush2.msra.mxu0 %v1739
  %3250 = vmatprep.subr.mxu0 0.0
  %3251 = vmatpush2.msra.mxu0 %v1738
  %3252 = vmatprep.subr.mxu0 0.0
  %3253 = vmatpush2.msra.mxu0 %v1737
  %3254 = vmatprep.subr.mxu0 0.0
  %3255 = vmatpush2.msra.mxu0 %v1736
  %3256 = vmatprep.subr.mxu0 0.0
  %3257 = vmatpush2.msra.mxu0 %v1735
  %3258 = vmatprep.subr.mxu0 0.0
  %3259 = vmatpush2.msra.mxu0 %v1734
  %3260 = vmatprep.subr.mxu0 0.0
  %3261 = vmatpush2.msra.mxu0 %v1733
  %3262 = vmatprep.subr.mxu0 0.0
  %3263 = vmatpush2.msra.mxu0 %v1732
  %3264 = vmatprep.subr.mxu0 0.0
  %3265 = vmatpush2.msra.mxu0 %v1731
  %3266 = vmatprep.subr.mxu0 0.0
  %3267 = vmatpush2.msra.mxu0 %v1730
  %3268 = vmatprep.subr.mxu0 0.0
  %3269 = vmatpush2.msra.mxu0 %v1729
  %3270 = vmatprep.subr.mxu0 0.0
  %3271 = vmatpush2.msra.mxu0 %v1728
  %3272 = vmatprep.subr.mxu0 0.0
  %3273 = vmatpush2.msra.mxu0 %v1727
  %3274 = vmatprep.subr.mxu0 0.0
  %3275 = vmatpush2.msra.mxu0 %v1726
  %3276 = vmatprep.mubr.f32.mxu0 %v1258
  %3277 = vmatmul.mubr.f32.gmra.mxu0 %v1257
  %v3278 = vpop.f32.mrf.mxu0
  %v3279 = vadd.f32 %v3209, %v3278
  %v3280 = vpop.f32.mrf.mxu0
  %3281 = vdwg.mxu0
  %3282 = vmatprep.subr.mxu0 0.0
  %3283 = vmatpush1.msra.mxu0 %v1757
  %3284 = vmatprep.subr.mxu0 0.0
  %3285 = vmatpush1.msra.mxu0 %v1756
  %3286 = vmatprep.subr.mxu0 0.0
  %3287 = vmatpush1.msra.mxu0 %v1755
  %3288 = vmatprep.subr.mxu0 0.0
  %3289 = vmatpush1.msra.mxu0 %v1754
  %3290 = vmatprep.subr.mxu0 0.0
  %3291 = vmatpush1.msra.mxu0 %v1753
  %3292 = vmatprep.subr.mxu0 0.0
  %3293 = vmatpush1.msra.mxu0 %v1752
  %3294 = vmatprep.subr.mxu0 0.0
  %3295 = vmatpush1.msra.mxu0 %v1751
  %3296 = vmatprep.subr.mxu0 0.0
  %3297 = vmatpush1.msra.mxu0 %v1750
  %3298 = vmatprep.subr.mxu0 0.0
  %3299 = vmatpush1.msra.mxu0 %v1749
  %3300 = vmatprep.subr.mxu0 0.0
  %3301 = vmatpush1.msra.mxu0 %v1748
  %3302 = vmatprep.subr.mxu0 0.0
  %3303 = vmatpush1.msra.mxu0 %v1747
  %3304 = vmatprep.subr.mxu0 0.0
  %3305 = vmatpush1.msra.mxu0 %v1746
  %3306 = vmatprep.subr.mxu0 0.0
  %3307 = vmatpush1.msra.mxu0 %v1745
  %3308 = vmatprep.subr.mxu0 0.0
  %3309 = vmatpush1.msra.mxu0 %v1744
  %3310 = vmatprep.subr.mxu0 0.0
  %3311 = vmatpush1.msra.mxu0 %v1743
  %3312 = vmatprep.subr.mxu0 0.0
  %3313 = vmatpush1.msra.mxu0 %v1742
  %3314 = vmatprep.subr.mxu0 0.0
  %3315 = vmatpush2.msra.mxu0 %v1773
  %3316 = vmatprep.subr.mxu0 0.0
  %3317 = vmatpush2.msra.mxu0 %v1772
  %3318 = vmatprep.subr.mxu0 0.0
  %3319 = vmatpush2.msra.mxu0 %v1771
  %3320 = vmatprep.subr.mxu0 0.0
  %3321 = vmatpush2.msra.mxu0 %v1770
  %3322 = vmatprep.subr.mxu0 0.0
  %3323 = vmatpush2.msra.mxu0 %v1769
  %3324 = vmatprep.subr.mxu0 0.0
  %3325 = vmatpush2.msra.mxu0 %v1768
  %3326 = vmatprep.subr.mxu0 0.0
  %3327 = vmatpush2.msra.mxu0 %v1767
  %3328 = vmatprep.subr.mxu0 0.0
  %3329 = vmatpush2.msra.mxu0 %v1766
  %3330 = vmatprep.subr.mxu0 0.0
  %3331 = vmatpush2.msra.mxu0 %v1765
  %3332 = vmatprep.subr.mxu0 0.0
  %3333 = vmatpush2.msra.mxu0 %v1764
  %3334 = vmatprep.subr.mxu0 0.0
  %3335 = vmatpush2.msra.mxu0 %v1763
  %3336 = vmatprep.subr.mxu0 0.0
  %3337 = vmatpush2.msra.mxu0 %v1762
  %3338 = vmatprep.subr.mxu0 0.0
  %3339 = vmatpush2.msra.mxu0 %v1761
  %3340 = vmatprep.subr.mxu0 0.0
  %3341 = vmatpush2.msra.mxu0 %v1760
  %3342 = vmatprep.subr.mxu0 0.0
  %3343 = vmatpush2.msra.mxu0 %v1759
  %3344 = vmatprep.subr.mxu0 0.0
  %3345 = vmatpush2.msra.mxu0 %v1758
  %3346 = vmatprep.mubr.f32.mxu0 %v1260
  %3347 = vmatmul.mubr.f32.gmra.mxu0 %v1259
  %v3348 = vpop.f32.mrf.mxu0
  %v3349 = vadd.f32 %v3279, %v3348
  %v3350 = vpop.f32.mrf.mxu0
  %3351 = vdwg.mxu0
  %3352 = vmatprep.subr.mxu0 0.0
  %3353 = vmatpush1.msra.mxu0 %v1789
  %3354 = vmatprep.subr.mxu0 0.0
  %3355 = vmatpush1.msra.mxu0 %v1788
  %3356 = vmatprep.subr.mxu0 0.0
  %3357 = vmatpush1.msra.mxu0 %v1787
  %3358 = vmatprep.subr.mxu0 0.0
  %3359 = vmatpush1.msra.mxu0 %v1786
  %3360 = vmatprep.subr.mxu0 0.0
  %3361 = vmatpush1.msra.mxu0 %v1785
  %3362 = vmatprep.subr.mxu0 0.0
  %3363 = vmatpush1.msra.mxu0 %v1784
  %3364 = vmatprep.subr.mxu0 0.0
  %3365 = vmatpush1.msra.mxu0 %v1783
  %3366 = vmatprep.subr.mxu0 0.0
  %3367 = vmatpush1.msra.mxu0 %v1782
  %3368 = vmatprep.subr.mxu0 0.0
  %3369 = vmatpush1.msra.mxu0 %v1781
  %3370 = vmatprep.subr.mxu0 0.0
  %3371 = vmatpush1.msra.mxu0 %v1780
  %3372 = vmatprep.subr.mxu0 0.0
  %3373 = vmatpush1.msra.mxu0 %v1779
  %3374 = vmatprep.subr.mxu0 0.0
  %3375 = vmatpush1.msra.mxu0 %v1778
  %3376 = vmatprep.subr.mxu0 0.0
  %3377 = vmatpush1.msra.mxu0 %v1777
  %3378 = vmatprep.subr.mxu0 0.0
  %3379 = vmatpush1.msra.mxu0 %v1776
  %3380 = vmatprep.subr.mxu0 0.0
  %3381 = vmatpush1.msra.mxu0 %v1775
  %3382 = vmatprep.subr.mxu0 0.0
  %3383 = vmatpush1.msra.mxu0 %v1774
  %3384 = vmatprep.subr.mxu0 0.0
  %3385 = vmatpush2.msra.mxu0 %v1805
  %3386 = vmatprep.subr.mxu0 0.0
  %3387 = vmatpush2.msra.mxu0 %v1804
  %3388 = vmatprep.subr.mxu0 0.0
  %3389 = vmatpush2.msra.mxu0 %v1803
  %3390 = vmatprep.subr.mxu0 0.0
  %3391 = vmatpush2.msra.mxu0 %v1802
  %3392 = vmatprep.subr.mxu0 0.0
  %3393 = vmatpush2.msra.mxu0 %v1801
  %3394 = vmatprep.subr.mxu0 0.0
  %3395 = vmatpush2.msra.mxu0 %v1800
  %3396 = vmatprep.subr.mxu0 0.0
  %3397 = vmatpush2.msra.mxu0 %v1799
  %3398 = vmatprep.subr.mxu0 0.0
  %3399 = vmatpush2.msra.mxu0 %v1798
  %3400 = vmatprep.subr.mxu0 0.0
  %3401 = vmatpush2.msra.mxu0 %v1797
  %3402 = vmatprep.subr.mxu0 0.0
  %3403 = vmatpush2.msra.mxu0 %v1796
  %3404 = vmatprep.subr.mxu0 0.0
  %3405 = vmatpush2.msra.mxu0 %v1795
  %3406 = vmatprep.subr.mxu0 0.0
  %3407 = vmatpush2.msra.mxu0 %v1794
  %3408 = vmatprep.subr.mxu0 0.0
  %3409 = vmatpush2.msra.mxu0 %v1793
  %3410 = vmatprep.subr.mxu0 0.0
  %3411 = vmatpush2.msra.mxu0 %v1792
  %3412 = vmatprep.subr.mxu0 0.0
  %3413 = vmatpush2.msra.mxu0 %v1791
  %3414 = vmatprep.subr.mxu0 0.0
  %3415 = vmatpush2.msra.mxu0 %v1790
  %3416 = vmatprep.mubr.f32.mxu0 %v1262
  %3417 = vmatmul.mubr.f32.gmra.mxu0 %v1261
  %v3418 = vpop.f32.mrf.mxu0
  %v3419 = vadd.f32 %v3349, %v3418
  %v3420 = vpop.f32.mrf.mxu0
  %3421 = vdwg.mxu0
  %3422 = vmatprep.subr.mxu0 0.0
  %3423 = vmatpush1.msra.mxu0 %v1821
  %3424 = vmatprep.subr.mxu0 0.0
  %3425 = vmatpush1.msra.mxu0 %v1820
  %3426 = vmatprep.subr.mxu0 0.0
  %3427 = vmatpush1.msra.mxu0 %v1819
  %3428 = vmatprep.subr.mxu0 0.0
  %3429 = vmatpush1.msra.mxu0 %v1818
  %3430 = vmatprep.subr.mxu0 0.0
  %3431 = vmatpush1.msra.mxu0 %v1817
  %3432 = vmatprep.subr.mxu0 0.0
  %3433 = vmatpush1.msra.mxu0 %v1816
  %3434 = vmatprep.subr.mxu0 0.0
  %3435 = vmatpush1.msra.mxu0 %v1815
  %3436 = vmatprep.subr.mxu0 0.0
  %3437 = vmatpush1.msra.mxu0 %v1814
  %3438 = vmatprep.subr.mxu0 0.0
  %3439 = vmatpush1.msra.mxu0 %v1813
  %3440 = vmatprep.subr.mxu0 0.0
  %3441 = vmatpush1.msra.mxu0 %v1812
  %3442 = vmatprep.subr.mxu0 0.0
  %3443 = vmatpush1.msra.mxu0 %v1811
  %3444 = vmatprep.subr.mxu0 0.0
  %3445 = vmatpush1.msra.mxu0 %v1810
  %3446 = vmatprep.subr.mxu0 0.0
  %3447 = vmatpush1.msra.mxu0 %v1809
  %3448 = vmatprep.subr.mxu0 0.0
  %3449 = vmatpush1.msra.mxu0 %v1808
  %3450 = vmatprep.subr.mxu0 0.0
  %3451 = vmatpush1.msra.mxu0 %v1807
  %3452 = vmatprep.subr.mxu0 0.0
  %3453 = vmatpush1.msra.mxu0 %v1806
  %3454 = vmatprep.subr.mxu0 0.0
  %3455 = vmatpush2.msra.mxu0 %v1837
  %3456 = vmatprep.subr.mxu0 0.0
  %3457 = vmatpush2.msra.mxu0 %v1836
  %3458 = vmatprep.subr.mxu0 0.0
  %3459 = vmatpush2.msra.mxu0 %v1835
  %3460 = vmatprep.subr.mxu0 0.0
  %3461 = vmatpush2.msra.mxu0 %v1834
  %3462 = vmatprep.subr.mxu0 0.0
  %3463 = vmatpush2.msra.mxu0 %v1833
  %3464 = vmatprep.subr.mxu0 0.0
  %3465 = vmatpush2.msra.mxu0 %v1832
  %3466 = vmatprep.subr.mxu0 0.0
  %3467 = vmatpush2.msra.mxu0 %v1831
  %3468 = vmatprep.subr.mxu0 0.0
  %3469 = vmatpush2.msra.mxu0 %v1830
  %3470 = vmatprep.subr.mxu0 0.0
  %3471 = vmatpush2.msra.mxu0 %v1829
  %3472 = vmatprep.subr.mxu0 0.0
  %3473 = vmatpush2.msra.mxu0 %v1828
  %3474 = vmatprep.subr.mxu0 0.0
  %3475 = vmatpush2.msra.mxu0 %v1827
  %3476 = vmatprep.subr.mxu0 0.0
  %3477 = vmatpush2.msra.mxu0 %v1826
  %3478 = vmatprep.subr.mxu0 0.0
  %3479 = vmatpush2.msra.mxu0 %v1825
  %3480 = vmatprep.subr.mxu0 0.0
  %3481 = vmatpush2.msra.mxu0 %v1824
  %3482 = vmatprep.subr.mxu0 0.0
  %3483 = vmatpush2.msra.mxu0 %v1823
  %3484 = vmatprep.subr.mxu0 0.0
  %3485 = vmatpush2.msra.mxu0 %v1822
  %3486 = vmatprep.mubr.f32.mxu0 %v1264
  %3487 = vmatmul.mubr.f32.gmra.mxu0 %v1263
  %v3488 = vpop.f32.mrf.mxu0
  %v3489 = vadd.f32 %v3419, %v3488
  %v3490 = vpop.f32.mrf.mxu0
  %3491 = vdwg.mxu0
  %3492 = vmatprep.subr.mxu0 0.0
  %3493 = vmatpush1.msra.mxu0 %v1853
  %3494 = vmatprep.subr.mxu0 0.0
  %3495 = vmatpush1.msra.mxu0 %v1852
  %3496 = vmatprep.subr.mxu0 0.0
  %3497 = vmatpush1.msra.mxu0 %v1851
  %3498 = vmatprep.subr.mxu0 0.0
  %3499 = vmatpush1.msra.mxu0 %v1850
  %3500 = vmatprep.subr.mxu0 0.0
  %3501 = vmatpush1.msra.mxu0 %v1849
  %3502 = vmatprep.subr.mxu0 0.0
  %3503 = vmatpush1.msra.mxu0 %v1848
  %3504 = vmatprep.subr.mxu0 0.0
  %3505 = vmatpush1.msra.mxu0 %v1847
  %3506 = vmatprep.subr.mxu0 0.0
  %3507 = vmatpush1.msra.mxu0 %v1846
  %3508 = vmatprep.subr.mxu0 0.0
  %3509 = vmatpush1.msra.mxu0 %v1845
  %3510 = vmatprep.subr.mxu0 0.0
  %3511 = vmatpush1.msra.mxu0 %v1844
  %3512 = vmatprep.subr.mxu0 0.0
  %3513 = vmatpush1.msra.mxu0 %v1843
  %3514 = vmatprep.subr.mxu0 0.0
  %3515 = vmatpush1.msra.mxu0 %v1842
  %3516 = vmatprep.subr.mxu0 0.0
  %3517 = vmatpush1.msra.mxu0 %v1841
  %3518 = vmatprep.subr.mxu0 0.0
  %3519 = vmatpush1.msra.mxu0 %v1840
  %3520 = vmatprep.subr.mxu0 0.0
  %3521 = vmatpush1.msra.mxu0 %v1839
  %3522 = vmatprep.subr.mxu0 0.0
  %3523 = vmatpush1.msra.mxu0 %v1838
  %3524 = vmatprep.subr.mxu0 0.0
  %3525 = vmatpush2.msra.mxu0 %v1869
  %3526 = vmatprep.subr.mxu0 0.0
  %3527 = vmatpush2.msra.mxu0 %v1868
  %3528 = vmatprep.subr.mxu0 0.0
  %3529 = vmatpush2.msra.mxu0 %v1867
  %3530 = vmatprep.subr.mxu0 0.0
  %3531 = vmatpush2.msra.mxu0 %v1866
  %3532 = vmatprep.subr.mxu0 0.0
  %3533 = vmatpush2.msra.mxu0 %v1865
  %3534 = vmatprep.subr.mxu0 0.0
  %3535 = vmatpush2.msra.mxu0 %v1864
  %3536 = vmatprep.subr.mxu0 0.0
  %3537 = vmatpush2.msra.mxu0 %v1863
  %3538 = vmatprep.subr.mxu0 0.0
  %3539 = vmatpush2.msra.mxu0 %v1862
  %3540 = vmatprep.subr.mxu0 0.0
  %3541 = vmatpush2.msra.mxu0 %v1861
  %3542 = vmatprep.subr.mxu0 0.0
  %3543 = vmatpush2.msra.mxu0 %v1860
  %3544 = vmatprep.subr.mxu0 0.0
  %3545 = vmatpush2.msra.mxu0 %v1859
  %3546 = vmatprep.subr.mxu0 0.0
  %3547 = vmatpush2.msra.mxu0 %v1858
  %3548 = vmatprep.subr.mxu0 0.0
  %3549 = vmatpush2.msra.mxu0 %v1857
  %3550 = vmatprep.subr.mxu0 0.0
  %3551 = vmatpush2.msra.mxu0 %v1856
  %3552 = vmatprep.subr.mxu0 0.0
  %3553 = vmatpush2.msra.mxu0 %v1855
  %3554 = vmatprep.subr.mxu0 0.0
  %3555 = vmatpush2.msra.mxu0 %v1854
  %3556 = vmatprep.mubr.f32.mxu0 %v1266
  %3557 = vmatmul.mubr.f32.gmra.mxu0 %v1265
  %v3558 = vpop.f32.mrf.mxu0
  %v3559 = vadd.f32 %v3489, %v3558
  %v3560 = vpop.f32.mrf.mxu0
  %3561 = vdwg.mxu0
  %3562 = vmatprep.subr.mxu0 0.0
  %3563 = vmatpush1.msra.mxu0 %v1885
  %3564 = vmatprep.subr.mxu0 0.0
  %3565 = vmatpush1.msra.mxu0 %v1884
  %3566 = vmatprep.subr.mxu0 0.0
  %3567 = vmatpush1.msra.mxu0 %v1883
  %3568 = vmatprep.subr.mxu0 0.0
  %3569 = vmatpush1.msra.mxu0 %v1882
  %3570 = vmatprep.subr.mxu0 0.0
  %3571 = vmatpush1.msra.mxu0 %v1881
  %3572 = vmatprep.subr.mxu0 0.0
  %3573 = vmatpush1.msra.mxu0 %v1880
  %3574 = vmatprep.subr.mxu0 0.0
  %3575 = vmatpush1.msra.mxu0 %v1879
  %3576 = vmatprep.subr.mxu0 0.0
  %3577 = vmatpush1.msra.mxu0 %v1878
  %3578 = vmatprep.subr.mxu0 0.0
  %3579 = vmatpush1.msra.mxu0 %v1877
  %3580 = vmatprep.subr.mxu0 0.0
  %3581 = vmatpush1.msra.mxu0 %v1876
  %3582 = vmatprep.subr.mxu0 0.0
  %3583 = vmatpush1.msra.mxu0 %v1875
  %3584 = vmatprep.subr.mxu0 0.0
  %3585 = vmatpush1.msra.mxu0 %v1874
  %3586 = vmatprep.subr.mxu0 0.0
  %3587 = vmatpush1.msra.mxu0 %v1873
  %3588 = vmatprep.subr.mxu0 0.0
  %3589 = vmatpush1.msra.mxu0 %v1872
  %3590 = vmatprep.subr.mxu0 0.0
  %3591 = vmatpush1.msra.mxu0 %v1871
  %3592 = vmatprep.subr.mxu0 0.0
  %3593 = vmatpush1.msra.mxu0 %v1870
  %3594 = vmatprep.subr.mxu0 0.0
  %3595 = vmatpush2.msra.mxu0 %v1901
  %3596 = vmatprep.subr.mxu0 0.0
  %3597 = vmatpush2.msra.mxu0 %v1900
  %3598 = vmatprep.subr.mxu0 0.0
  %3599 = vmatpush2.msra.mxu0 %v1899
  %3600 = vmatprep.subr.mxu0 0.0
  %3601 = vmatpush2.msra.mxu0 %v1898
  %3602 = vmatprep.subr.mxu0 0.0
  %3603 = vmatpush2.msra.mxu0 %v1897
  %3604 = vmatprep.subr.mxu0 0.0
  %3605 = vmatpush2.msra.mxu0 %v1896
  %3606 = vmatprep.subr.mxu0 0.0
  %3607 = vmatpush2.msra.mxu0 %v1895
  %3608 = vmatprep.subr.mxu0 0.0
  %3609 = vmatpush2.msra.mxu0 %v1894
  %3610 = vmatprep.subr.mxu0 0.0
  %3611 = vmatpush2.msra.mxu0 %v1893
  %3612 = vmatprep.subr.mxu0 0.0
  %3613 = vmatpush2.msra.mxu0 %v1892
  %3614 = vmatprep.subr.mxu0 0.0
  %3615 = vmatpush2.msra.mxu0 %v1891
  %3616 = vmatprep.subr.mxu0 0.0
  %3617 = vmatpush2.msra.mxu0 %v1890
  %3618 = vmatprep.subr.mxu0 0.0
  %3619 = vmatpush2.msra.mxu0 %v1889
  %3620 = vmatprep.subr.mxu0 0.0
  %3621 = vmatpush2.msra.mxu0 %v1888
  %3622 = vmatprep.subr.mxu0 0.0
  %3623 = vmatpush2.msra.mxu0 %v1887
  %3624 = vmatprep.subr.mxu0 0.0
  %3625 = vmatpush2.msra.mxu0 %v1886
  %3626 = vmatprep.mubr.f32.mxu0 %v1268
  %3627 = vmatmul.mubr.f32.gmra.mxu0 %v1267
  %v3628 = vpop.f32.mrf.mxu0
  %v3629 = vadd.f32 %v3559, %v3628
  %v3630 = vpop.f32.mrf.mxu0
  %3631 = vdwg.mxu0
  %3632 = vmatprep.subr.mxu0 0.0
  %3633 = vmatpush1.msra.mxu0 %v1917
  %3634 = vmatprep.subr.mxu0 0.0
  %3635 = vmatpush1.msra.mxu0 %v1916
  %3636 = vmatprep.subr.mxu0 0.0
  %3637 = vmatpush1.msra.mxu0 %v1915
  %3638 = vmatprep.subr.mxu0 0.0
  %3639 = vmatpush1.msra.mxu0 %v1914
  %3640 = vmatprep.subr.mxu0 0.0
  %3641 = vmatpush1.msra.mxu0 %v1913
  %3642 = vmatprep.subr.mxu0 0.0
  %3643 = vmatpush1.msra.mxu0 %v1912
  %3644 = vmatprep.subr.mxu0 0.0
  %3645 = vmatpush1.msra.mxu0 %v1911
  %3646 = vmatprep.subr.mxu0 0.0
  %3647 = vmatpush1.msra.mxu0 %v1910
  %3648 = vmatprep.subr.mxu0 0.0
  %3649 = vmatpush1.msra.mxu0 %v1909
  %3650 = vmatprep.subr.mxu0 0.0
  %3651 = vmatpush1.msra.mxu0 %v1908
  %3652 = vmatprep.subr.mxu0 0.0
  %3653 = vmatpush1.msra.mxu0 %v1907
  %3654 = vmatprep.subr.mxu0 0.0
  %3655 = vmatpush1.msra.mxu0 %v1906
  %3656 = vmatprep.subr.mxu0 0.0
  %3657 = vmatpush1.msra.mxu0 %v1905
  %3658 = vmatprep.subr.mxu0 0.0
  %3659 = vmatpush1.msra.mxu0 %v1904
  %3660 = vmatprep.subr.mxu0 0.0
  %3661 = vmatpush1.msra.mxu0 %v1903
  %3662 = vmatprep.subr.mxu0 0.0
  %3663 = vmatpush1.msra.mxu0 %v1902
  %3664 = vmatprep.subr.mxu0 0.0
  %3665 = vmatpush2.msra.mxu0 %v1933
  %3666 = vmatprep.subr.mxu0 0.0
  %3667 = vmatpush2.msra.mxu0 %v1932
  %3668 = vmatprep.subr.mxu0 0.0
  %3669 = vmatpush2.msra.mxu0 %v1931
  %3670 = vmatprep.subr.mxu0 0.0
  %3671 = vmatpush2.msra.mxu0 %v1930
  %3672 = vmatprep.subr.mxu0 0.0
  %3673 = vmatpush2.msra.mxu0 %v1929
  %3674 = vmatprep.subr.mxu0 0.0
  %3675 = vmatpush2.msra.mxu0 %v1928
  %3676 = vmatprep.subr.mxu0 0.0
  %3677 = vmatpush2.msra.mxu0 %v1927
  %3678 = vmatprep.subr.mxu0 0.0
  %3679 = vmatpush2.msra.mxu0 %v1926
  %3680 = vmatprep.subr.mxu0 0.0
  %3681 = vmatpush2.msra.mxu0 %v1925
  %3682 = vmatprep.subr.mxu0 0.0
  %3683 = vmatpush2.msra.mxu0 %v1924
  %3684 = vmatprep.subr.mxu0 0.0
  %3685 = vmatpush2.msra.mxu0 %v1923
  %3686 = vmatprep.subr.mxu0 0.0
  %3687 = vmatpush2.msra.mxu0 %v1922
  %3688 = vmatprep.subr.mxu0 0.0
  %3689 = vmatpush2.msra.mxu0 %v1921
  %3690 = vmatprep.subr.mxu0 0.0
  %3691 = vmatpush2.msra.mxu0 %v1920
  %3692 = vmatprep.subr.mxu0 0.0
  %3693 = vmatpush2.msra.mxu0 %v1919
  %3694 = vmatprep.subr.mxu0 0.0
  %3695 = vmatpush2.msra.mxu0 %v1918
  %3696 = vmatprep.mubr.f32.mxu0 %v1270
  %3697 = vmatmul.mubr.f32.gmra.mxu0 %v1269
  %v3698 = vpop.f32.mrf.mxu0
  %v3699 = vadd.f32 %v3629, %v3698
  %v3700 = vpop.f32.mrf.mxu0
  %3701 = vdwg.mxu0
  %3702 = vmatprep.subr.mxu0 0.0
  %3703 = vmatpush1.msra.mxu0 %v1949
  %3704 = vmatprep.subr.mxu0 0.0
  %3705 = vmatpush1.msra.mxu0 %v1948
  %3706 = vmatprep.subr.mxu0 0.0
  %3707 = vmatpush1.msra.mxu0 %v1947
  %3708 = vmatprep.subr.mxu0 0.0
  %3709 = vmatpush1.msra.mxu0 %v1946
  %3710 = vmatprep.subr.mxu0 0.0
  %3711 = vmatpush1.msra.mxu0 %v1945
  %3712 = vmatprep.subr.mxu0 0.0
  %3713 = vmatpush1.msra.mxu0 %v1944
  %3714 = vmatprep.subr.mxu0 0.0
  %3715 = vmatpush1.msra.mxu0 %v1943
  %3716 = vmatprep.subr.mxu0 0.0
  %3717 = vmatpush1.msra.mxu0 %v1942
  %3718 = vmatprep.subr.mxu0 0.0
  %3719 = vmatpush1.msra.mxu0 %v1941
  %3720 = vmatprep.subr.mxu0 0.0
  %3721 = vmatpush1.msra.mxu0 %v1940
  %3722 = vmatprep.subr.mxu0 0.0
  %3723 = vmatpush1.msra.mxu0 %v1939
  %3724 = vmatprep.subr.mxu0 0.0
  %3725 = vmatpush1.msra.mxu0 %v1938
  %3726 = vmatprep.subr.mxu0 0.0
  %3727 = vmatpush1.msra.mxu0 %v1937
  %3728 = vmatprep.subr.mxu0 0.0
  %3729 = vmatpush1.msra.mxu0 %v1936
  %3730 = vmatprep.subr.mxu0 0.0
  %3731 = vmatpush1.msra.mxu0 %v1935
  %3732 = vmatprep.subr.mxu0 0.0
  %3733 = vmatpush1.msra.mxu0 %v1934
  %3734 = vmatprep.subr.mxu0 0.0
  %3735 = vmatpush2.msra.mxu0 %v1965
  %3736 = vmatprep.subr.mxu0 0.0
  %3737 = vmatpush2.msra.mxu0 %v1964
  %3738 = vmatprep.subr.mxu0 0.0
  %3739 = vmatpush2.msra.mxu0 %v1963
  %3740 = vmatprep.subr.mxu0 0.0
  %3741 = vmatpush2.msra.mxu0 %v1962
  %3742 = vmatprep.subr.mxu0 0.0
  %3743 = vmatpush2.msra.mxu0 %v1961
  %3744 = vmatprep.subr.mxu0 0.0
  %3745 = vmatpush2.msra.mxu0 %v1960
  %3746 = vmatprep.subr.mxu0 0.0
  %3747 = vmatpush2.msra.mxu0 %v1959
  %3748 = vmatprep.subr.mxu0 0.0
  %3749 = vmatpush2.msra.mxu0 %v1958
  %3750 = vmatprep.subr.mxu0 0.0
  %3751 = vmatpush2.msra.mxu0 %v1957
  %3752 = vmatprep.subr.mxu0 0.0
  %3753 = vmatpush2.msra.mxu0 %v1956
  %3754 = vmatprep.subr.mxu0 0.0
  %3755 = vmatpush2.msra.mxu0 %v1955
  %3756 = vmatprep.subr.mxu0 0.0
  %3757 = vmatpush2.msra.mxu0 %v1954
  %3758 = vmatprep.subr.mxu0 0.0
  %3759 = vmatpush2.msra.mxu0 %v1953
  %3760 = vmatprep.subr.mxu0 0.0
  %3761 = vmatpush2.msra.mxu0 %v1952
  %3762 = vmatprep.subr.mxu0 0.0
  %3763 = vmatpush2.msra.mxu0 %v1951
  %3764 = vmatprep.subr.mxu0 0.0
  %3765 = vmatpush2.msra.mxu0 %v1950
  %3766 = vmatprep.mubr.f32.mxu0 %v1272
  %3767 = vmatmul.mubr.f32.gmra.mxu0 %v1271
  %v3768 = vpop.f32.mrf.mxu0
  %v3769 = vadd.f32 %v3699, %v3768
  %v3770 = vpop.f32.mrf.mxu0
  %3771 = vdwg.mxu0
  %3772 = vmatprep.subr.mxu0 0.0
  %3773 = vmatpush1.msra.mxu0 %v1981
  %3774 = vmatprep.subr.mxu0 0.0
  %3775 = vmatpush1.msra.mxu0 %v1980
  %3776 = vmatprep.subr.mxu0 0.0
  %3777 = vmatpush1.msra.mxu0 %v1979
  %3778 = vmatprep.subr.mxu0 0.0
  %3779 = vmatpush1.msra.mxu0 %v1978
  %3780 = vmatprep.subr.mxu0 0.0
  %3781 = vmatpush1.msra.mxu0 %v1977
  %3782 = vmatprep.subr.mxu0 0.0
  %3783 = vmatpush1.msra.mxu0 %v1976
  %3784 = vmatprep.subr.mxu0 0.0
  %3785 = vmatpush1.msra.mxu0 %v1975
  %3786 = vmatprep.subr.mxu0 0.0
  %3787 = vmatpush1.msra.mxu0 %v1974
  %3788 = vmatprep.subr.mxu0 0.0
  %3789 = vmatpush1.msra.mxu0 %v1973
  %3790 = vmatprep.subr.mxu0 0.0
  %3791 = vmatpush1.msra.mxu0 %v1972
  %3792 = vmatprep.subr.mxu0 0.0
  %3793 = vmatpush1.msra.mxu0 %v1971
  %3794 = vmatprep.subr.mxu0 0.0
  %3795 = vmatpush1.msra.mxu0 %v1970
  %3796 = vmatprep.subr.mxu0 0.0
  %3797 = vmatpush1.msra.mxu0 %v1969
  %3798 = vmatprep.subr.mxu0 0.0
  %3799 = vmatpush1.msra.mxu0 %v1968
  %3800 = vmatprep.subr.mxu0 0.0
  %3801 = vmatpush1.msra.mxu0 %v1967
  %3802 = vmatprep.subr.mxu0 0.0
  %3803 = vmatpush1.msra.mxu0 %v1966
  %3804 = vmatprep.subr.mxu0 0.0
  %3805 = vmatpush2.msra.mxu0 %v1997
  %3806 = vmatprep.subr.mxu0 0.0
  %3807 = vmatpush2.msra.mxu0 %v1996
  %3808 = vmatprep.subr.mxu0 0.0
  %3809 = vmatpush2.msra.mxu0 %v1995
  %3810 = vmatprep.subr.mxu0 0.0
  %3811 = vmatpush2.msra.mxu0 %v1994
  %3812 = vmatprep.subr.mxu0 0.0
  %3813 = vmatpush2.msra.mxu0 %v1993
  %3814 = vmatprep.subr.mxu0 0.0
  %3815 = vmatpush2.msra.mxu0 %v1992
  %3816 = vmatprep.subr.mxu0 0.0
  %3817 = vmatpush2.msra.mxu0 %v1991
  %3818 = vmatprep.subr.mxu0 0.0
  %3819 = vmatpush2.msra.mxu0 %v1990
  %3820 = vmatprep.subr.mxu0 0.0
  %3821 = vmatpush2.msra.mxu0 %v1989
  %3822 = vmatprep.subr.mxu0 0.0
  %3823 = vmatpush2.msra.mxu0 %v1988
  %3824 = vmatprep.subr.mxu0 0.0
  %3825 = vmatpush2.msra.mxu0 %v1987
  %3826 = vmatprep.subr.mxu0 0.0
  %3827 = vmatpush2.msra.mxu0 %v1986
  %3828 = vmatprep.subr.mxu0 0.0
  %3829 = vmatpush2.msra.mxu0 %v1985
  %3830 = vmatprep.subr.mxu0 0.0
  %3831 = vmatpush2.msra.mxu0 %v1984
  %3832 = vmatprep.subr.mxu0 0.0
  %3833 = vmatpush2.msra.mxu0 %v1983
  %3834 = vmatprep.subr.mxu0 0.0
  %3835 = vmatpush2.msra.mxu0 %v1982
  %3836 = vmatprep.mubr.f32.mxu0 %v1274
  %3837 = vmatmul.mubr.f32.gmra.mxu0 %v1273
  %v3838 = vpop.f32.mrf.mxu0
  %v3839 = vadd.f32 %v3769, %v3838
  %v3840 = vpop.f32.mrf.mxu0
  %3841 = vdwg.mxu0
  %3842 = vmatprep.subr.mxu0 0.0
  %3843 = vmatpush1.msra.mxu0 %v2013
  %3844 = vmatprep.subr.mxu0 0.0
  %3845 = vmatpush1.msra.mxu0 %v2012
  %3846 = vmatprep.subr.mxu0 0.0
  %3847 = vmatpush1.msra.mxu0 %v2011
  %3848 = vmatprep.subr.mxu0 0.0
  %3849 = vmatpush1.msra.mxu0 %v2010
  %3850 = vmatprep.subr.mxu0 0.0
  %3851 = vmatpush1.msra.mxu0 %v2009
  %3852 = vmatprep.subr.mxu0 0.0
  %3853 = vmatpush1.msra.mxu0 %v2008
  %3854 = vmatprep.subr.mxu0 0.0
  %3855 = vmatpush1.msra.mxu0 %v2007
  %3856 = vmatprep.subr.mxu0 0.0
  %3857 = vmatpush1.msra.mxu0 %v2006
  %3858 = vmatprep.subr.mxu0 0.0
  %3859 = vmatpush1.msra.mxu0 %v2005
  %3860 = vmatprep.subr.mxu0 0.0
  %3861 = vmatpush1.msra.mxu0 %v2004
  %3862 = vmatprep.subr.mxu0 0.0
  %3863 = vmatpush1.msra.mxu0 %v2003
  %3864 = vmatprep.subr.mxu0 0.0
  %3865 = vmatpush1.msra.mxu0 %v2002
  %3866 = vmatprep.subr.mxu0 0.0
  %3867 = vmatpush1.msra.mxu0 %v2001
  %3868 = vmatprep.subr.mxu0 0.0
  %3869 = vmatpush1.msra.mxu0 %v2000
  %3870 = vmatprep.subr.mxu0 0.0
  %3871 = vmatpush1.msra.mxu0 %v1999
  %3872 = vmatprep.subr.mxu0 0.0
  %3873 = vmatpush1.msra.mxu0 %v1998
  %3874 = vmatprep.subr.mxu0 0.0
  %3875 = vmatpush2.msra.mxu0 %v2029
  %3876 = vmatprep.subr.mxu0 0.0
  %3877 = vmatpush2.msra.mxu0 %v2028
  %3878 = vmatprep.subr.mxu0 0.0
  %3879 = vmatpush2.msra.mxu0 %v2027
  %3880 = vmatprep.subr.mxu0 0.0
  %3881 = vmatpush2.msra.mxu0 %v2026
  %3882 = vmatprep.subr.mxu0 0.0
  %3883 = vmatpush2.msra.mxu0 %v2025
  %3884 = vmatprep.subr.mxu0 0.0
  %3885 = vmatpush2.msra.mxu0 %v2024
  %3886 = vmatprep.subr.mxu0 0.0
  %3887 = vmatpush2.msra.mxu0 %v2023
  %3888 = vmatprep.subr.mxu0 0.0
  %3889 = vmatpush2.msra.mxu0 %v2022
  %3890 = vmatprep.subr.mxu0 0.0
  %3891 = vmatpush2.msra.mxu0 %v2021
  %3892 = vmatprep.subr.mxu0 0.0
  %3893 = vmatpush2.msra.mxu0 %v2020
  %3894 = vmatprep.subr.mxu0 0.0
  %3895 = vmatpush2.msra.mxu0 %v2019
  %3896 = vmatprep.subr.mxu0 0.0
  %3897 = vmatpush2.msra.mxu0 %v2018
  %3898 = vmatprep.subr.mxu0 0.0
  %3899 = vmatpush2.msra.mxu0 %v2017
  %3900 = vmatprep.subr.mxu0 0.0
  %3901 = vmatpush2.msra.mxu0 %v2016
  %3902 = vmatprep.subr.mxu0 0.0
  %3903 = vmatpush2.msra.mxu0 %v2015
  %3904 = vmatprep.subr.mxu0 0.0
  %3905 = vmatpush2.msra.mxu0 %v2014
  %3906 = vmatprep.mubr.f32.mxu0 %v1276
  %3907 = vmatmul.mubr.f32.gmra.mxu0 %v1275
  %v3908 = vpop.f32.mrf.mxu0
  %v3909 = vadd.f32 %v3839, %v3908
  %v3910 = vpop.f32.mrf.mxu0
  %3911 = vdwg.mxu0
  %3912 = vmatprep.subr.mxu0 0.0
  %3913 = vmatpush1.msra.mxu0 %v2045
  %3914 = vmatprep.subr.mxu0 0.0
  %3915 = vmatpush1.msra.mxu0 %v2044
  %3916 = vmatprep.subr.mxu0 0.0
  %3917 = vmatpush1.msra.mxu0 %v2043
  %3918 = vmatprep.subr.mxu0 0.0
  %3919 = vmatpush1.msra.mxu0 %v2042
  %3920 = vmatprep.subr.mxu0 0.0
  %3921 = vmatpush1.msra.mxu0 %v2041
  %3922 = vmatprep.subr.mxu0 0.0
  %3923 = vmatpush1.msra.mxu0 %v2040
  %3924 = vmatprep.subr.mxu0 0.0
  %3925 = vmatpush1.msra.mxu0 %v2039
  %3926 = vmatprep.subr.mxu0 0.0
  %3927 = vmatpush1.msra.mxu0 %v2038
  %3928 = vmatprep.subr.mxu0 0.0
  %3929 = vmatpush1.msra.mxu0 %v2037
  %3930 = vmatprep.subr.mxu0 0.0
  %3931 = vmatpush1.msra.mxu0 %v2036
  %3932 = vmatprep.subr.mxu0 0.0
  %3933 = vmatpush1.msra.mxu0 %v2035
  %3934 = vmatprep.subr.mxu0 0.0
  %3935 = vmatpush1.msra.mxu0 %v2034
  %3936 = vmatprep.subr.mxu0 0.0
  %3937 = vmatpush1.msra.mxu0 %v2033
  %3938 = vmatprep.subr.mxu0 0.0
  %3939 = vmatpush1.msra.mxu0 %v2032
  %3940 = vmatprep.subr.mxu0 0.0
  %3941 = vmatpush1.msra.mxu0 %v2031
  %3942 = vmatprep.subr.mxu0 0.0
  %3943 = vmatpush1.msra.mxu0 %v2030
  %3944 = vmatprep.subr.mxu0 0.0
  %3945 = vmatpush2.msra.mxu0 %v2061
  %3946 = vmatprep.subr.mxu0 0.0
  %3947 = vmatpush2.msra.mxu0 %v2060
  %3948 = vmatprep.subr.mxu0 0.0
  %3949 = vmatpush2.msra.mxu0 %v2059
  %3950 = vmatprep.subr.mxu0 0.0
  %3951 = vmatpush2.msra.mxu0 %v2058
  %3952 = vmatprep.subr.mxu0 0.0
  %3953 = vmatpush2.msra.mxu0 %v2057
  %3954 = vmatprep.subr.mxu0 0.0
  %3955 = vmatpush2.msra.mxu0 %v2056
  %3956 = vmatprep.subr.mxu0 0.0
  %3957 = vmatpush2.msra.mxu0 %v2055
  %3958 = vmatprep.subr.mxu0 0.0
  %3959 = vmatpush2.msra.mxu0 %v2054
  %3960 = vmatprep.subr.mxu0 0.0
  %3961 = vmatpush2.msra.mxu0 %v2053
  %3962 = vmatprep.subr.mxu0 0.0
  %3963 = vmatpush2.msra.mxu0 %v2052
  %3964 = vmatprep.subr.mxu0 0.0
  %3965 = vmatpush2.msra.mxu0 %v2051
  %3966 = vmatprep.subr.mxu0 0.0
  %3967 = vmatpush2.msra.mxu0 %v2050
  %3968 = vmatprep.subr.mxu0 0.0
  %3969 = vmatpush2.msra.mxu0 %v2049
  %3970 = vmatprep.subr.mxu0 0.0
  %3971 = vmatpush2.msra.mxu0 %v2048
  %3972 = vmatprep.subr.mxu0 0.0
  %3973 = vmatpush2.msra.mxu0 %v2047
  %3974 = vmatprep.subr.mxu0 0.0
  %3975 = vmatpush2.msra.mxu0 %v2046
  %3976 = vmatprep.mubr.f32.mxu0 %v1278
  %3977 = vmatmul.mubr.f32.gmra.mxu0 %v1277
  %v3978 = vpop.f32.mrf.mxu0
  %v3979 = vadd.f32 %v3909, %v3978
  %v3980 = vpop.f32.mrf.mxu0
  %3981 = vdwg.mxu0
  %3982 = vmatprep.subr.mxu0 0.0
  %3983 = vmatpush1.msra.mxu0 %v2077
  %3984 = vmatprep.subr.mxu0 0.0
  %3985 = vmatpush1.msra.mxu0 %v2076
  %3986 = vmatprep.subr.mxu0 0.0
  %3987 = vmatpush1.msra.mxu0 %v2075
  %3988 = vmatprep.subr.mxu0 0.0
  %3989 = vmatpush1.msra.mxu0 %v2074
  %3990 = vmatprep.subr.mxu0 0.0
  %3991 = vmatpush1.msra.mxu0 %v2073
  %3992 = vmatprep.subr.mxu0 0.0
  %3993 = vmatpush1.msra.mxu0 %v2072
  %3994 = vmatprep.subr.mxu0 0.0
  %3995 = vmatpush1.msra.mxu0 %v2071
  %3996 = vmatprep.subr.mxu0 0.0
  %3997 = vmatpush1.msra.mxu0 %v2070
  %3998 = vmatprep.subr.mxu0 0.0
  %3999 = vmatpush1.msra.mxu0 %v2069
  %4000 = vmatprep.subr.mxu0 0.0
  %4001 = vmatpush1.msra.mxu0 %v2068
  %4002 = vmatprep.subr.mxu0 0.0
  %4003 = vmatpush1.msra.mxu0 %v2067
  %4004 = vmatprep.subr.mxu0 0.0
  %4005 = vmatpush1.msra.mxu0 %v2066
  %4006 = vmatprep.subr.mxu0 0.0
  %4007 = vmatpush1.msra.mxu0 %v2065
  %4008 = vmatprep.subr.mxu0 0.0
  %4009 = vmatpush1.msra.mxu0 %v2064
  %4010 = vmatprep.subr.mxu0 0.0
  %4011 = vmatpush1.msra.mxu0 %v2063
  %4012 = vmatprep.subr.mxu0 0.0
  %4013 = vmatpush1.msra.mxu0 %v2062
  %4014 = vmatprep.subr.mxu0 0.0
  %4015 = vmatpush2.msra.mxu0 %v2093
  %4016 = vmatprep.subr.mxu0 0.0
  %4017 = vmatpush2.msra.mxu0 %v2092
  %4018 = vmatprep.subr.mxu0 0.0
  %4019 = vmatpush2.msra.mxu0 %v2091
  %4020 = vmatprep.subr.mxu0 0.0
  %4021 = vmatpush2.msra.mxu0 %v2090
  %4022 = vmatprep.subr.mxu0 0.0
  %4023 = vmatpush2.msra.mxu0 %v2089
  %4024 = vmatprep.subr.mxu0 0.0
  %4025 = vmatpush2.msra.mxu0 %v2088
  %4026 = vmatprep.subr.mxu0 0.0
  %4027 = vmatpush2.msra.mxu0 %v2087
  %4028 = vmatprep.subr.mxu0 0.0
  %4029 = vmatpush2.msra.mxu0 %v2086
  %4030 = vmatprep.subr.mxu0 0.0
  %4031 = vmatpush2.msra.mxu0 %v2085
  %4032 = vmatprep.subr.mxu0 0.0
  %4033 = vmatpush2.msra.mxu0 %v2084
  %4034 = vmatprep.subr.mxu0 0.0
  %4035 = vmatpush2.msra.mxu0 %v2083
  %4036 = vmatprep.subr.mxu0 0.0
  %4037 = vmatpush2.msra.mxu0 %v2082
  %4038 = vmatprep.subr.mxu0 0.0
  %4039 = vmatpush2.msra.mxu0 %v2081
  %4040 = vmatprep.subr.mxu0 0.0
  %4041 = vmatpush2.msra.mxu0 %v2080
  %4042 = vmatprep.subr.mxu0 0.0
  %4043 = vmatpush2.msra.mxu0 %v2079
  %4044 = vmatprep.subr.mxu0 0.0
  %4045 = vmatpush2.msra.mxu0 %v2078
  %4046 = vmatprep.mubr.f32.mxu0 %v1280
  %4047 = vmatmul.mubr.f32.gmra.mxu0 %v1279
  %v4048 = vpop.f32.mrf.mxu0
  %v4049 = vadd.f32 %v3979, %v4048
  %v4050 = vpop.f32.mrf.mxu0
  %4051 = vdwg.mxu0
  %4052 = vmatprep.subr.mxu0 0.0
  %4053 = vmatpush1.msra.mxu0 %v2109
  %4054 = vmatprep.subr.mxu0 0.0
  %4055 = vmatpush1.msra.mxu0 %v2108
  %4056 = vmatprep.subr.mxu0 0.0
  %4057 = vmatpush1.msra.mxu0 %v2107
  %4058 = vmatprep.subr.mxu0 0.0
  %4059 = vmatpush1.msra.mxu0 %v2106
  %4060 = vmatprep.subr.mxu0 0.0
  %4061 = vmatpush1.msra.mxu0 %v2105
  %4062 = vmatprep.subr.mxu0 0.0
  %4063 = vmatpush1.msra.mxu0 %v2104
  %4064 = vmatprep.subr.mxu0 0.0
  %4065 = vmatpush1.msra.mxu0 %v2103
  %4066 = vmatprep.subr.mxu0 0.0
  %4067 = vmatpush1.msra.mxu0 %v2102
  %4068 = vmatprep.subr.mxu0 0.0
  %4069 = vmatpush1.msra.mxu0 %v2101
  %4070 = vmatprep.subr.mxu0 0.0
  %4071 = vmatpush1.msra.mxu0 %v2100
  %4072 = vmatprep.subr.mxu0 0.0
  %4073 = vmatpush1.msra.mxu0 %v2099
  %4074 = vmatprep.subr.mxu0 0.0
  %4075 = vmatpush1.msra.mxu0 %v2098
  %4076 = vmatprep.subr.mxu0 0.0
  %4077 = vmatpush1.msra.mxu0 %v2097
  %4078 = vmatprep.subr.mxu0 0.0
  %4079 = vmatpush1.msra.mxu0 %v2096
  %4080 = vmatprep.subr.mxu0 0.0
  %4081 = vmatpush1.msra.mxu0 %v2095
  %4082 = vmatprep.subr.mxu0 0.0
  %4083 = vmatpush1.msra.mxu0 %v2094
  %4084 = vmatprep.subr.mxu0 0.0
  %4085 = vmatpush2.msra.mxu0 %v2125
  %4086 = vmatprep.subr.mxu0 0.0
  %4087 = vmatpush2.msra.mxu0 %v2124
  %4088 = vmatprep.subr.mxu0 0.0
  %4089 = vmatpush2.msra.mxu0 %v2123
  %4090 = vmatprep.subr.mxu0 0.0
  %4091 = vmatpush2.msra.mxu0 %v2122
  %4092 = vmatprep.subr.mxu0 0.0
  %4093 = vmatpush2.msra.mxu0 %v2121
  %4094 = vmatprep.subr.mxu0 0.0
  %4095 = vmatpush2.msra.mxu0 %v2120
  %4096 = vmatprep.subr.mxu0 0.0
  %4097 = vmatpush2.msra.mxu0 %v2119
  %4098 = vmatprep.subr.mxu0 0.0
  %4099 = vmatpush2.msra.mxu0 %v2118
  %4100 = vmatprep.subr.mxu0 0.0
  %4101 = vmatpush2.msra.mxu0 %v2117
  %4102 = vmatprep.subr.mxu0 0.0
  %4103 = vmatpush2.msra.mxu0 %v2116
  %4104 = vmatprep.subr.mxu0 0.0
  %4105 = vmatpush2.msra.mxu0 %v2115
  %4106 = vmatprep.subr.mxu0 0.0
  %4107 = vmatpush2.msra.mxu0 %v2114
  %4108 = vmatprep.subr.mxu0 0.0
  %4109 = vmatpush2.msra.mxu0 %v2113
  %4110 = vmatprep.subr.mxu0 0.0
  %4111 = vmatpush2.msra.mxu0 %v2112
  %4112 = vmatprep.subr.mxu0 0.0
  %4113 = vmatpush2.msra.mxu0 %v2111
  %4114 = vmatprep.subr.mxu0 0.0
  %4115 = vmatpush2.msra.mxu0 %v2110
  %4116 = vmatprep.mubr.f32.mxu0 %v1282
  %4117 = vmatmul.mubr.f32.gmra.mxu0 %v1281
  %v4118 = vpop.f32.mrf.mxu0
  %v4119 = vadd.f32 %v4049, %v4118
  %v4120 = vpop.f32.mrf.mxu0
  %4121 = vdwg.mxu0
  %4122 = vmatprep.subr.mxu0 0.0
  %4123 = vmatpush1.msra.mxu0 %v2141
  %4124 = vmatprep.subr.mxu0 0.0
  %4125 = vmatpush1.msra.mxu0 %v2140
  %4126 = vmatprep.subr.mxu0 0.0
  %4127 = vmatpush1.msra.mxu0 %v2139
  %4128 = vmatprep.subr.mxu0 0.0
  %4129 = vmatpush1.msra.mxu0 %v2138
  %4130 = vmatprep.subr.mxu0 0.0
  %4131 = vmatpush1.msra.mxu0 %v2137
  %4132 = vmatprep.subr.mxu0 0.0
  %4133 = vmatpush1.msra.mxu0 %v2136
  %4134 = vmatprep.subr.mxu0 0.0
  %4135 = vmatpush1.msra.mxu0 %v2135
  %4136 = vmatprep.subr.mxu0 0.0
  %4137 = vmatpush1.msra.mxu0 %v2134
  %4138 = vmatprep.subr.mxu0 0.0
  %4139 = vmatpush1.msra.mxu0 %v2133
  %4140 = vmatprep.subr.mxu0 0.0
  %4141 = vmatpush1.msra.mxu0 %v2132
  %4142 = vmatprep.subr.mxu0 0.0
  %4143 = vmatpush1.msra.mxu0 %v2131
  %4144 = vmatprep.subr.mxu0 0.0
  %4145 = vmatpush1.msra.mxu0 %v2130
  %4146 = vmatprep.subr.mxu0 0.0
  %4147 = vmatpush1.msra.mxu0 %v2129
  %4148 = vmatprep.subr.mxu0 0.0
  %4149 = vmatpush1.msra.mxu0 %v2128
  %4150 = vmatprep.subr.mxu0 0.0
  %4151 = vmatpush1.msra.mxu0 %v2127
  %4152 = vmatprep.subr.mxu0 0.0
  %4153 = vmatpush1.msra.mxu0 %v2126
  %4154 = vmatprep.subr.mxu0 0.0
  %4155 = vmatpush2.msra.mxu0 %v2157
  %4156 = vmatprep.subr.mxu0 0.0
  %4157 = vmatpush2.msra.mxu0 %v2156
  %4158 = vmatprep.subr.mxu0 0.0
  %4159 = vmatpush2.msra.mxu0 %v2155
  %4160 = vmatprep.subr.mxu0 0.0
  %4161 = vmatpush2.msra.mxu0 %v2154
  %4162 = vmatprep.subr.mxu0 0.0
  %4163 = vmatpush2.msra.mxu0 %v2153
  %4164 = vmatprep.subr.mxu0 0.0
  %4165 = vmatpush2.msra.mxu0 %v2152
  %4166 = vmatprep.subr.mxu0 0.0
  %4167 = vmatpush2.msra.mxu0 %v2151
  %4168 = vmatprep.subr.mxu0 0.0
  %4169 = vmatpush2.msra.mxu0 %v2150
  %4170 = vmatprep.subr.mxu0 0.0
  %4171 = vmatpush2.msra.mxu0 %v2149
  %4172 = vmatprep.subr.mxu0 0.0
  %4173 = vmatpush2.msra.mxu0 %v2148
  %4174 = vmatprep.subr.mxu0 0.0
  %4175 = vmatpush2.msra.mxu0 %v2147
  %4176 = vmatprep.subr.mxu0 0.0
  %4177 = vmatpush2.msra.mxu0 %v2146
  %4178 = vmatprep.subr.mxu0 0.0
  %4179 = vmatpush2.msra.mxu0 %v2145
  %4180 = vmatprep.subr.mxu0 0.0
  %4181 = vmatpush2.msra.mxu0 %v2144
  %4182 = vmatprep.subr.mxu0 0.0
  %4183 = vmatpush2.msra.mxu0 %v2143
  %4184 = vmatprep.subr.mxu0 0.0
  %4185 = vmatpush2.msra.mxu0 %v2142
  %4186 = vmatprep.mubr.f32.mxu0 %v1284
  %4187 = vmatmul.mubr.f32.gmra.mxu0 %v1283
  %v4188 = vpop.f32.mrf.mxu0
  %v4189 = vadd.f32 %v4119, %v4188
  %v4190 = vpop.f32.mrf.mxu0
  %4191 = vdwg.mxu0
  %4192 = vmatprep.subr.mxu0 0.0
  %4193 = vmatpush1.msra.mxu0 %v2173
  %4194 = vmatprep.subr.mxu0 0.0
  %4195 = vmatpush1.msra.mxu0 %v2172
  %4196 = vmatprep.subr.mxu0 0.0
  %4197 = vmatpush1.msra.mxu0 %v2171
  %4198 = vmatprep.subr.mxu0 0.0
  %4199 = vmatpush1.msra.mxu0 %v2170
  %4200 = vmatprep.subr.mxu0 0.0
  %4201 = vmatpush1.msra.mxu0 %v2169
  %4202 = vmatprep.subr.mxu0 0.0
  %4203 = vmatpush1.msra.mxu0 %v2168
  %4204 = vmatprep.subr.mxu0 0.0
  %4205 = vmatpush1.msra.mxu0 %v2167
  %4206 = vmatprep.subr.mxu0 0.0
  %4207 = vmatpush1.msra.mxu0 %v2166
  %4208 = vmatprep.subr.mxu0 0.0
  %4209 = vmatpush1.msra.mxu0 %v2165
  %4210 = vmatprep.subr.mxu0 0.0
  %4211 = vmatpush1.msra.mxu0 %v2164
  %4212 = vmatprep.subr.mxu0 0.0
  %4213 = vmatpush1.msra.mxu0 %v2163
  %4214 = vmatprep.subr.mxu0 0.0
  %4215 = vmatpush1.msra.mxu0 %v2162
  %4216 = vmatprep.subr.mxu0 0.0
  %4217 = vmatpush1.msra.mxu0 %v2161
  %4218 = vmatprep.subr.mxu0 0.0
  %4219 = vmatpush1.msra.mxu0 %v2160
  %4220 = vmatprep.subr.mxu0 0.0
  %4221 = vmatpush1.msra.mxu0 %v2159
  %4222 = vmatprep.subr.mxu0 0.0
  %4223 = vmatpush1.msra.mxu0 %v2158
  %4224 = vmatprep.subr.mxu0 0.0
  %4225 = vmatpush2.msra.mxu0 %v2189
  %4226 = vmatprep.subr.mxu0 0.0
  %4227 = vmatpush2.msra.mxu0 %v2188
  %4228 = vmatprep.subr.mxu0 0.0
  %4229 = vmatpush2.msra.mxu0 %v2187
  %4230 = vmatprep.subr.mxu0 0.0
  %4231 = vmatpush2.msra.mxu0 %v2186
  %4232 = vmatprep.subr.mxu0 0.0
  %4233 = vmatpush2.msra.mxu0 %v2185
  %4234 = vmatprep.subr.mxu0 0.0
  %4235 = vmatpush2.msra.mxu0 %v2184
  %4236 = vmatprep.subr.mxu0 0.0
  %4237 = vmatpush2.msra.mxu0 %v2183
  %4238 = vmatprep.subr.mxu0 0.0
  %4239 = vmatpush2.msra.mxu0 %v2182
  %4240 = vmatprep.subr.mxu0 0.0
  %4241 = vmatpush2.msra.mxu0 %v2181
  %4242 = vmatprep.subr.mxu0 0.0
  %4243 = vmatpush2.msra.mxu0 %v2180
  %4244 = vmatprep.subr.mxu0 0.0
  %4245 = vmatpush2.msra.mxu0 %v2179
  %4246 = vmatprep.subr.mxu0 0.0
  %4247 = vmatpush2.msra.mxu0 %v2178
  %4248 = vmatprep.subr.mxu0 0.0
  %4249 = vmatpush2.msra.mxu0 %v2177
  %4250 = vmatprep.subr.mxu0 0.0
  %4251 = vmatpush2.msra.mxu0 %v2176
  %4252 = vmatprep.subr.mxu0 0.0
  %4253 = vmatpush2.msra.mxu0 %v2175
  %4254 = vmatprep.subr.mxu0 0.0
  %4255 = vmatpush2.msra.mxu0 %v2174
  %4256 = vmatprep.mubr.f32.mxu0 %v1286
  %4257 = vmatmul.mubr.f32.gmra.mxu0 %v1285
  %v4258 = vpop.f32.mrf.mxu0
  %v4259 = vadd.f32 %v4189, %v4258
  %v4260 = vpop.f32.mrf.mxu0
  %4261 = vdwg.mxu0
  %4262 = vmatprep.subr.mxu0 0.0
  %4263 = vmatpush1.msra.mxu0 %v2205
  %4264 = vmatprep.subr.mxu0 0.0
  %4265 = vmatpush1.msra.mxu0 %v2204
  %4266 = vmatprep.subr.mxu0 0.0
  %4267 = vmatpush1.msra.mxu0 %v2203
  %4268 = vmatprep.subr.mxu0 0.0
  %4269 = vmatpush1.msra.mxu0 %v2202
  %4270 = vmatprep.subr.mxu0 0.0
  %4271 = vmatpush1.msra.mxu0 %v2201
  %4272 = vmatprep.subr.mxu0 0.0
  %4273 = vmatpush1.msra.mxu0 %v2200
  %4274 = vmatprep.subr.mxu0 0.0
  %4275 = vmatpush1.msra.mxu0 %v2199
  %4276 = vmatprep.subr.mxu0 0.0
  %4277 = vmatpush1.msra.mxu0 %v2198
  %4278 = vmatprep.subr.mxu0 0.0
  %4279 = vmatpush1.msra.mxu0 %v2197
  %4280 = vmatprep.subr.mxu0 0.0
  %4281 = vmatpush1.msra.mxu0 %v2196
  %4282 = vmatprep.subr.mxu0 0.0
  %4283 = vmatpush1.msra.mxu0 %v2195
  %4284 = vmatprep.subr.mxu0 0.0
  %4285 = vmatpush1.msra.mxu0 %v2194
  %4286 = vmatprep.subr.mxu0 0.0
  %4287 = vmatpush1.msra.mxu0 %v2193
  %4288 = vmatprep.subr.mxu0 0.0
  %4289 = vmatpush1.msra.mxu0 %v2192
  %4290 = vmatprep.subr.mxu0 0.0
  %4291 = vmatpush1.msra.mxu0 %v2191
  %4292 = vmatprep.subr.mxu0 0.0
  %4293 = vmatpush1.msra.mxu0 %v2190
  %4294 = vmatprep.subr.mxu0 0.0
  %4295 = vmatpush2.msra.mxu0 %v2221
  %4296 = vmatprep.subr.mxu0 0.0
  %4297 = vmatpush2.msra.mxu0 %v2220
  %4298 = vmatprep.subr.mxu0 0.0
  %4299 = vmatpush2.msra.mxu0 %v2219
  %4300 = vmatprep.subr.mxu0 0.0
  %4301 = vmatpush2.msra.mxu0 %v2218
  %4302 = vmatprep.subr.mxu0 0.0
  %4303 = vmatpush2.msra.mxu0 %v2217
  %4304 = vmatprep.subr.mxu0 0.0
  %4305 = vmatpush2.msra.mxu0 %v2216
  %4306 = vmatprep.subr.mxu0 0.0
  %4307 = vmatpush2.msra.mxu0 %v2215
  %4308 = vmatprep.subr.mxu0 0.0
  %4309 = vmatpush2.msra.mxu0 %v2214
  %4310 = vmatprep.subr.mxu0 0.0
  %4311 = vmatpush2.msra.mxu0 %v2213
  %4312 = vmatprep.subr.mxu0 0.0
  %4313 = vmatpush2.msra.mxu0 %v2212
  %4314 = vmatprep.subr.mxu0 0.0
  %4315 = vmatpush2.msra.mxu0 %v2211
  %4316 = vmatprep.subr.mxu0 0.0
  %4317 = vmatpush2.msra.mxu0 %v2210
  %4318 = vmatprep.subr.mxu0 0.0
  %4319 = vmatpush2.msra.mxu0 %v2209
  %4320 = vmatprep.subr.mxu0 0.0
  %4321 = vmatpush2.msra.mxu0 %v2208
  %4322 = vmatprep.subr.mxu0 0.0
  %4323 = vmatpush2.msra.mxu0 %v2207
  %4324 = vmatprep.subr.mxu0 0.0
  %4325 = vmatpush2.msra.mxu0 %v2206
  %4326 = vmatprep.mubr.f32.mxu0 %v1288
  %4327 = vmatmul.mubr.f32.gmra.mxu0 %v1287
  %v4328 = vpop.f32.mrf.mxu0
  %v4329 = vadd.f32 %v4259, %v4328
  %v4330 = vpop.f32.mrf.mxu0
  %4331 = vdwg.mxu0
  %4332 = vmatprep.subr.mxu0 0.0
  %4333 = vmatpush1.msra.mxu0 %v2237
  %4334 = vmatprep.subr.mxu0 0.0
  %4335 = vmatpush1.msra.mxu0 %v2236
  %4336 = vmatprep.subr.mxu0 0.0
  %4337 = vmatpush1.msra.mxu0 %v2235
  %4338 = vmatprep.subr.mxu0 0.0
  %4339 = vmatpush1.msra.mxu0 %v2234
  %4340 = vmatprep.subr.mxu0 0.0
  %4341 = vmatpush1.msra.mxu0 %v2233
  %4342 = vmatprep.subr.mxu0 0.0
  %4343 = vmatpush1.msra.mxu0 %v2232
  %4344 = vmatprep.subr.mxu0 0.0
  %4345 = vmatpush1.msra.mxu0 %v2231
  %4346 = vmatprep.subr.mxu0 0.0
  %4347 = vmatpush1.msra.mxu0 %v2230
  %4348 = vmatprep.subr.mxu0 0.0
  %4349 = vmatpush1.msra.mxu0 %v2229
  %4350 = vmatprep.subr.mxu0 0.0
  %4351 = vmatpush1.msra.mxu0 %v2228
  %4352 = vmatprep.subr.mxu0 0.0
  %4353 = vmatpush1.msra.mxu0 %v2227
  %4354 = vmatprep.subr.mxu0 0.0
  %4355 = vmatpush1.msra.mxu0 %v2226
  %4356 = vmatprep.subr.mxu0 0.0
  %4357 = vmatpush1.msra.mxu0 %v2225
  %4358 = vmatprep.subr.mxu0 0.0
  %4359 = vmatpush1.msra.mxu0 %v2224
  %4360 = vmatprep.subr.mxu0 0.0
  %4361 = vmatpush1.msra.mxu0 %v2223
  %4362 = vmatprep.subr.mxu0 0.0
  %4363 = vmatpush1.msra.mxu0 %v2222
  %4364 = vmatprep.subr.mxu0 0.0
  %4365 = vmatpush2.msra.mxu0 %v2253
  %4366 = vmatprep.subr.mxu0 0.0
  %4367 = vmatpush2.msra.mxu0 %v2252
  %4368 = vmatprep.subr.mxu0 0.0
  %4369 = vmatpush2.msra.mxu0 %v2251
  %4370 = vmatprep.subr.mxu0 0.0
  %4371 = vmatpush2.msra.mxu0 %v2250
  %4372 = vmatprep.subr.mxu0 0.0
  %4373 = vmatpush2.msra.mxu0 %v2249
  %4374 = vmatprep.subr.mxu0 0.0
  %4375 = vmatpush2.msra.mxu0 %v2248
  %4376 = vmatprep.subr.mxu0 0.0
  %4377 = vmatpush2.msra.mxu0 %v2247
  %4378 = vmatprep.subr.mxu0 0.0
  %4379 = vmatpush2.msra.mxu0 %v2246
  %4380 = vmatprep.subr.mxu0 0.0
  %4381 = vmatpush2.msra.mxu0 %v2245
  %4382 = vmatprep.subr.mxu0 0.0
  %4383 = vmatpush2.msra.mxu0 %v2244
  %4384 = vmatprep.subr.mxu0 0.0
  %4385 = vmatpush2.msra.mxu0 %v2243
  %4386 = vmatprep.subr.mxu0 0.0
  %4387 = vmatpush2.msra.mxu0 %v2242
  %4388 = vmatprep.subr.mxu0 0.0
  %4389 = vmatpush2.msra.mxu0 %v2241
  %4390 = vmatprep.subr.mxu0 0.0
  %4391 = vmatpush2.msra.mxu0 %v2240
  %4392 = vmatprep.subr.mxu0 0.0
  %4393 = vmatpush2.msra.mxu0 %v2239
  %4394 = vmatprep.subr.mxu0 0.0
  %4395 = vmatpush2.msra.mxu0 %v2238
  %4396 = vmatprep.mubr.f32.mxu0 %v1290
  %4397 = vmatmul.mubr.f32.gmra.mxu0 %v1289
  %v4398 = vpop.f32.mrf.mxu0
  %v4399 = vadd.f32 %v4329, %v4398
  %v4400 = vpop.f32.mrf.mxu0
  %4401 = vdwg.mxu0
  %4402 = vmatprep.subr.mxu0 0.0
  %4403 = vmatpush1.msra.mxu0 %v2269
  %4404 = vmatprep.subr.mxu0 0.0
  %4405 = vmatpush1.msra.mxu0 %v2268
  %4406 = vmatprep.subr.mxu0 0.0
  %4407 = vmatpush1.msra.mxu0 %v2267
  %4408 = vmatprep.subr.mxu0 0.0
  %4409 = vmatpush1.msra.mxu0 %v2266
  %4410 = vmatprep.subr.mxu0 0.0
  %4411 = vmatpush1.msra.mxu0 %v2265
  %4412 = vmatprep.subr.mxu0 0.0
  %4413 = vmatpush1.msra.mxu0 %v2264
  %4414 = vmatprep.subr.mxu0 0.0
  %4415 = vmatpush1.msra.mxu0 %v2263
  %4416 = vmatprep.subr.mxu0 0.0
  %4417 = vmatpush1.msra.mxu0 %v2262
  %4418 = vmatprep.subr.mxu0 0.0
  %4419 = vmatpush1.msra.mxu0 %v2261
  %4420 = vmatprep.subr.mxu0 0.0
  %4421 = vmatpush1.msra.mxu0 %v2260
  %4422 = vmatprep.subr.mxu0 0.0
  %4423 = vmatpush1.msra.mxu0 %v2259
  %4424 = vmatprep.subr.mxu0 0.0
  %4425 = vmatpush1.msra.mxu0 %v2258
  %4426 = vmatprep.subr.mxu0 0.0
  %4427 = vmatpush1.msra.mxu0 %v2257
  %4428 = vmatprep.subr.mxu0 0.0
  %4429 = vmatpush1.msra.mxu0 %v2256
  %4430 = vmatprep.subr.mxu0 0.0
  %4431 = vmatpush1.msra.mxu0 %v2255
  %4432 = vmatprep.subr.mxu0 0.0
  %4433 = vmatpush1.msra.mxu0 %v2254
  %4434 = vmatprep.subr.mxu0 0.0
  %4435 = vmatpush2.msra.mxu0 %v2285
  %4436 = vmatprep.subr.mxu0 0.0
  %4437 = vmatpush2.msra.mxu0 %v2284
  %4438 = vmatprep.subr.mxu0 0.0
  %4439 = vmatpush2.msra.mxu0 %v2283
  %4440 = vmatprep.subr.mxu0 0.0
  %4441 = vmatpush2.msra.mxu0 %v2282
  %4442 = vmatprep.subr.mxu0 0.0
  %4443 = vmatpush2.msra.mxu0 %v2281
  %4444 = vmatprep.subr.mxu0 0.0
  %4445 = vmatpush2.msra.mxu0 %v2280
  %4446 = vmatprep.subr.mxu0 0.0
  %4447 = vmatpush2.msra.mxu0 %v2279
  %4448 = vmatprep.subr.mxu0 0.0
  %4449 = vmatpush2.msra.mxu0 %v2278
  %4450 = vmatprep.subr.mxu0 0.0
  %4451 = vmatpush2.msra.mxu0 %v2277
  %4452 = vmatprep.subr.mxu0 0.0
  %4453 = vmatpush2.msra.mxu0 %v2276
  %4454 = vmatprep.subr.mxu0 0.0
  %4455 = vmatpush2.msra.mxu0 %v2275
  %4456 = vmatprep.subr.mxu0 0.0
  %4457 = vmatpush2.msra.mxu0 %v2274
  %4458 = vmatprep.subr.mxu0 0.0
  %4459 = vmatpush2.msra.mxu0 %v2273
  %4460 = vmatprep.subr.mxu0 0.0
  %4461 = vmatpush2.msra.mxu0 %v2272
  %4462 = vmatprep.subr.mxu0 0.0
  %4463 = vmatpush2.msra.mxu0 %v2271
  %4464 = vmatprep.subr.mxu0 0.0
  %4465 = vmatpush2.msra.mxu0 %v2270
  %4466 = vmatprep.mubr.f32.mxu0 %v1292
  %4467 = vmatmul.mubr.f32.gmra.mxu0 %v1291
  %v4468 = vpop.f32.mrf.mxu0
  %v4469 = vadd.f32 %v4399, %v4468
  %v4470 = vpop.f32.mrf.mxu0
  %4471 = vdwg.mxu0
  %4472 = vmatprep.subr.mxu0 0.0
  %4473 = vmatpush1.msra.mxu0 %v2301
  %4474 = vmatprep.subr.mxu0 0.0
  %4475 = vmatpush1.msra.mxu0 %v2300
  %4476 = vmatprep.subr.mxu0 0.0
  %4477 = vmatpush1.msra.mxu0 %v2299
  %4478 = vmatprep.subr.mxu0 0.0
  %4479 = vmatpush1.msra.mxu0 %v2298
  %4480 = vmatprep.subr.mxu0 0.0
  %4481 = vmatpush1.msra.mxu0 %v2297
  %4482 = vmatprep.subr.mxu0 0.0
  %4483 = vmatpush1.msra.mxu0 %v2296
  %4484 = vmatprep.subr.mxu0 0.0
  %4485 = vmatpush1.msra.mxu0 %v2295
  %4486 = vmatprep.subr.mxu0 0.0
  %4487 = vmatpush1.msra.mxu0 %v2294
  %4488 = vmatprep.subr.mxu0 0.0
  %4489 = vmatpush1.msra.mxu0 %v2293
  %4490 = vmatprep.subr.mxu0 0.0
  %4491 = vmatpush1.msra.mxu0 %v2292
  %4492 = vmatprep.subr.mxu0 0.0
  %4493 = vmatpush1.msra.mxu0 %v2291
  %4494 = vmatprep.subr.mxu0 0.0
  %4495 = vmatpush1.msra.mxu0 %v2290
  %4496 = vmatprep.subr.mxu0 0.0
  %4497 = vmatpush1.msra.mxu0 %v2289
  %4498 = vmatprep.subr.mxu0 0.0
  %4499 = vmatpush1.msra.mxu0 %v2288
  %4500 = vmatprep.subr.mxu0 0.0
  %4501 = vmatpush1.msra.mxu0 %v2287
  %4502 = vmatprep.subr.mxu0 0.0
  %4503 = vmatpush1.msra.mxu0 %v2286
  %4504 = vmatprep.subr.mxu0 0.0
  %4505 = vmatpush2.msra.mxu0 0.0
  %4506 = vmatprep.subr.mxu0 0.0
  %4507 = vmatpush2.msra.mxu0 0.0
  %4508 = vmatprep.subr.mxu0 0.0
  %4509 = vmatpush2.msra.mxu0 0.0
  %4510 = vmatprep.subr.mxu0 0.0
  %4511 = vmatpush2.msra.mxu0 0.0
  %4512 = vmatprep.subr.mxu0 0.0
  %4513 = vmatpush2.msra.mxu0 0.0
  %4514 = vmatprep.subr.mxu0 0.0
  %4515 = vmatpush2.msra.mxu0 0.0
  %4516 = vmatprep.subr.mxu0 0.0
  %4517 = vmatpush2.msra.mxu0 0.0
  %4518 = vmatprep.subr.mxu0 0.0
  %4519 = vmatpush2.msra.mxu0 0.0
  %4520 = vmatprep.subr.mxu0 0.0
  %4521 = vmatpush2.msra.mxu0 0.0
  %4522 = vmatprep.subr.mxu0 0.0
  %4523 = vmatpush2.msra.mxu0 0.0
  %4524 = vmatprep.subr.mxu0 0.0
  %4525 = vmatpush2.msra.mxu0 0.0
  %4526 = vmatprep.subr.mxu0 0.0
  %4527 = vmatpush2.msra.mxu0 0.0
  %4528 = vmatprep.subr.mxu0 0.0
  %4529 = vmatpush2.msra.mxu0 0.0
  %4530 = vmatprep.subr.mxu0 0.0
  %4531 = vmatpush2.msra.mxu0 0.0
  %4532 = vmatprep.subr.mxu0 0.0
  %4533 = vmatpush2.msra.mxu0 0.0
  %4534 = vmatprep.subr.mxu0 0.0
  %4535 = vmatpush2.msra.mxu0 0.0
  %4536 = vmatprep.mubr.f32.mxu0 0.0
  %4537 = vmatmul.mubr.f32.gmra.mxu0 %v1293
  %v4538 = vpop.f32.mrf.mxu0
  %v4539 = vadd.f32 %v4469, %v4538
  %v4540 = vpop.f32.mrf.mxu0
  %4541 = vdwg.mxu0
  %v4542 = vrcp.pop %v4539
  %4544 = vset.pattern.permute.xlu0 64
  %4545 = vperm.xlu0 %4544, %v4542
  %v4546 = vpop.permute.xlu0 %4545
  %v4548 = vmul.f32 %v4539, %v4546
  %v4549 = vadd.f32 %v1198, %v4548
  %v4550 = vmax.f32 %v4549, 0.0
  %v4551 = vld [vmem:[%s9] sm:$0xff]
  %v4552 = vld [vmem:[%s9 + $0x8] sm:$0xff]
  %v4553 = vld [vmem:[%s9 + $0x10] sm:$0xff]
  %v4554 = vld [vmem:[%s9 + $0x18] sm:$0xff]
  %v4555 = vld [vmem:[%s9 + $0x20] sm:$0xff]
  %v4556 = vld [vmem:[%s9 + $0x28] sm:$0xff]
  %v4557 = vld [vmem:[%s9 + $0x30] sm:$0xff]
  %v4558 = vld [vmem:[%s9 + $0x38] sm:$0xff]
  %v4559 = vld [vmem:[%s10] sm:$0x1]
  %v4561 = vlaneseq
  %v4562 = vshrl.u32 %v4561, 7
  %v4563 = vsub.s32 0, %v4562
  %v4564 = vrot.slane %v4559, %v4563
  %vm4566 = vcmask 523264
  %v4568 = vsel %vm4566, %v4550, 0
  %4570 = vmatprep.subr.mxu0 0.0
  %4571 = vmatpush1.msra.mxu0 0.0
  %4572 = vmatprep.subr.mxu0 0.0
  %4573 = vmatpush1.msra.mxu0 0.0
  %4574 = vmatprep.subr.mxu0 0.0
  %4575 = vmatpush1.msra.mxu0 0.0
  %4576 = vmatprep.subr.mxu0 0.0
  %4577 = vmatpush1.msra.mxu0 0.0
  %4578 = vmatprep.subr.mxu0 0.0
  %4579 = vmatpush1.msra.mxu0 0.0
  %4580 = vmatprep.subr.mxu0 0.0
  %4581 = vmatpush1.msra.mxu0 0.0
  %4582 = vmatprep.subr.mxu0 0.0
  %4583 = vmatpush1.msra.mxu0 0.0
  %4584 = vmatprep.subr.mxu0 0.0
  %4585 = vmatpush1.msra.mxu0 0.0
  %4586 = vmatprep.subr.mxu0 0.0
  %4587 = vmatpush1.msra.mxu0 %v4558
  %4588 = vmatprep.subr.mxu0 0.0
  %4589 = vmatpush1.msra.mxu0 %v4557
  %4590 = vmatprep.subr.mxu0 0.0
  %4591 = vmatpush1.msra.mxu0 %v4556
  %4592 = vmatprep.subr.mxu0 0.0
  %4593 = vmatpush1.msra.mxu0 %v4555
  %4594 = vmatprep.subr.mxu0 0.0
  %4595 = vmatpush1.msra.mxu0 %v4554
  %4596 = vmatprep.subr.mxu0 0.0
  %4597 = vmatpush1.msra.mxu0 %v4553
  %4598 = vmatprep.subr.mxu0 0.0
  %4599 = vmatpush1.msra.mxu0 %v4552
  %4600 = vmatprep.subr.mxu0 0.0
  %4601 = vmatpush1.msra.mxu0 %v4551
  %4602 = vmatprep.subr.mxu0 0.0
  %4603 = vmatpush2.msra.mxu0 0.0
  %4604 = vmatprep.subr.mxu0 0.0
  %4605 = vmatpush2.msra.mxu0 0.0
  %4606 = vmatprep.subr.mxu0 0.0
  %4607 = vmatpush2.msra.mxu0 0.0
  %4608 = vmatprep.subr.mxu0 0.0
  %4609 = vmatpush2.msra.mxu0 0.0
  %4610 = vmatprep.subr.mxu0 0.0
  %4611 = vmatpush2.msra.mxu0 0.0
  %4612 = vmatprep.subr.mxu0 0.0
  %4613 = vmatpush2.msra.mxu0 0.0
  %4614 = vmatprep.subr.mxu0 0.0
  %4615 = vmatpush2.msra.mxu0 0.0
  %4616 = vmatprep.subr.mxu0 0.0
  %4617 = vmatpush2.msra.mxu0 0.0
  %4618 = vmatprep.subr.mxu0 0.0
  %4619 = vmatpush2.msra.mxu0 0.0
  %4620 = vmatprep.subr.mxu0 0.0
  %4621 = vmatpush2.msra.mxu0 0.0
  %4622 = vmatprep.subr.mxu0 0.0
  %4623 = vmatpush2.msra.mxu0 0.0
  %4624 = vmatprep.subr.mxu0 0.0
  %4625 = vmatpush2.msra.mxu0 0.0
  %4626 = vmatprep.subr.mxu0 0.0
  %4627 = vmatpush2.msra.mxu0 0.0
  %4628 = vmatprep.subr.mxu0 0.0
  %4629 = vmatpush2.msra.mxu0 0.0
  %4630 = vmatprep.subr.mxu0 0.0
  %4631 = vmatpush2.msra.mxu0 0.0
  %4632 = vmatprep.subr.mxu0 0.0
  %4633 = vmatpush2.msra.mxu0 0.0
  %4634 = vmatprep.mubr.f32.mxu0 0.0
  %4635 = vmatmul.mubr.f32.gmra.mxu0 %v4568
  %v4636 = vpop.f32.mrf.mxu0
  %v4637 = vadd.f32 %v4564, %v4636
  %v4638 = vpop.f32.mrf.mxu0
  %4639 = vdwg.mxu0
  %v4640 = vmax.f32 %v4637, 0.0
  %v4641 = vld [vmem:[%s11] sm:$0xff]
  %v4642 = vld [vmem:[%s11 + $0x8] sm:$0xff]
  %v4643 = vld [vmem:[%s11 + $0x10] sm:$0xff]
  %v4644 = vld [vmem:[%s11 + $0x18] sm:$0xff]
  %v4645 = vld [vmem:[%s11 + $0x20] sm:$0xff]
  %v4646 = vld [vmem:[%s11 + $0x28] sm:$0xff]
  %v4647 = vld [vmem:[%s11 + $0x30] sm:$0xff]
  %v4648 = vld [vmem:[%s11 + $0x38] sm:$0xff]
  %v4649 = vld [vmem:[#allocation2] sm:$0x1]
  %v4651 = vlaneseq
  %v4652 = vshrl.u32 %v4651, 7
  %v4653 = vsub.s32 0, %v4652
  %v4654 = vrot.slane %v4649, %v4653
  %v4657 = vsel %vm4566, %v4640, 0
  %4659 = vmatprep.subr.mxu0 0.0
  %4660 = vmatpush1.msra.mxu0 0.0
  %4661 = vmatprep.subr.mxu0 0.0
  %4662 = vmatpush1.msra.mxu0 0.0
  %4663 = vmatprep.subr.mxu0 0.0
  %4664 = vmatpush1.msra.mxu0 0.0
  %4665 = vmatprep.subr.mxu0 0.0
  %4666 = vmatpush1.msra.mxu0 0.0
  %4667 = vmatprep.subr.mxu0 0.0
  %4668 = vmatpush1.msra.mxu0 0.0
  %4669 = vmatprep.subr.mxu0 0.0
  %4670 = vmatpush1.msra.mxu0 0.0
  %4671 = vmatprep.subr.mxu0 0.0
  %4672 = vmatpush1.msra.mxu0 0.0
  %4673 = vmatprep.subr.mxu0 0.0
  %4674 = vmatpush1.msra.mxu0 0.0
  %4675 = vmatprep.subr.mxu0 0.0
  %4676 = vmatpush1.msra.mxu0 %v4648
  %4677 = vmatprep.subr.mxu0 0.0
  %4678 = vmatpush1.msra.mxu0 %v4647
  %4679 = vmatprep.subr.mxu0 0.0
  %4680 = vmatpush1.msra.mxu0 %v4646
  %4681 = vmatprep.subr.mxu0 0.0
  %4682 = vmatpush1.msra.mxu0 %v4645
  %4683 = vmatprep.subr.mxu0 0.0
  %4684 = vmatpush1.msra.mxu0 %v4644
  %4685 = vmatprep.subr.mxu0 0.0
  %4686 = vmatpush1.msra.mxu0 %v4643
  %4687 = vmatprep.subr.mxu0 0.0
  %4688 = vmatpush1.msra.mxu0 %v4642
  %4689 = vmatprep.subr.mxu0 0.0
  %4690 = vmatpush1.msra.mxu0 %v4641
  %4691 = vmatprep.subr.mxu0 0.0
  %4692 = vmatpush2.msra.mxu0 0.0
  %4693 = vmatprep.subr.mxu0 0.0
  %4694 = vmatpush2.msra.mxu0 0.0
  %4695 = vmatprep.subr.mxu0 0.0
  %4696 = vmatpush2.msra.mxu0 0.0
  %4697 = vmatprep.subr.mxu0 0.0
  %4698 = vmatpush2.msra.mxu0 0.0
  %4699 = vmatprep.subr.mxu0 0.0
  %4700 = vmatpush2.msra.mxu0 0.0
  %4701 = vmatprep.subr.mxu0 0.0
  %4702 = vmatpush2.msra.mxu0 0.0
  %4703 = vmatprep.subr.mxu0 0.0
  %4704 = vmatpush2.msra.mxu0 0.0
  %4705 = vmatprep.subr.mxu0 0.0
  %4706 = vmatpush2.msra.mxu0 0.0
  %4707 = vmatprep.subr.mxu0 0.0
  %4708 = vmatpush2.msra.mxu0 0.0
  %4709 = vmatprep.subr.mxu0 0.0
  %4710 = vmatpush2.msra.mxu0 0.0
  %4711 = vmatprep.subr.mxu0 0.0
  %4712 = vmatpush2.msra.mxu0 0.0
  %4713 = vmatprep.subr.mxu0 0.0
  %4714 = vmatpush2.msra.mxu0 0.0
  %4715 = vmatprep.subr.mxu0 0.0
  %4716 = vmatpush2.msra.mxu0 0.0
  %4717 = vmatprep.subr.mxu0 0.0
  %4718 = vmatpush2.msra.mxu0 0.0
  %4719 = vmatprep.subr.mxu0 0.0
  %4720 = vmatpush2.msra.mxu0 0.0
  %4721 = vmatprep.subr.mxu0 0.0
  %4722 = vmatpush2.msra.mxu0 0.0
  %4723 = vmatprep.mubr.f32.mxu0 0.0
  %4724 = vmatmul.mubr.f32.gmra.mxu0 %v4657
  %v4725 = vpop.f32.mrf.mxu0
  %v4726 = vadd.f32 %v4654, %v4725
  %v4727 = vpop.f32.mrf.mxu0
  %4728 = vdwg.mxu0
  %vm4729 = vcmask 7168
  %4730 = vst.msk [vmem:[%s13] sm:$0xff] %vm4729, %v4726
  // Predicated region
  $region54: #{_lambda_.1} parent=0 // pred_check
    _
  $region55: #{_lambda_.1} parent=0 // pred_check_branch
    %4732 = sbr.rel (0) target = $region57
  $region56: #{_lambda_.1} parent=0 // pred_region
    _
  $region57: #{_lambda_.1} parent=0 // pred_fallthru
    _
  // Predicated region
  $region58: #{_lambda_.1} parent=0 // pred_check
    _
  $region59: #{_lambda_.1} parent=0 // pred_check_branch
    %4734 = sbr.rel (0) target = $region61
  $region60: #{_lambda_.1} parent=0 // pred_region
    _
  $region61: #{_lambda_.1} parent=0 // pred_fallthru
    _

</llo_original>
